<compile_context>
chip_gen: v6e
topology: v6e:2x2x1
jax: 0.10.0
libtpu: 0.0.40
codegen_flags: <defaults>
</compile_context>

<pallas_src>
import functools

import jax
import jax.numpy as jnp
from jax.experimental import pallas as pl
from jax.experimental.pallas import tpu as pltpu

KS = 3      # Conv2d_CG kernel_size
BN_EPS = 1e-5


# --------------------------- Pallas kernels (hot path) ------------------------
#
# Layout used by the kernels (channels-last, spatially flattened, zero-padded):
#   x_flat  : (B, (H+3)*Wp, C)  with Wp = W+2, H padded by (1,2), W by (1,1)
#   gw      : (B, 9, C, OC)     gated 3x3 weights, tap index = kh*3 + kw (bf16)
#   output  : (B, H*Wp, OC)     out[h*Wp + w] is valid for w < W (junk cols
#                               w in {W, W+1} are sliced off in the wrapper)
#
# For an output-row tile starting at row0, tap (kh, kw) contributes
#   x_flat[(row0+kh)*Wp + kw + j, c] * gw[kh*3+kw, c, oc]
# which for j = a*Wp + w (w < W) is exactly x_pad[row0+a+kh, w+kw, c], i.e. the
# standard padded 3x3 conv; wrap-around terms only land in the junk columns.


def _accumulate_taps(gw_ref, x_ref, tile_idx, *, TH, Wp):
    THWp = TH * Wp
    OC = gw_ref.shape[2]
    base_rows = THWp + 2 * Wp + 2                       # rows needed incl. halo
    start = pl.multiple_of(tile_idx * THWp, 8)          # TH % 8 == 0 (or 1 tile)
    base = x_ref[pl.ds(start, base_rows), :]            # (base_rows, C) f32
    acc = jnp.zeros((THWp, OC), jnp.float32)
    for kh in range(KS):
        for kw in range(KS):
            off = kh * Wp + kw                          # static tap offset
            xs = base[off:off + THWp, :].astype(jnp.bfloat16)
            acc = acc + jnp.dot(xs, gw_ref[kh * KS + kw],
                                preferred_element_type=jnp.float32)
    return acc


def _cg_conv_relu_kernel(gw_ref, x_ref, o_ref, *, TH, Wp):
    acc = _accumulate_taps(gw_ref, x_ref, pl.program_id(1), TH=TH, Wp=Wp)
    o_ref[...] = jnp.maximum(acc, 0.0)


def _cg_conv_residual_kernel(scale_ref, gw_ref, x_ref, res_ref, o_ref, *, TH, Wp):
    acc = _accumulate_taps(gw_ref, x_ref, pl.program_id(1), TH=TH, Wp=Wp)
    o_ref[...] = acc * scale_ref[0] + res_ref[...]


def _choose_row_tile(H, Wp, nf):
    """Largest row tile TH (multiple of 8, dividing H) whose f32 output block
    stays under ~1 MiB; fall back to the whole image (always legal)."""
    cands = [th for th in range(8, H, 8) if H % th == 0]
    for th in sorted(cands, reverse=True):
        if th * Wp * nf * 4 <= (1 << 20):
            return th
    return cands[0] if cands else H


_COMPILER_PARAMS = pltpu.CompilerParams(
    dimension_semantics=("parallel", "parallel"),
    vmem_limit_bytes=32 * 1024 * 1024,
)


def gated_conv_relu(gw, x_flat, H, W):
    B, _, C, OC = gw.shape
    Wp = W + 2
    TH = _choose_row_tile(H, Wp, max(C, OC))
    T = H // TH
    kernel = functools.partial(_cg_conv_relu_kernel, TH=TH, Wp=Wp)
    return pl.pallas_call(
        kernel,
        out_shape=jax.ShapeDtypeStruct((B, H * Wp, OC), jnp.float32),
        grid_spec=pltpu.PrefetchScalarGridSpec(
            num_scalar_prefetch=0,
            grid=(B, T),
            in_specs=[
                pl.BlockSpec((pl.Squeezed(), KS * KS, C, OC),
                             lambda b, t: (b, 0, 0, 0)),
                pl.BlockSpec((pl.Squeezed(), (H + 3) * Wp, C),
                             lambda b, t: (b, 0, 0)),       # resident across t
            ],
            out_specs=pl.BlockSpec((pl.Squeezed(), TH * Wp, OC),
                                   lambda b, t: (b, t, 0)),
        ),
        compiler_params=_COMPILER_PARAMS,
    )(gw, x_flat)


def gated_conv_residual(gw, x_flat, res_flat, res_scale, H, W):
    B, _, C, OC = gw.shape
    Wp = W + 2
    TH = _choose_row_tile(H, Wp, max(C, OC))
    T = H // TH
    kernel = functools.partial(_cg_conv_residual_kernel, TH=TH, Wp=Wp)
    scale = jnp.asarray(res_scale, jnp.float32).reshape((1,))
    return pl.pallas_call(
        kernel,
        out_shape=jax.ShapeDtypeStruct((B, H * Wp, OC), jnp.float32),
        grid_spec=pltpu.PrefetchScalarGridSpec(
            num_scalar_prefetch=0,
            grid=(B, T),
            in_specs=[
                pl.BlockSpec(memory_space=pltpu.MemorySpace.SMEM),   # res_scale
                pl.BlockSpec((pl.Squeezed(), KS * KS, C, OC),
                             lambda b, t: (b, 0, 0, 0)),
                pl.BlockSpec((pl.Squeezed(), (H + 3) * Wp, C),
                             lambda b, t: (b, 0, 0)),
                pl.BlockSpec((pl.Squeezed(), TH * Wp, C),
                             lambda b, t: (b, t, 0)),
            ],
            out_specs=pl.BlockSpec((pl.Squeezed(), TH * Wp, OC),
                                   lambda b, t: (b, t, 0)),
        ),
        input_output_aliases=({3: 0} if C == OC else {}),
        compiler_params=_COMPILER_PARAMS,
    )(scale, gw, x_flat, res_flat)


# --------------------------- JAX glue (gate generation) -----------------------

def _adaptive_avg_pool_nhwc(x, oh, ow):
    """nn.AdaptiveAvgPool2d index math (floor start / ceil end bins),
    vectorized via an integral image (no Python loop over bins)."""
    B, H, W, C = x.shape
    cs = jnp.cumsum(jnp.cumsum(x, axis=1), axis=2)
    cs = jnp.pad(cs, ((0, 0), (1, 0), (1, 0), (0, 0)))          # (B,H+1,W+1,C)
    hs = [(i * H) // oh for i in range(oh)]
    he = [((i + 1) * H + oh - 1) // oh for i in range(oh)]
    ws = [(j * W) // ow for j in range(ow)]
    we = [((j + 1) * W + ow - 1) // ow for j in range(ow)]
    hs_i, he_i = jnp.array(hs), jnp.array(he)
    ws_i, we_i = jnp.array(ws), jnp.array(we)
    top, bot = cs[:, hs_i, :, :], cs[:, he_i, :, :]
    sums = (bot[:, :, we_i, :] - bot[:, :, ws_i, :]
            - top[:, :, we_i, :] + top[:, :, ws_i, :])          # (B,oh,ow,C)
    cnt = jnp.array([[(he[i] - hs[i]) * (we[j] - ws[j]) for j in range(ow)]
                     for i in range(oh)], dtype=x.dtype)
    return sums / cnt[None, :, :, None]


def _bn1d_eval(x, p):
    # BatchNorm1d on (B, C, L) in eval/inference mode (running statistics).
    # TODO(synk): training-mode batch statistics (PyTorch default .train()) not modeled.
    w, b = p["weight"], p["bias"]
    rm, rv = p["running_mean"], p["running_var"]
    return (x - rm[None, :, None]) / jnp.sqrt(rv[None, :, None] + BN_EPS) \
        * w[None, :, None] + b[None, :, None]


def _gated_weights(x_nhwc, p):
    """common.Conv2d_CG gate generation. Returns the per-sample gated 3x3
    weights laid out for the tap-matmul kernel: (B, 9, C, OC) in bfloat16."""
    B, H, W, C = x_nhwc.shape
    w = p["weight"]                                     # (OC, C, 3, 3)
    OC = w.shape[0]
    num_lat = KS * KS // 2 + 1                          # 5
    g = 16 if (C // 16) else C

    # context encoding
    pooled = _adaptive_avg_pool_nhwc(x_nhwc, KS, KS)                 # (B,3,3,C)
    gl = jnp.transpose(pooled, (0, 3, 1, 2)).reshape(B, C, KS * KS)  # (B,C,9)
    out = gl @ p["ce_w"].T                                           # (B,C,5)
    ce2 = out
    out = jax.nn.relu(_bn1d_eval(out, p["ce_bn"]))
    out = out @ p["gd_w"].T                                          # (B,C,9)

    # channel interaction
    t = _bn1d_eval(ce2, p["ci_bn2"])                                 # (B,C,5)
    if g > 3:
        t = t.reshape(B, C // g, g, num_lat).transpose(0, 1, 3, 2)
        t = jax.nn.relu(t) @ p["ci_w"].T
        t = t.transpose(0, 1, 3, 2)
    else:
        t = jax.nn.relu(t.transpose(0, 2, 1)) @ p["ci_w"].T
        t = t.transpose(0, 2, 1)
    oc_t = t.reshape(B, OC, num_lat)
    oc_t = jax.nn.relu(_bn1d_eval(oc_t, p["ci_bn"]))
    oc_t = oc_t @ p["gd2_w"].T                                       # (B,OC,9)

    # gate (eq. (4) in CRAN) and gated weight
    gate = jax.nn.sigmoid(out.reshape(B, 1, C, KS, KS)
                          + oc_t.reshape(B, OC, 1, KS, KS))
    gw = gate * w[None]                                              # (B,OC,C,3,3)
    gw = jnp.transpose(gw, (0, 3, 4, 2, 1)).reshape(B, KS * KS, C, OC)
    return gw.astype(jnp.bfloat16)


def _pad_and_flatten_nhwc(x_nhwc):
    """Zero-pad H by (1,2) and W by (1,1), flatten spatial -> (B, (H+3)*Wp, C).
    (The extra bottom row keeps the flat tap slices in-bounds.)"""
    B, H, W, C = x_nhwc.shape
    xp = jnp.pad(x_nhwc, ((0, 0), (1, 2), (1, 1), (0, 0)))
    return xp.reshape(B, (H + 3) * (W + 2), C)


# --------------------------- CRABLayer forward --------------------------------

def crab_layer_forward(x, params, res_scale=1.0):
    B, C, H, W = x.shape
    Wp = W + 2
    x_nhwc = jnp.transpose(x, (0, 2, 3, 1)).astype(jnp.float32)      # (B,H,W,C)

    # conv_CRAC[0] + fused ReLU
    gw1 = _gated_weights(x_nhwc, params["conv1"])
    h1 = gated_conv_relu(gw1, _pad_and_flatten_nhwc(x_nhwc), H, W)   # (B,H*Wp,C)
    h1_nhwc = h1.reshape(B, H, Wp, -1)[:, :, :W, :]                  # drop junk cols

    # conv_CRAC[2] + fused (* res_scale) + residual add
    gw2 = _gated_weights(h1_nhwc, params["conv2"])
    res_flat = jnp.pad(x_nhwc, ((0, 0), (0, 0), (0, 2), (0, 0))).reshape(B, H * Wp, C)
    out = gated_conv_residual(gw2, _pad_and_flatten_nhwc(h1_nhwc),
                              res_flat, res_scale, H, W)
    out_nhwc = out.reshape(B, H, Wp, -1)[:, :, :W, :]
    return jnp.transpose(out_nhwc, (0, 3, 1, 2))                     # back to NCHW


# --------------------------- deterministic parameter init ---------------------

def init_conv2d_cg_params(key, in_ch, out_ch):
    num_lat = KS * KS // 2 + 1
    g = 16 if (in_ch // 16) else in_ch
    ks = jax.random.split(key, 11)

    def bn(kw, kb, n):
        return dict(weight=1.0 + 0.1 * jax.random.normal(kw, (n,), jnp.float32),
                    bias=0.1 * jax.random.normal(kb, (n,), jnp.float32),
                    running_mean=jnp.zeros((n,), jnp.float32),
                    running_var=jnp.ones((n,), jnp.float32))

    return dict(
        weight=0.1 * jax.random.normal(ks[0], (out_ch, in_ch, KS, KS), jnp.float32),
        ce_w=0.3 * jax.random.normal(ks[1], (num_lat, KS * KS), jnp.float32),
        gd_w=0.3 * jax.random.normal(ks[2], (KS * KS, num_lat), jnp.float32),
        gd2_w=0.3 * jax.random.normal(ks[3], (KS * KS, num_lat), jnp.float32),
        ci_w=0.3 * jax.random.normal(ks[4], (out_ch // (in_ch // g), g), jnp.float32),
        ce_bn=bn(ks[5], ks[6], in_ch),
        ci_bn2=bn(ks[7], ks[8], in_ch),
        ci_bn=bn(ks[9], ks[10], out_ch),
    )


if __name__ == "__main__":
    key = jax.random.PRNGKey(0)
    k_x, k_p1, k_p2 = jax.random.split(key, 3)

    n_feat, B, H, W = 8, 2, 16, 16
    x = jax.random.normal(k_x, (B, n_feat, H, W), dtype=jnp.float32)
    params = dict(conv1=init_conv2d_cg_params(k_p1, n_feat, n_feat),
                  conv2=init_conv2d_cg_params(k_p2, n_feat, n_feat))

    fwd = jax.jit(functools.partial(crab_layer_forward, res_scale=1.0))
    out = fwd(x, params)
    jax.block_until_ready(out)
    assert out.shape == x.shape and out.dtype == jnp.float32
    print("KERNEL_OK")
</pallas_src>

<mosaic_0001>
module attributes {stable_mosaic.version = 11 : i64} {
  func.func @_cg_conv_relu_kernel(%arg0: i32, %arg1: i32, %arg2: memref<1x9x8x8xbf16, #tpu.memory_space<vmem>>, %arg3: memref<1x342x8xf32, #tpu.memory_space<vmem>>, %arg4: memref<1x144x8xf32, #tpu.memory_space<vmem>>) attributes {dimension_semantics = [#tpu.dimension_semantics<parallel>, #tpu.dimension_semantics<parallel>], iteration_bounds = array<i64: 2, 2>, scalar_prefetch = 0 : i64, scratch_operands = 0 : i64, tpu.core_type = #tpu.core_type<tc>, window_params = [{transform_indices = @transform_0, window_bounds = array<i64: 1, 9, 8, 8>}, {transform_indices = @transform_1, window_bounds = array<i64: 1, 342, 8>}, {transform_indices = @transform_2, window_bounds = array<i64: 1, 144, 8>}]} {
    %c144_i32 = arith.constant 144 : i32
    %0 = arith.muli %arg1, %c144_i32 : i32
    %1 = tpu.assume_multiple %0, 8 : i32
    %c0 = arith.constant 0 : index
    %2 = arith.index_cast %1 : i32 to index
    %c0_0 = arith.constant 0 : index
    %3 = vector.load %arg3[%c0, %2, %c0_0] : memref<1x342x8xf32, #tpu.memory_space<vmem>>, vector<1x182x8xf32>
    %4 = vector.shape_cast %3 : vector<1x182x8xf32> to vector<182x8xf32>
    %cst = arith.constant 0.000000e+00 : f32
    %5 = vector.broadcast %cst : f32 to vector<144x8xf32>
    %6 = vector.extract_strided_slice %4 {offsets = [0, 0], sizes = [144, 8], strides = [1, 1]} : vector<182x8xf32> to vector<144x8xf32>
    %7 = arith.truncf %6 : vector<144x8xf32> to vector<144x8xbf16>
    %c0_1 = arith.constant 0 : index
    %c0_2 = arith.constant 0 : index
    %c0_3 = arith.constant 0 : index
    %c0_4 = arith.constant 0 : index
    %8 = vector.load %arg2[%c0_1, %c0_2, %c0_3, %c0_4] : memref<1x9x8x8xbf16, #tpu.memory_space<vmem>>, vector<1x1x8x8xbf16>
    %9 = vector.shape_cast %8 : vector<1x1x8x8xbf16> to vector<8x8xbf16>
    %cst_5 = arith.constant dense<0.000000e+00> : vector<144x8xf32>
    %10 = tpu.matmul %7, %9, %cst_5 {dimension_numbers = #tpu.dot_dimension_numbers<[1], [0], [0], [1], [0, 0, 1, 1], [], []>} : vector<144x8xbf16>, vector<8x8xbf16>, vector<144x8xf32> -> vector<144x8xf32>
    %11 = arith.addf %5, %10 : vector<144x8xf32>
    %12 = vector.extract_strided_slice %4 {offsets = [1, 0], sizes = [144, 8], strides = [1, 1]} : vector<182x8xf32> to vector<144x8xf32>
    %13 = arith.truncf %12 : vector<144x8xf32> to vector<144x8xbf16>
    %c0_6 = arith.constant 0 : index
    %c1 = arith.constant 1 : index
    %c0_7 = arith.constant 0 : index
    %c0_8 = arith.constant 0 : index
    %14 = vector.load %arg2[%c0_6, %c1, %c0_7, %c0_8] : memref<1x9x8x8xbf16, #tpu.memory_space<vmem>>, vector<1x1x8x8xbf16>
    %15 = vector.shape_cast %14 : vector<1x1x8x8xbf16> to vector<8x8xbf16>
    %cst_9 = arith.constant dense<0.000000e+00> : vector<144x8xf32>
    %16 = tpu.matmul %13, %15, %cst_9 {dimension_numbers = #tpu.dot_dimension_numbers<[1], [0], [0], [1], [0, 0, 1, 1], [], []>} : vector<144x8xbf16>, vector<8x8xbf16>, vector<144x8xf32> -> vector<144x8xf32>
    %17 = arith.addf %11, %16 : vector<144x8xf32>
    %18 = vector.extract_strided_slice %4 {offsets = [2, 0], sizes = [144, 8], strides = [1, 1]} : vector<182x8xf32> to vector<144x8xf32>
    %19 = arith.truncf %18 : vector<144x8xf32> to vector<144x8xbf16>
    %c0_10 = arith.constant 0 : index
    %c2 = arith.constant 2 : index
    %c0_11 = arith.constant 0 : index
    %c0_12 = arith.constant 0 : index
    %20 = vector.load %arg2[%c0_10, %c2, %c0_11, %c0_12] : memref<1x9x8x8xbf16, #tpu.memory_space<vmem>>, vector<1x1x8x8xbf16>
    %21 = vector.shape_cast %20 : vector<1x1x8x8xbf16> to vector<8x8xbf16>
    %cst_13 = arith.constant dense<0.000000e+00> : vector<144x8xf32>
    %22 = tpu.matmul %19, %21, %cst_13 {dimension_numbers = #tpu.dot_dimension_numbers<[1], [0], [0], [1], [0, 0, 1, 1], [], []>} : vector<144x8xbf16>, vector<8x8xbf16>, vector<144x8xf32> -> vector<144x8xf32>
    %23 = arith.addf %17, %22 : vector<144x8xf32>
    %24 = vector.extract_strided_slice %4 {offsets = [18, 0], sizes = [144, 8], strides = [1, 1]} : vector<182x8xf32> to vector<144x8xf32>
    %25 = arith.truncf %24 : vector<144x8xf32> to vector<144x8xbf16>
    %c0_14 = arith.constant 0 : index
    %c3 = arith.constant 3 : index
    %c0_15 = arith.constant 0 : index
    %c0_16 = arith.constant 0 : index
    %26 = vector.load %arg2[%c0_14, %c3, %c0_15, %c0_16] : memref<1x9x8x8xbf16, #tpu.memory_space<vmem>>, vector<1x1x8x8xbf16>
    %27 = vector.shape_cast %26 : vector<1x1x8x8xbf16> to vector<8x8xbf16>
    %cst_17 = arith.constant dense<0.000000e+00> : vector<144x8xf32>
    %28 = tpu.matmul %25, %27, %cst_17 {dimension_numbers = #tpu.dot_dimension_numbers<[1], [0], [0], [1], [0, 0, 1, 1], [], []>} : vector<144x8xbf16>, vector<8x8xbf16>, vector<144x8xf32> -> vector<144x8xf32>
    %29 = arith.addf %23, %28 : vector<144x8xf32>
    %30 = vector.extract_strided_slice %4 {offsets = [19, 0], sizes = [144, 8], strides = [1, 1]} : vector<182x8xf32> to vector<144x8xf32>
    %31 = arith.truncf %30 : vector<144x8xf32> to vector<144x8xbf16>
    %c0_18 = arith.constant 0 : index
    %c4 = arith.constant 4 : index
    %c0_19 = arith.constant 0 : index
    %c0_20 = arith.constant 0 : index
    %32 = vector.load %arg2[%c0_18, %c4, %c0_19, %c0_20] : memref<1x9x8x8xbf16, #tpu.memory_space<vmem>>, vector<1x1x8x8xbf16>
    %33 = vector.shape_cast %32 : vector<1x1x8x8xbf16> to vector<8x8xbf16>
    %cst_21 = arith.constant dense<0.000000e+00> : vector<144x8xf32>
    %34 = tpu.matmul %31, %33, %cst_21 {dimension_numbers = #tpu.dot_dimension_numbers<[1], [0], [0], [1], [0, 0, 1, 1], [], []>} : vector<144x8xbf16>, vector<8x8xbf16>, vector<144x8xf32> -> vector<144x8xf32>
    %35 = arith.addf %29, %34 : vector<144x8xf32>
    %36 = vector.extract_strided_slice %4 {offsets = [20, 0], sizes = [144, 8], strides = [1, 1]} : vector<182x8xf32> to vector<144x8xf32>
    %37 = arith.truncf %36 : vector<144x8xf32> to vector<144x8xbf16>
    %c0_22 = arith.constant 0 : index
    %c5 = arith.constant 5 : index
    %c0_23 = arith.constant 0 : index
    %c0_24 = arith.constant 0 : index
    %38 = vector.load %arg2[%c0_22, %c5, %c0_23, %c0_24] : memref<1x9x8x8xbf16, #tpu.memory_space<vmem>>, vector<1x1x8x8xbf16>
    %39 = vector.shape_cast %38 : vector<1x1x8x8xbf16> to vector<8x8xbf16>
    %cst_25 = arith.constant dense<0.000000e+00> : vector<144x8xf32>
    %40 = tpu.matmul %37, %39, %cst_25 {dimension_numbers = #tpu.dot_dimension_numbers<[1], [0], [0], [1], [0, 0, 1, 1], [], []>} : vector<144x8xbf16>, vector<8x8xbf16>, vector<144x8xf32> -> vector<144x8xf32>
    %41 = arith.addf %35, %40 : vector<144x8xf32>
    %42 = vector.extract_strided_slice %4 {offsets = [36, 0], sizes = [144, 8], strides = [1, 1]} : vector<182x8xf32> to vector<144x8xf32>
    %43 = arith.truncf %42 : vector<144x8xf32> to vector<144x8xbf16>
    %c0_26 = arith.constant 0 : index
    %c6 = arith.constant 6 : index
    %c0_27 = arith.constant 0 : index
    %c0_28 = arith.constant 0 : index
    %44 = vector.load %arg2[%c0_26, %c6, %c0_27, %c0_28] : memref<1x9x8x8xbf16, #tpu.memory_space<vmem>>, vector<1x1x8x8xbf16>
    %45 = vector.shape_cast %44 : vector<1x1x8x8xbf16> to vector<8x8xbf16>
    %cst_29 = arith.constant dense<0.000000e+00> : vector<144x8xf32>
    %46 = tpu.matmul %43, %45, %cst_29 {dimension_numbers = #tpu.dot_dimension_numbers<[1], [0], [0], [1], [0, 0, 1, 1], [], []>} : vector<144x8xbf16>, vector<8x8xbf16>, vector<144x8xf32> -> vector<144x8xf32>
    %47 = arith.addf %41, %46 : vector<144x8xf32>
    %48 = vector.extract_strided_slice %4 {offsets = [37, 0], sizes = [144, 8], strides = [1, 1]} : vector<182x8xf32> to vector<144x8xf32>
    %49 = arith.truncf %48 : vector<144x8xf32> to vector<144x8xbf16>
    %c0_30 = arith.constant 0 : index
    %c7 = arith.constant 7 : index
    %c0_31 = arith.constant 0 : index
    %c0_32 = arith.constant 0 : index
    %50 = vector.load %arg2[%c0_30, %c7, %c0_31, %c0_32] : memref<1x9x8x8xbf16, #tpu.memory_space<vmem>>, vector<1x1x8x8xbf16>
    %51 = vector.shape_cast %50 : vector<1x1x8x8xbf16> to vector<8x8xbf16>
    %cst_33 = arith.constant dense<0.000000e+00> : vector<144x8xf32>
    %52 = tpu.matmul %49, %51, %cst_33 {dimension_numbers = #tpu.dot_dimension_numbers<[1], [0], [0], [1], [0, 0, 1, 1], [], []>} : vector<144x8xbf16>, vector<8x8xbf16>, vector<144x8xf32> -> vector<144x8xf32>
    %53 = arith.addf %47, %52 : vector<144x8xf32>
    %54 = vector.extract_strided_slice %4 {offsets = [38, 0], sizes = [144, 8], strides = [1, 1]} : vector<182x8xf32> to vector<144x8xf32>
    %55 = arith.truncf %54 : vector<144x8xf32> to vector<144x8xbf16>
    %c0_34 = arith.constant 0 : index
    %c8 = arith.constant 8 : index
    %c0_35 = arith.constant 0 : index
    %c0_36 = arith.constant 0 : index
    %56 = vector.load %arg2[%c0_34, %c8, %c0_35, %c0_36] : memref<1x9x8x8xbf16, #tpu.memory_space<vmem>>, vector<1x1x8x8xbf16>
    %57 = vector.shape_cast %56 : vector<1x1x8x8xbf16> to vector<8x8xbf16>
    %cst_37 = arith.constant dense<0.000000e+00> : vector<144x8xf32>
    %58 = tpu.matmul %55, %57, %cst_37 {dimension_numbers = #tpu.dot_dimension_numbers<[1], [0], [0], [1], [0, 0, 1, 1], [], []>} : vector<144x8xbf16>, vector<8x8xbf16>, vector<144x8xf32> -> vector<144x8xf32>
    %59 = arith.addf %53, %58 : vector<144x8xf32>
    %cst_38 = arith.constant 0.000000e+00 : f32
    %60 = vector.broadcast %cst_38 : f32 to vector<144x8xf32>
    %61 = arith.maximumf %59, %60 : vector<144x8xf32>
    %c0_39 = arith.constant 0 : index
    %c0_40 = arith.constant 0 : index
    %c0_41 = arith.constant 0 : index
    %62 = vector.load %arg4[%c0_39, %c0_40, %c0_41] : memref<1x144x8xf32, #tpu.memory_space<vmem>>, vector<1x144x8xf32>
    %63 = vector.shape_cast %62 : vector<1x144x8xf32> to vector<144x8xf32>
    %64 = vector.shape_cast %61 : vector<144x8xf32> to vector<1x144x8xf32>
    tpu.vector_store %arg4[%c0_39, %c0_40, %c0_41], %64 {strides = array<i32>} : memref<1x144x8xf32, #tpu.memory_space<vmem>>, vector<1x144x8xf32>,
    return
  }
  func.func @transform_0(%arg0: i32, %arg1: i32) -> (i32, i32, i32, i32) {
    %c0_i32 = arith.constant 0 : i32
    %c0_i32_0 = arith.constant 0 : i32
    %c0_i32_1 = arith.constant 0 : i32
    %c0_i32_2 = arith.constant 0 : i32
    return %arg0, %c0_i32, %c0_i32_0, %c0_i32_1 : i32, i32, i32, i32
  }
  func.func @transform_1(%arg0: i32, %arg1: i32) -> (i32, i32, i32) {
    %c0_i32 = arith.constant 0 : i32
    %c0_i32_0 = arith.constant 0 : i32
    %c0_i32_1 = arith.constant 0 : i32
    return %arg0, %c0_i32, %c0_i32_0 : i32, i32, i32
  }
  func.func @transform_2(%arg0: i32, %arg1: i32) -> (i32, i32, i32) {
    %c0_i32 = arith.constant 0 : i32
    %c0_i32_0 = arith.constant 0 : i32
    return %arg0, %arg1, %c0_i32 : i32, i32, i32
  }
}

module attributes {stable_mosaic.version = 11 : i64} {
  func.func @_cg_conv_residual_kernel(%arg0: i32, %arg1: i32, %arg2: memref<1xf32, #tpu.memory_space<smem>>, %arg3: memref<1x9x8x8xbf16, #tpu.memory_space<vmem>>, %arg4: memref<1x342x8xf32, #tpu.memory_space<vmem>>, %arg5: memref<1x144x8xf32, #tpu.memory_space<vmem>>, %arg6: memref<1x144x8xf32, #tpu.memory_space<vmem>>) attributes {dimension_semantics = [#tpu.dimension_semantics<parallel>, #tpu.dimension_semantics<parallel>], iteration_bounds = array<i64: 2, 2>, scalar_prefetch = 0 : i64, scratch_operands = 0 : i64, tpu.core_type = #tpu.core_type<tc>, window_params = [{transform_indices = @transform_0, window_bounds = array<i64: 1>}, {transform_indices = @transform_1, window_bounds = array<i64: 1, 9, 8, 8>}, {transform_indices = @transform_2, window_bounds = array<i64: 1, 342, 8>}, {transform_indices = @transform_3, window_bounds = array<i64: 1, 144, 8>}, {transform_indices = @transform_4, window_bounds = array<i64: 1, 144, 8>}]} {
    %c144_i32 = arith.constant 144 : i32
    %0 = arith.muli %arg1, %c144_i32 : i32
    %1 = tpu.assume_multiple %0, 8 : i32
    %c0 = arith.constant 0 : index
    %2 = arith.index_cast %1 : i32 to index
    %c0_0 = arith.constant 0 : index
    %3 = vector.load %arg4[%c0, %2, %c0_0] : memref<1x342x8xf32, #tpu.memory_space<vmem>>, vector<1x182x8xf32>
    %4 = vector.shape_cast %3 : vector<1x182x8xf32> to vector<182x8xf32>
    %cst = arith.constant 0.000000e+00 : f32
    %5 = vector.broadcast %cst : f32 to vector<144x8xf32>
    %6 = vector.extract_strided_slice %4 {offsets = [0, 0], sizes = [144, 8], strides = [1, 1]} : vector<182x8xf32> to vector<144x8xf32>
    %7 = arith.truncf %6 : vector<144x8xf32> to vector<144x8xbf16>
    %c0_1 = arith.constant 0 : index
    %c0_2 = arith.constant 0 : index
    %c0_3 = arith.constant 0 : index
    %c0_4 = arith.constant 0 : index
    %8 = vector.load %arg3[%c0_1, %c0_2, %c0_3, %c0_4] : memref<1x9x8x8xbf16, #tpu.memory_space<vmem>>, vector<1x1x8x8xbf16>
    %9 = vector.shape_cast %8 : vector<1x1x8x8xbf16> to vector<8x8xbf16>
    %cst_5 = arith.constant dense<0.000000e+00> : vector<144x8xf32>
    %10 = tpu.matmul %7, %9, %cst_5 {dimension_numbers = #tpu.dot_dimension_numbers<[1], [0], [0], [1], [0, 0, 1, 1], [], []>} : vector<144x8xbf16>, vector<8x8xbf16>, vector<144x8xf32> -> vector<144x8xf32>
    %11 = arith.addf %5, %10 : vector<144x8xf32>
    %12 = vector.extract_strided_slice %4 {offsets = [1, 0], sizes = [144, 8], strides = [1, 1]} : vector<182x8xf32> to vector<144x8xf32>
    %13 = arith.truncf %12 : vector<144x8xf32> to vector<144x8xbf16>
    %c0_6 = arith.constant 0 : index
    %c1 = arith.constant 1 : index
    %c0_7 = arith.constant 0 : index
    %c0_8 = arith.constant 0 : index
    %14 = vector.load %arg3[%c0_6, %c1, %c0_7, %c0_8] : memref<1x9x8x8xbf16, #tpu.memory_space<vmem>>, vector<1x1x8x8xbf16>
    %15 = vector.shape_cast %14 : vector<1x1x8x8xbf16> to vector<8x8xbf16>
    %cst_9 = arith.constant dense<0.000000e+00> : vector<144x8xf32>
    %16 = tpu.matmul %13, %15, %cst_9 {dimension_numbers = #tpu.dot_dimension_numbers<[1], [0], [0], [1], [0, 0, 1, 1], [], []>} : vector<144x8xbf16>, vector<8x8xbf16>, vector<144x8xf32> -> vector<144x8xf32>
    %17 = arith.addf %11, %16 : vector<144x8xf32>
    %18 = vector.extract_strided_slice %4 {offsets = [2, 0], sizes = [144, 8], strides = [1, 1]} : vector<182x8xf32> to vector<144x8xf32>
    %19 = arith.truncf %18 : vector<144x8xf32> to vector<144x8xbf16>
    %c0_10 = arith.constant 0 : index
    %c2 = arith.constant 2 : index
    %c0_11 = arith.constant 0 : index
    %c0_12 = arith.constant 0 : index
    %20 = vector.load %arg3[%c0_10, %c2, %c0_11, %c0_12] : memref<1x9x8x8xbf16, #tpu.memory_space<vmem>>, vector<1x1x8x8xbf16>
    %21 = vector.shape_cast %20 : vector<1x1x8x8xbf16> to vector<8x8xbf16>
    %cst_13 = arith.constant dense<0.000000e+00> : vector<144x8xf32>
    %22 = tpu.matmul %19, %21, %cst_13 {dimension_numbers = #tpu.dot_dimension_numbers<[1], [0], [0], [1], [0, 0, 1, 1], [], []>} : vector<144x8xbf16>, vector<8x8xbf16>, vector<144x8xf32> -> vector<144x8xf32>
    %23 = arith.addf %17, %22 : vector<144x8xf32>
    %24 = vector.extract_strided_slice %4 {offsets = [18, 0], sizes = [144, 8], strides = [1, 1]} : vector<182x8xf32> to vector<144x8xf32>
    %25 = arith.truncf %24 : vector<144x8xf32> to vector<144x8xbf16>
    %c0_14 = arith.constant 0 : index
    %c3 = arith.constant 3 : index
    %c0_15 = arith.constant 0 : index
    %c0_16 = arith.constant 0 : index
    %26 = vector.load %arg3[%c0_14, %c3, %c0_15, %c0_16] : memref<1x9x8x8xbf16, #tpu.memory_space<vmem>>, vector<1x1x8x8xbf16>
    %27 = vector.shape_cast %26 : vector<1x1x8x8xbf16> to vector<8x8xbf16>
    %cst_17 = arith.constant dense<0.000000e+00> : vector<144x8xf32>
    %28 = tpu.matmul %25, %27, %cst_17 {dimension_numbers = #tpu.dot_dimension_numbers<[1], [0], [0], [1], [0, 0, 1, 1], [], []>} : vector<144x8xbf16>, vector<8x8xbf16>, vector<144x8xf32> -> vector<144x8xf32>
    %29 = arith.addf %23, %28 : vector<144x8xf32>
    %30 = vector.extract_strided_slice %4 {offsets = [19, 0], sizes = [144, 8], strides = [1, 1]} : vector<182x8xf32> to vector<144x8xf32>
    %31 = arith.truncf %30 : vector<144x8xf32> to vector<144x8xbf16>
    %c0_18 = arith.constant 0 : index
    %c4 = arith.constant 4 : index
    %c0_19 = arith.constant 0 : index
    %c0_20 = arith.constant 0 : index
    %32 = vector.load %arg3[%c0_18, %c4, %c0_19, %c0_20] : memref<1x9x8x8xbf16, #tpu.memory_space<vmem>>, vector<1x1x8x8xbf16>
    %33 = vector.shape_cast %32 : vector<1x1x8x8xbf16> to vector<8x8xbf16>
    %cst_21 = arith.constant dense<0.000000e+00> : vector<144x8xf32>
    %34 = tpu.matmul %31, %33, %cst_21 {dimension_numbers = #tpu.dot_dimension_numbers<[1], [0], [0], [1], [0, 0, 1, 1], [], []>} : vector<144x8xbf16>, vector<8x8xbf16>, vector<144x8xf32> -> vector<144x8xf32>
    %35 = arith.addf %29, %34 : vector<144x8xf32>
    %36 = vector.extract_strided_slice %4 {offsets = [20, 0], sizes = [144, 8], strides = [1, 1]} : vector<182x8xf32> to vector<144x8xf32>
    %37 = arith.truncf %36 : vector<144x8xf32> to vector<144x8xbf16>
    %c0_22 = arith.constant 0 : index
    %c5 = arith.constant 5 : index
    %c0_23 = arith.constant 0 : index
    %c0_24 = arith.constant 0 : index
    %38 = vector.load %arg3[%c0_22, %c5, %c0_23, %c0_24] : memref<1x9x8x8xbf16, #tpu.memory_space<vmem>>, vector<1x1x8x8xbf16>
    %39 = vector.shape_cast %38 : vector<1x1x8x8xbf16> to vector<8x8xbf16>
    %cst_25 = arith.constant dense<0.000000e+00> : vector<144x8xf32>
    %40 = tpu.matmul %37, %39, %cst_25 {dimension_numbers = #tpu.dot_dimension_numbers<[1], [0], [0], [1], [0, 0, 1, 1], [], []>} : vector<144x8xbf16>, vector<8x8xbf16>, vector<144x8xf32> -> vector<144x8xf32>
    %41 = arith.addf %35, %40 : vector<144x8xf32>
    %42 = vector.extract_strided_slice %4 {offsets = [36, 0], sizes = [144, 8], strides = [1, 1]} : vector<182x8xf32> to vector<144x8xf32>
    %43 = arith.truncf %42 : vector<144x8xf32> to vector<144x8xbf16>
    %c0_26 = arith.constant 0 : index
    %c6 = arith.constant 6 : index
    %c0_27 = arith.constant 0 : index
    %c0_28 = arith.constant 0 : index
    %44 = vector.load %arg3[%c0_26, %c6, %c0_27, %c0_28] : memref<1x9x8x8xbf16, #tpu.memory_space<vmem>>, vector<1x1x8x8xbf16>
    %45 = vector.shape_cast %44 : vector<1x1x8x8xbf16> to vector<8x8xbf16>
    %cst_29 = arith.constant dense<0.000000e+00> : vector<144x8xf32>
    %46 = tpu.matmul %43, %45, %cst_29 {dimension_numbers = #tpu.dot_dimension_numbers<[1], [0], [0], [1], [0, 0, 1, 1], [], []>} : vector<144x8xbf16>, vector<8x8xbf16>, vector<144x8xf32> -> vector<144x8xf32>
    %47 = arith.addf %41, %46 : vector<144x8xf32>
    %48 = vector.extract_strided_slice %4 {offsets = [37, 0], sizes = [144, 8], strides = [1, 1]} : vector<182x8xf32> to vector<144x8xf32>
    %49 = arith.truncf %48 : vector<144x8xf32> to vector<144x8xbf16>
    %c0_30 = arith.constant 0 : index
    %c7 = arith.constant 7 : index
    %c0_31 = arith.constant 0 : index
    %c0_32 = arith.constant 0 : index
    %50 = vector.load %arg3[%c0_30, %c7, %c0_31, %c0_32] : memref<1x9x8x8xbf16, #tpu.memory_space<vmem>>, vector<1x1x8x8xbf16>
    %51 = vector.shape_cast %50 : vector<1x1x8x8xbf16> to vector<8x8xbf16>
    %cst_33 = arith.constant dense<0.000000e+00> : vector<144x8xf32>
    %52 = tpu.matmul %49, %51, %cst_33 {dimension_numbers = #tpu.dot_dimension_numbers<[1], [0], [0], [1], [0, 0, 1, 1], [], []>} : vector<144x8xbf16>, vector<8x8xbf16>, vector<144x8xf32> -> vector<144x8xf32>
    %53 = arith.addf %47, %52 : vector<144x8xf32>
    %54 = vector.extract_strided_slice %4 {offsets = [38, 0], sizes = [144, 8], strides = [1, 1]} : vector<182x8xf32> to vector<144x8xf32>
    %55 = arith.truncf %54 : vector<144x8xf32> to vector<144x8xbf16>
    %c0_34 = arith.constant 0 : index
    %c8 = arith.constant 8 : index
    %c0_35 = arith.constant 0 : index
    %c0_36 = arith.constant 0 : index
    %56 = vector.load %arg3[%c0_34, %c8, %c0_35, %c0_36] : memref<1x9x8x8xbf16, #tpu.memory_space<vmem>>, vector<1x1x8x8xbf16>
    %57 = vector.shape_cast %56 : vector<1x1x8x8xbf16> to vector<8x8xbf16>
    %cst_37 = arith.constant dense<0.000000e+00> : vector<144x8xf32>
    %58 = tpu.matmul %55, %57, %cst_37 {dimension_numbers = #tpu.dot_dimension_numbers<[1], [0], [0], [1], [0, 0, 1, 1], [], []>} : vector<144x8xbf16>, vector<8x8xbf16>, vector<144x8xf32> -> vector<144x8xf32>
    %59 = arith.addf %53, %58 : vector<144x8xf32>
    %c0_38 = arith.constant 0 : index
    %60 = memref.load %arg2[%c0_38] : memref<1xf32, #tpu.memory_space<smem>>
    %61 = vector.broadcast %60 : f32 to vector<144x8xf32>
    %62 = arith.mulf %59, %61 : vector<144x8xf32>
    %c0_39 = arith.constant 0 : index
    %c0_40 = arith.constant 0 : index
    %c0_41 = arith.constant 0 : index
    %63 = vector.load %arg5[%c0_39, %c0_40, %c0_41] : memref<1x144x8xf32, #tpu.memory_space<vmem>>, vector<1x144x8xf32>
    %64 = vector.shape_cast %63 : vector<1x144x8xf32> to vector<144x8xf32>
    %65 = arith.addf %62, %64 : vector<144x8xf32>
    %c0_42 = arith.constant 0 : index
    %c0_43 = arith.constant 0 : index
    %c0_44 = arith.constant 0 : index
    %66 = vector.load %arg6[%c0_42, %c0_43, %c0_44] : memref<1x144x8xf32, #tpu.memory_space<vmem>>, vector<1x144x8xf32>
    %67 = vector.shape_cast %66 : vector<1x144x8xf32> to vector<144x8xf32>
    %68 = vector.shape_cast %65 : vector<144x8xf32> to vector<1x144x8xf32>
    tpu.vector_store %arg6[%c0_42, %c0_43, %c0_44], %68 {strides = array<i32>} : memref<1x144x8xf32, #tpu.memory_space<vmem>>, vector<1x144x8xf32>,
    return
  }
  func.func @transform_0(%arg0: i32, %arg1: i32) -> i32 {
    %c0_i32 = arith.constant 0 : i32
    %c0_i32_0 = arith.constant 0 : i32
    return %c0_i32 : i32
  }
  func.func @transform_1(%arg0: i32, %arg1: i32) -> (i32, i32, i32, i32) {
    %c0_i32 = arith.constant 0 : i32
    %c0_i32_0 = arith.constant 0 : i32
    %c0_i32_1 = arith.constant 0 : i32
    %c0_i32_2 = arith.constant 0 : i32
    return %arg0, %c0_i32, %c0_i32_0, %c0_i32_1 : i32, i32, i32, i32
  }
  func.func @transform_2(%arg0: i32, %arg1: i32) -> (i32, i32, i32) {
    %c0_i32 = arith.constant 0 : i32
    %c0_i32_0 = arith.constant 0 : i32
    %c0_i32_1 = arith.constant 0 : i32
    return %arg0, %c0_i32, %c0_i32_0 : i32, i32, i32
  }
  func.func @transform_3(%arg0: i32, %arg1: i32) -> (i32, i32, i32) {
    %c0_i32 = arith.constant 0 : i32
    %c0_i32_0 = arith.constant 0 : i32
    return %arg0, %arg1, %c0_i32 : i32, i32, i32
  }
  func.func @transform_4(%arg0: i32, %arg1: i32) -> (i32, i32, i32) {
    %c0_i32 = arith.constant 0 : i32
    %c0_i32_0 = arith.constant 0 : i32
    return %arg0, %arg1, %c0_i32 : i32, i32, i32
  }
}

</mosaic_0001>

<llo_original>
// kernel: crab_layer_forward.3
$region0: #{crab_layer_forward.3}
  #allocation0 [shape = 'u32[]', space=smem, size = 0x4, offset = 0x4, fixed_abs, tag = 'smem constant byte address 0x4 - core index']
  #allocation1 [shape = 'u32[144,128]{1,0:T(1,128)}', space=vmem, size = 0x12000, scoped, tag = 'internal scratch']
  #allocation2 [shape = 'f32[1]{0:T(128)S(6)}', space=smem, size = 0x200, scoped, tag = 'scoped memory for crab_layer_forward.3']
  %s0 = inlined_call_operand.<no memory space> [shape: f32[1], index: 0, kind: input, shape index: {}]
  %s1 = inlined_call_operand.vmem [shape: bf16[2,9,8,8], index: 1, kind: input, shape index: {}]
  %s2 = inlined_call_operand.vmem [shape: f32[2,342,8], index: 2, kind: input, shape index: {}]
  %s3 = inlined_call_operand.vmem [shape: f32[2,288,8], index: 3, kind: input, shape index: {}, may-alias: {3,4}]
  %s4 = inlined_call_operand.vmem [shape: f32[2,288,8], index: 4, kind: output, shape index: {}, may-alias: {3,4}]
  %s5 = sld [smem:[#allocation0]]
  $region49: #{crab_layer_forward.3} parent=0
    _
  %s7 = ssub.s32 1, %s5
  %s8 = scalar_select 0, %s7, %s5
  %9 = sst [smem:[#allocation2]] %s0
  loop: start=0, step=1, limit=6
  $region2: #{crab_layer_forward.3} parent=0 // loop_pre_header
    _
  $region3: #{crab_layer_forward.3} parent=0 // loop_header
    %s11 = sphi 0, %s15
    %p12 = scmp.ge.s32.totalorder %s11, 6
    %s18 = sphi 0, %s30
    %s19 = sphi 0, %s26
    %s20 = sphi 0, %s18
    %s21 = sphi 0, %s19
    %s22 = sphi 0, %s20
    %s23 = sphi 0, %s21
    %s31 = sphi 0, %s31
    %s33 = sphi 0, %s31
    %s34 = sphi 0, %s33
    %s48 = sphi 0, %s34
    %s54 = sphi 0, %s56
    %s57 = sphi 0, %s54
    %s58 = sphi 0, %s57
    %s74 = sphi 0, %s58
    %s80 = sphi 0, %s82
    %s83 = sphi 0, %s80
    %s84 = sphi 0, %s83
    %s100 = sphi 0, %s84
    %s108 = sphi 0, %s110
    %s111 = sphi 0, %s108
    %s112 = sphi 0, %s111
    %s128 = sphi 0, %s112
    %s136 = sphi 0, %s138
    %s139 = sphi 0, %s136
    %s140 = sphi 0, %s139
    %s156 = sphi 0, %s140
  $region4: #{crab_layer_forward.3} parent=0 // loop_header_branch
    %14 = sbr.rel (%p12) target = $region8
  $region5: #{crab_layer_forward.3} parent=0 // loop_body
    %s16 = ssub.s32 %s11, 1
    %s17 = ssub.s32 %s11, 2
    %s24 = sadd.s32 1, %s19
    %p25 = scmp.ge.s32.totalorder %s24, 2
    %s26 = scalar_select %p25, 0, %s24
    %s27 = sadd.s32 1, %s18
    %s28 = scalar_select %p25, %s27, %s18
    %p29 = scmp.ge.s32.totalorder %s28, 2
    %s30 = scalar_select %p29, 0, %s28
    %s32 = sadd.s32 %s31, 1
    %p35 = scmp.eq.s32.totalorder %s11, 3
    %p36 = scmp.ne.s32.totalorder %s31, %s33
    %p37 = scmp.eq.s32.totalorder %s11, 0
    %p38 = por %p36, %p37
    %p39 = scmp.ne.s32.totalorder %s31, %s33
    %p40 = scmp.eq.s32.totalorder %s16, 3
    %p41 = por %p39, %p40
    %p42 = scmp.ne.s32.totalorder %s33, %s34
    %p43 = scmp.eq.s32.totalorder %s16, 0
    %p44 = por %p42, %p43
    %p45 = scmp.ne.s32.totalorder %s33, %s34
    %p46 = scmp.eq.s32.totalorder %s17, 3
    %p47 = por %p45, %p46
    %p49 = scmp.ne.s32.totalorder %s34, %s48
    %p50 = scmp.eq.s32.totalorder %s17, 0
    %p51 = por %p49, %p50
    %s52 = ssub.s32 %s18, %s30
    %p53 = scmp.eq.s32.totalorder %s52, 0
    %s55 = sadd.s32 %s54, 1
    %s56 = scalar_select %p53, %s54, %s55
    %p59 = pneg %p53
    %p60 = scmp.eq.s32.totalorder %s11, 3
    %p61 = por %p59, %p60
    %p62 = scmp.ne.s32.totalorder %s54, %s57
    %p63 = scmp.eq.s32.totalorder %s11, 0
    %p64 = por %p62, %p63
    %p65 = scmp.ne.s32.totalorder %s54, %s57
    %p66 = scmp.eq.s32.totalorder %s16, 3
    %p67 = por %p65, %p66
    %p68 = scmp.ne.s32.totalorder %s57, %s58
    %p69 = scmp.eq.s32.totalorder %s16, 0
    %p70 = por %p68, %p69
    %p71 = scmp.ne.s32.totalorder %s57, %s58
    %p72 = scmp.eq.s32.totalorder %s17, 3
    %p73 = por %p71, %p72
    %p75 = scmp.ne.s32.totalorder %s58, %s74
    %p76 = scmp.eq.s32.totalorder %s17, 0
    %p77 = por %p75, %p76
    %s78 = ssub.s32 %s18, %s30
    %p79 = scmp.eq.s32.totalorder %s78, 0
    %s81 = sadd.s32 %s80, 1
    %s82 = scalar_select %p79, %s80, %s81
    %p85 = pneg %p79
    %p86 = scmp.eq.s32.totalorder %s11, 3
    %p87 = por %p85, %p86
    %p88 = scmp.ne.s32.totalorder %s80, %s83
    %p89 = scmp.eq.s32.totalorder %s11, 0
    %p90 = por %p88, %p89
    %p91 = scmp.ne.s32.totalorder %s80, %s83
    %p92 = scmp.eq.s32.totalorder %s16, 3
    %p93 = por %p91, %p92
    %p94 = scmp.ne.s32.totalorder %s83, %s84
    %p95 = scmp.eq.s32.totalorder %s16, 0
    %p96 = por %p94, %p95
    %p97 = scmp.ne.s32.totalorder %s83, %s84
    %p98 = scmp.eq.s32.totalorder %s17, 3
    %p99 = por %p97, %p98
    %p101 = scmp.ne.s32.totalorder %s84, %s100
    %p102 = scmp.eq.s32.totalorder %s17, 0
    %p103 = por %p101, %p102
    %s104 = ssub.s32 %s18, %s30
    %s105 = ssub.s32 %s19, %s26
    %s106 = sor.u32 %s104, %s105
    %p107 = scmp.eq.s32.totalorder %s106, 0
    %s109 = sadd.s32 %s108, 1
    %s110 = scalar_select %p107, %s108, %s109
    %p113 = pneg %p107
    %p114 = scmp.eq.s32.totalorder %s11, 3
    %p115 = por %p113, %p114
    %p116 = scmp.ne.s32.totalorder %s108, %s111
    %p117 = scmp.eq.s32.totalorder %s11, 0
    %p118 = por %p116, %p117
    %p119 = scmp.ne.s32.totalorder %s108, %s111
    %p120 = scmp.eq.s32.totalorder %s16, 3
    %p121 = por %p119, %p120
    %p122 = scmp.ne.s32.totalorder %s111, %s112
    %p123 = scmp.eq.s32.totalorder %s16, 0
    %p124 = por %p122, %p123
    %p125 = scmp.ne.s32.totalorder %s111, %s112
    %p126 = scmp.eq.s32.totalorder %s17, 3
    %p127 = por %p125, %p126
    %p129 = scmp.ne.s32.totalorder %s112, %s128
    %p130 = scmp.eq.s32.totalorder %s17, 0
    %p131 = por %p129, %p130
    %s132 = ssub.s32 %s18, %s30
    %s133 = ssub.s32 %s19, %s26
    %s134 = sor.u32 %s132, %s133
    %p135 = scmp.eq.s32.totalorder %s134, 0
    %s137 = sadd.s32 %s136, 1
    %s138 = scalar_select %p135, %s136, %s137
    %p141 = pneg %p135
    %p142 = scmp.eq.s32.totalorder %s11, 3
    %p143 = por %p141, %p142
    %p144 = scmp.ne.s32.totalorder %s136, %s139
    %p145 = scmp.eq.s32.totalorder %s11, 0
    %p146 = por %p144, %p145
    %p147 = scmp.ne.s32.totalorder %s136, %s139
    %p148 = scmp.eq.s32.totalorder %s16, 3
    %p149 = por %p147, %p148
    %p150 = scmp.ne.s32.totalorder %s139, %s140
    %p151 = scmp.eq.s32.totalorder %s16, 0
    %p152 = por %p150, %p151
    %p153 = scmp.ne.s32.totalorder %s139, %s140
    %p154 = scmp.eq.s32.totalorder %s17, 3
    %p155 = por %p153, %p154
    %p157 = scmp.ne.s32.totalorder %s140, %s156
    %p158 = scmp.eq.s32.totalorder %s17, 0
    %p159 = por %p157, %p158
    %p160 = scmp.le.s32.totalorder 1, %s11
    %p161 = scmp.lt.s32.totalorder %s11, 5
    %p162 = pnand %p160, %p161
    %p163 = pneg %p162
    // Predicated region
    $region9: #{crab_layer_forward.3} parent=5 // pred_check
      _
    $region10: #{crab_layer_forward.3} parent=5 // pred_check_branch
      %165 = sbr.rel (%p162) target = $region12
    $region11: #{crab_layer_forward.3} parent=5 // pred_region
      %s166 = ssub.s32 %s11, 1
      // Predicated region
      $region13: #{crab_layer_forward.3} parent=11 // pred_check
        %p167 = pneg %p44
      $region14: #{crab_layer_forward.3} parent=11 // pred_check_branch
        %169 = sbr.rel (%p167) target = $region16
      $region15: #{crab_layer_forward.3} parent=11 // pred_region
        _
      $region16: #{crab_layer_forward.3} parent=11 // pred_fallthru
        _
    $region12: #{crab_layer_forward.3} parent=5 // pred_fallthru
      _
    %p170 = scmp.lt.s32.totalorder %s11, 4
    // Predicated region
    $region17: #{crab_layer_forward.3} parent=5 // pred_check
      %p171 = pneg %p170
    $region18: #{crab_layer_forward.3} parent=5 // pred_check_branch
      %173 = sbr.rel (%p171) target = $region20
    $region19: #{crab_layer_forward.3} parent=5 // pred_region
      // Predicated region
      $region21: #{crab_layer_forward.3} parent=19 // pred_check
        %p174 = pneg %p64
      $region22: #{crab_layer_forward.3} parent=19 // pred_check_branch
        %176 = sbr.rel (%p174) target = $region24
      $region23: #{crab_layer_forward.3} parent=19 // pred_region
        %p177 = scmp.lt.s32.totalorder %s18, 1
        %s178 = scalar_select %p177, %s18, 1
        %s179 = smul.addr %s178, 9
        %s180 = smul.addr %s179, 4
        %s181 = scalar_lea.vmem %s1, %s180
      $region24: #{crab_layer_forward.3} parent=19 // pred_fallthru
        _
      // Predicated region
      $region25: #{crab_layer_forward.3} parent=19 // pred_check
        %p182 = pneg %p90
      $region26: #{crab_layer_forward.3} parent=19 // pred_check_branch
        %184 = sbr.rel (%p182) target = $region28
      $region27: #{crab_layer_forward.3} parent=19 // pred_region
        %p185 = scmp.lt.s32.totalorder %s18, 1
        %s186 = scalar_select %p185, %s18, 1
        %s187 = smul.addr %s186, 43
        %s188 = smul.addr %s187, 8
        %s189 = scalar_lea.vmem %s2, %s188
      $region28: #{crab_layer_forward.3} parent=19 // pred_fallthru
        _
      // Predicated region
      $region29: #{crab_layer_forward.3} parent=19 // pred_check
        %p190 = pneg %p118
      $region30: #{crab_layer_forward.3} parent=19 // pred_check_branch
        %192 = sbr.rel (%p190) target = $region32
      $region31: #{crab_layer_forward.3} parent=19 // pred_region
        %s193 = smul.u32 18, %s19
        %p194 = scmp.lt.s32.totalorder %s18, 1
        %s195 = scalar_select %p194, %s18, 1
        %p196 = scmp.lt.s32.totalorder %s193, 35
        %s197 = scalar_select %p196, %s193, 35
        %s198 = smul.addr %s195, 36
        %s199 = sadd.s32 %s197, %s198
        %s200 = smul.addr %s199, 8
        %s201 = scalar_lea.vmem %s3, %s200
        %s202 = smul.u32 18, %s19
      $region32: #{crab_layer_forward.3} parent=19 // pred_fallthru
        _
    $region20: #{crab_layer_forward.3} parent=5 // pred_fallthru
      _
    %p203 = scmp.le.s32.totalorder 1, %s11
    %p204 = scmp.lt.s32.totalorder %s11, 5
    %p205 = pnand %p203, %p204
    %p206 = pneg %p205
    // Predicated region
    $region33: #{crab_layer_forward.3} parent=5 // pred_check
      _
    $region34: #{crab_layer_forward.3} parent=5 // pred_check_branch
      %208 = sbr.rel (%p205) target = $region36
    $region35: #{crab_layer_forward.3} parent=5 // pred_region
      %s209 = ssub.s32 %s11, 1
      %p210 = pneg %p44
      %p211 = pneg %p41
      %p212 = scmp.lt.s32.totalorder %s20, 1
      %s213 = scalar_select %p212, %s20, 1
      %s214 = smul.addr %s213, 9
      %s215 = smul.addr %s214, 4
      %s216 = scalar_lea.vmem %s1, %s215
      %p217 = pneg %p70
      %p218 = pneg %p67
      %p219 = scmp.lt.s32.totalorder %s20, 1
      %s220 = scalar_select %p219, %s20, 1
      %s221 = smul.addr %s220, 43
      %s222 = smul.addr %s221, 8
      %s223 = scalar_lea.vmem %s2, %s222
      %p224 = pneg %p96
      %p225 = pneg %p93
      %s226 = smul.u32 18, %s21
      %p227 = scmp.lt.s32.totalorder %s20, 1
      %s228 = scalar_select %p227, %s20, 1
      %p229 = scmp.lt.s32.totalorder %s226, 35
      %s230 = scalar_select %p229, %s226, 35
      %s231 = smul.addr %s228, 36
      %s232 = sadd.s32 %s230, %s231
      %s233 = smul.addr %s232, 8
      %s234 = scalar_lea.vmem %s3, %s233
      %p235 = pneg %p124
      %p236 = pneg %p121
      %p237 = pneg %p152
      %p238 = pneg %p149
      %s239 = smul.u32 18, %s21
      %p240 = scmp.lt.s32.totalorder %s20, 1
      %s241 = scalar_select %p240, %s20, 1
      %p242 = scmp.lt.s32.totalorder %s239, 35
      %s243 = scalar_select %p242, %s239, 35
      %s244 = smul.addr %s241, 36
      %s245 = sadd.s32 %s243, %s244
      %s246 = smul.addr %s245, 8
      %s247 = scalar_lea.vmem %s4, %s246
      %p248 = scmp.lt.s32.totalorder %s20, 1
      %s249 = scalar_select %p248, %s20, 1
      %s250 = smul.addr %s249, 9
      %s251 = smul.addr %s250, 4
      %s252 = scalar_lea.vmem %s1, %s251
      %p253 = scmp.lt.s32.totalorder %s20, 1
      %s254 = scalar_select %p253, %s20, 1
      %s255 = smul.addr %s254, 43
      %s256 = smul.addr %s255, 8
      %s257 = scalar_lea.vmem %s2, %s256
      %s258 = smul.u32 18, %s21
      %p259 = scmp.lt.s32.totalorder %s20, 1
      %s260 = scalar_select %p259, %s20, 1
      %p261 = scmp.lt.s32.totalorder %s258, 35
      %s262 = scalar_select %p261, %s258, 35
      %s263 = smul.addr %s260, 36
      %s264 = sadd.s32 %s262, %s263
      %s265 = smul.addr %s264, 8
      %s266 = scalar_lea.vmem %s3, %s265
      %s267 = smul.u32 18, %s21
      %s268 = smul.u32 18, %s21
      %p269 = scmp.lt.s32.totalorder %s20, 1
      %s270 = scalar_select %p269, %s20, 1
      %p271 = scmp.lt.s32.totalorder %s268, 35
      %s272 = scalar_select %p271, %s268, 35
      %s273 = smul.addr %s270, 36
      %s274 = sadd.s32 %s272, %s273
      %s275 = smul.addr %s274, 8
      %s276 = scalar_lea.vmem %s4, %s275
      %s277 = smul.u32 18, %s21
      %s279 = smul.u32 %s21, 144
      %s280 = scalar_lea.vmem %s257, %s279
      %v281 = vld [vmem:[%s280] sm:$0xff]
      %v282 = vld [vmem:[%s280 + $0x8] sm:$0xff]
      %v283 = vld [vmem:[%s280 + $0x10] sm:$0xff]
      %v284 = vld [vmem:[%s280 + $0x18] sm:$0xff]
      %v285 = vld [vmem:[%s280 + $0x20] sm:$0xff]
      %v286 = vld [vmem:[%s280 + $0x28] sm:$0xff]
      %v287 = vld [vmem:[%s280 + $0x30] sm:$0xff]
      %v288 = vld [vmem:[%s280 + $0x38] sm:$0xff]
      %v289 = vld [vmem:[%s280 + $0x40] sm:$0xff]
      %v290 = vld [vmem:[%s280 + $0x48] sm:$0xff]
      %v291 = vld [vmem:[%s280 + $0x50] sm:$0xff]
      %v292 = vld [vmem:[%s280 + $0x58] sm:$0xff]
      %v293 = vld [vmem:[%s280 + $0x60] sm:$0xff]
      %v294 = vld [vmem:[%s280 + $0x68] sm:$0xff]
      %v295 = vld [vmem:[%s280 + $0x70] sm:$0xff]
      %v296 = vld [vmem:[%s280 + $0x78] sm:$0xff]
      %v297 = vld [vmem:[%s280 + $0x80] sm:$0xff]
      %v298 = vld [vmem:[%s280 + $0x88] sm:$0xff]
      %v299 = vld [vmem:[%s280 + $0x90] sm:$0xff]
      %v300 = vld [vmem:[%s280 + $0x98] sm:$0xff]
      %v301 = vld [vmem:[%s280 + $0xa0] sm:$0xff]
      %v302 = vld [vmem:[%s280 + $0xa8] sm:$0xff]
      %v303 = vld [vmem:[%s280 + $0xb0] sm:$0x3f]
      %v304 = vpack.c.bf16 %v282, %v281
      %v305 = vpack.c.bf16 %v284, %v283
      %v306 = vpack.c.bf16 %v286, %v285
      %v307 = vpack.c.bf16 %v288, %v287
      %v308 = vpack.c.bf16 %v290, %v289
      %v309 = vpack.c.bf16 %v292, %v291
      %v310 = vpack.c.bf16 %v294, %v293
      %v311 = vpack.c.bf16 %v296, %v295
      %v312 = vpack.c.bf16 %v298, %v297
      %v313 = vld [vmem:[%s252] sm:$0xf]
      %v314 = vpack.c.bf16 %v299, %v299
      %s315 = scalar_lea.vmem %s252, 4
      %v316 = vld [vmem:[%s315] sm:$0xf]
      %vm317 = vsmask.f32 7424
      %v319 = vshrl.u32 %v304, 16
      %v321 = vshll.u32 %v304, 16
      %v323 = vrot.slane %v321, 1
      %v324 = vor.u32 %v319, %v323
      %v326 = vshll.u32 %v305, 16
      %v328 = vrot.slane %v326, 1
      %v329 = vsel %vm317, %v324, %v328
      %v330 = vshrl.u32 %v305, 16
      %v332 = vor.u32 %v330, %v328
      %v334 = vshll.u32 %v306, 16
      %v336 = vrot.slane %v334, 1
      %v337 = vsel %vm317, %v332, %v336
      %v338 = vshrl.u32 %v306, 16
      %v340 = vor.u32 %v338, %v336
      %v342 = vshll.u32 %v307, 16
      %v344 = vrot.slane %v342, 1
      %v345 = vsel %vm317, %v340, %v344
      %v346 = vshrl.u32 %v307, 16
      %v348 = vor.u32 %v346, %v344
      %v350 = vshll.u32 %v308, 16
      %v352 = vrot.slane %v350, 1
      %v353 = vsel %vm317, %v348, %v352
      %v354 = vshrl.u32 %v308, 16
      %v356 = vor.u32 %v354, %v352
      %v358 = vshll.u32 %v309, 16
      %v360 = vrot.slane %v358, 1
      %v361 = vsel %vm317, %v356, %v360
      %v362 = vshrl.u32 %v309, 16
      %v364 = vor.u32 %v362, %v360
      %v366 = vshll.u32 %v310, 16
      %v368 = vrot.slane %v366, 1
      %v369 = vsel %vm317, %v364, %v368
      %v370 = vshrl.u32 %v310, 16
      %v372 = vor.u32 %v370, %v368
      %v374 = vshll.u32 %v311, 16
      %v376 = vrot.slane %v374, 1
      %v377 = vsel %vm317, %v372, %v376
      %v378 = vshrl.u32 %v311, 16
      %v380 = vor.u32 %v378, %v376
      %v382 = vshll.u32 %v312, 16
      %v384 = vrot.slane %v382, 1
      %v385 = vsel %vm317, %v380, %v384
      %v386 = vshrl.u32 %v312, 16
      %v388 = vor.u32 %v386, %v384
      %v390 = vshll.u32 %v314, 16
      %v392 = vrot.slane %v390, 1
      %v393 = vsel %vm317, %v388, %v392
      %vm394 = vcmask 64512
      %v396 = vsel %vm394, %v329, 0
      %v399 = vsel %vm394, %v337, 0
      %v402 = vsel %vm394, %v345, 0
      %v405 = vsel %vm394, %v353, 0
      %v408 = vsel %vm394, %v361, 0
      %v411 = vsel %vm394, %v369, 0
      %v414 = vsel %vm394, %v377, 0
      %v417 = vsel %vm394, %v385, 0
      %v420 = vsel %vm394, %v393, 0
      %vm422 = vcmask 1043456
      %v424 = vsel %vm422, %v316, 0
      %426 = vmatprep.subr.bf16.mxu0 0
      %427 = vmatpush1.bf16.msra.mxu0 0
      %428 = vmatprep.subr.bf16.mxu0 0
      %429 = vmatpush1.bf16.msra.mxu0 0
      %430 = vmatprep.subr.bf16.mxu0 0
      %431 = vmatpush1.bf16.msra.mxu0 0
      %432 = vmatprep.subr.bf16.mxu0 0
      %433 = vmatpush1.bf16.msra.mxu0 0
      %434 = vmatprep.subr.bf16.mxu0 0
      %435 = vmatpush1.bf16.msra.mxu0 0
      %436 = vmatprep.subr.bf16.mxu0 0
      %437 = vmatpush1.bf16.msra.mxu0 0
      %438 = vmatprep.subr.bf16.mxu0 0
      %439 = vmatpush1.bf16.msra.mxu0 0
      %440 = vmatprep.subr.bf16.mxu0 0
      %441 = vmatpush1.bf16.msra.mxu0 %v424
      %442 = vmatprep.subr.bf16.mxu0 0
      %443 = vmatpush2.bf16.msra.mxu0 0
      %444 = vmatprep.subr.bf16.mxu0 0
      %445 = vmatpush2.bf16.msra.mxu0 0
      %446 = vmatprep.subr.bf16.mxu0 0
      %447 = vmatpush2.bf16.msra.mxu0 0
      %448 = vmatprep.subr.bf16.mxu0 0
      %449 = vmatpush2.bf16.msra.mxu0 0
      %450 = vmatprep.subr.bf16.mxu0 0
      %451 = vmatpush2.bf16.msra.mxu0 0
      %452 = vmatprep.subr.bf16.mxu0 0
      %453 = vmatpush2.bf16.msra.mxu0 0
      %454 = vmatprep.subr.bf16.mxu0 0
      %455 = vmatpush2.bf16.msra.mxu0 0
      %456 = vmatprep.subr.bf16.mxu0 0
      %457 = vmatpush2.bf16.msra.mxu0 0
      %458 = vmatprep.mubr.bf16.mxu0 0
      %459 = vmatmul.mubr.bf16.gmra.mxu0 %v396
      %v460 = vpop.f32.mrf.mxu0
      %v461 = vadd.f32 0.0, %v460
      %v462 = vpop.f32.mrf.mxu0
      %v463 = vpop.f32.mrf.mxu0
      %v464 = vadd.f32 0.0, %v463
      %v465 = vpop.f32.mrf.mxu0
      %466 = vmatprep.mubr.bf16.mxu0 0
      %467 = vmatmul.mubr.bf16.gmra.mxu0 %v399
      %v468 = vpop.f32.mrf.mxu0
      %v469 = vadd.f32 0.0, %v468
      %v470 = vpop.f32.mrf.mxu0
      %v471 = vpop.f32.mrf.mxu0
      %v472 = vadd.f32 0.0, %v471
      %v473 = vpop.f32.mrf.mxu0
      %474 = vmatprep.mubr.bf16.mxu0 0
      %475 = vmatmul.mubr.bf16.gmra.mxu0 %v402
      %v476 = vpop.f32.mrf.mxu0
      %v477 = vadd.f32 0.0, %v476
      %v478 = vpop.f32.mrf.mxu0
      %v479 = vpop.f32.mrf.mxu0
      %v480 = vadd.f32 0.0, %v479
      %v481 = vpop.f32.mrf.mxu0
      %482 = vmatprep.mubr.bf16.mxu0 0
      %483 = vmatmul.mubr.bf16.gmra.mxu0 %v405
      %v484 = vpop.f32.mrf.mxu0
      %v485 = vadd.f32 0.0, %v484
      %v486 = vpop.f32.mrf.mxu0
      %v487 = vpop.f32.mrf.mxu0
      %v488 = vadd.f32 0.0, %v487
      %v489 = vpop.f32.mrf.mxu0
      %490 = vmatprep.mubr.bf16.mxu0 0
      %491 = vmatmul.mubr.bf16.gmra.mxu0 %v408
      %v492 = vpop.f32.mrf.mxu0
      %v493 = vadd.f32 0.0, %v492
      %v494 = vpop.f32.mrf.mxu0
      %v495 = vpop.f32.mrf.mxu0
      %v496 = vadd.f32 0.0, %v495
      %v497 = vpop.f32.mrf.mxu0
      %498 = vmatprep.mubr.bf16.mxu0 0
      %499 = vmatmul.mubr.bf16.gmra.mxu0 %v411
      %v500 = vpop.f32.mrf.mxu0
      %v501 = vadd.f32 0.0, %v500
      %v502 = vpop.f32.mrf.mxu0
      %v503 = vpop.f32.mrf.mxu0
      %v504 = vadd.f32 0.0, %v503
      %v505 = vpop.f32.mrf.mxu0
      %506 = vmatprep.mubr.bf16.mxu0 0
      %507 = vmatmul.mubr.bf16.gmra.mxu0 %v414
      %v508 = vpop.f32.mrf.mxu0
      %v509 = vadd.f32 0.0, %v508
      %v510 = vpop.f32.mrf.mxu0
      %v511 = vpop.f32.mrf.mxu0
      %v512 = vadd.f32 0.0, %v511
      %v513 = vpop.f32.mrf.mxu0
      %514 = vmatprep.mubr.bf16.mxu0 0
      %515 = vmatmul.mubr.bf16.gmra.mxu0 %v417
      %v516 = vpop.f32.mrf.mxu0
      %v517 = vadd.f32 0.0, %v516
      %v518 = vpop.f32.mrf.mxu0
      %v519 = vpop.f32.mrf.mxu0
      %v520 = vadd.f32 0.0, %v519
      %v521 = vpop.f32.mrf.mxu0
      %522 = vmatprep.mubr.bf16.mxu0 0
      %523 = vmatmul.mubr.bf16.gmra.mxu0 %v420
      %v524 = vpop.f32.mrf.mxu0
      %v525 = vadd.f32 0.0, %v524
      %v526 = vpop.f32.mrf.mxu0
      %v527 = vpop.f32.mrf.mxu0
      %v528 = vadd.f32 0.0, %v527
      %v529 = vpop.f32.mrf.mxu0
      %530 = vdwg.mxu0
      %v531 = vsel %vm394, %v304, 0
      %v533 = vsel %vm394, %v305, 0
      %v535 = vsel %vm394, %v306, 0
      %v537 = vsel %vm394, %v307, 0
      %v539 = vsel %vm394, %v308, 0
      %v541 = vsel %vm394, %v309, 0
      %v543 = vsel %vm394, %v310, 0
      %v545 = vsel %vm394, %v311, 0
      %v547 = vsel %vm394, %v312, 0
      %v550 = vsel %vm422, %v313, 0
      %552 = vmatprep.subr.bf16.mxu0 0
      %553 = vmatpush1.bf16.msra.mxu0 0
      %554 = vmatprep.subr.bf16.mxu0 0
      %555 = vmatpush1.bf16.msra.mxu0 0
      %556 = vmatprep.subr.bf16.mxu0 0
      %557 = vmatpush1.bf16.msra.mxu0 0
      %558 = vmatprep.subr.bf16.mxu0 0
      %559 = vmatpush1.bf16.msra.mxu0 0
      %560 = vmatprep.subr.bf16.mxu0 0
      %561 = vmatpush1.bf16.msra.mxu0 0
      %562 = vmatprep.subr.bf16.mxu0 0
      %563 = vmatpush1.bf16.msra.mxu0 0
      %564 = vmatprep.subr.bf16.mxu0 0
      %565 = vmatpush1.bf16.msra.mxu0 0
      %566 = vmatprep.subr.bf16.mxu0 0
      %567 = vmatpush1.bf16.msra.mxu0 %v550
      %568 = vmatprep.subr.bf16.mxu0 0
      %569 = vmatpush2.bf16.msra.mxu0 0
      %570 = vmatprep.subr.bf16.mxu0 0
      %571 = vmatpush2.bf16.msra.mxu0 0
      %572 = vmatprep.subr.bf16.mxu0 0
      %573 = vmatpush2.bf16.msra.mxu0 0
      %574 = vmatprep.subr.bf16.mxu0 0
      %575 = vmatpush2.bf16.msra.mxu0 0
      %576 = vmatprep.subr.bf16.mxu0 0
      %577 = vmatpush2.bf16.msra.mxu0 0
      %578 = vmatprep.subr.bf16.mxu0 0
      %579 = vmatpush2.bf16.msra.mxu0 0
      %580 = vmatprep.subr.bf16.mxu0 0
      %581 = vmatpush2.bf16.msra.mxu0 0
      %582 = vmatprep.subr.bf16.mxu0 0
      %583 = vmatpush2.bf16.msra.mxu0 0
      %584 = vmatprep.mubr.bf16.mxu0 0
      %585 = vmatmul.mubr.bf16.gmra.mxu0 %v531
      %v586 = vpop.f32.mrf.mxu0
      %v587 = vadd.f32 %v461, %v586
      %v588 = vpop.f32.mrf.mxu0
      %v589 = vpop.f32.mrf.mxu0
      %v590 = vadd.f32 %v464, %v589
      %v591 = vpop.f32.mrf.mxu0
      %592 = vmatprep.mubr.bf16.mxu0 0
      %593 = vmatmul.mubr.bf16.gmra.mxu0 %v533
      %v594 = vpop.f32.mrf.mxu0
      %v595 = vadd.f32 %v469, %v594
      %v596 = vpop.f32.mrf.mxu0
      %v597 = vpop.f32.mrf.mxu0
      %v598 = vadd.f32 %v472, %v597
      %v599 = vpop.f32.mrf.mxu0
      %600 = vmatprep.mubr.bf16.mxu0 0
      %601 = vmatmul.mubr.bf16.gmra.mxu0 %v535
      %v602 = vpop.f32.mrf.mxu0
      %v603 = vadd.f32 %v477, %v602
      %v604 = vpop.f32.mrf.mxu0
      %v605 = vpop.f32.mrf.mxu0
      %v606 = vadd.f32 %v480, %v605
      %v607 = vpop.f32.mrf.mxu0
      %608 = vmatprep.mubr.bf16.mxu0 0
      %609 = vmatmul.mubr.bf16.gmra.mxu0 %v537
      %v610 = vpop.f32.mrf.mxu0
      %v611 = vadd.f32 %v485, %v610
      %v612 = vpop.f32.mrf.mxu0
      %v613 = vpop.f32.mrf.mxu0
      %v614 = vadd.f32 %v488, %v613
      %v615 = vpop.f32.mrf.mxu0
      %616 = vmatprep.mubr.bf16.mxu0 0
      %617 = vmatmul.mubr.bf16.gmra.mxu0 %v539
      %v618 = vpop.f32.mrf.mxu0
      %v619 = vadd.f32 %v493, %v618
      %v620 = vpop.f32.mrf.mxu0
      %v621 = vpop.f32.mrf.mxu0
      %v622 = vadd.f32 %v496, %v621
      %v623 = vpop.f32.mrf.mxu0
      %624 = vmatprep.mubr.bf16.mxu0 0
      %625 = vmatmul.mubr.bf16.gmra.mxu0 %v541
      %v626 = vpop.f32.mrf.mxu0
      %v627 = vadd.f32 %v501, %v626
      %v628 = vpop.f32.mrf.mxu0
      %v629 = vpop.f32.mrf.mxu0
      %v630 = vadd.f32 %v504, %v629
      %v631 = vpop.f32.mrf.mxu0
      %632 = vmatprep.mubr.bf16.mxu0 0
      %633 = vmatmul.mubr.bf16.gmra.mxu0 %v543
      %v634 = vpop.f32.mrf.mxu0
      %v635 = vadd.f32 %v509, %v634
      %v636 = vpop.f32.mrf.mxu0
      %v637 = vpop.f32.mrf.mxu0
      %v638 = vadd.f32 %v512, %v637
      %v639 = vpop.f32.mrf.mxu0
      %640 = vmatprep.mubr.bf16.mxu0 0
      %641 = vmatmul.mubr.bf16.gmra.mxu0 %v545
      %v642 = vpop.f32.mrf.mxu0
      %v643 = vadd.f32 %v517, %v642
      %v644 = vpop.f32.mrf.mxu0
      %v645 = vpop.f32.mrf.mxu0
      %v646 = vadd.f32 %v520, %v645
      %v647 = vpop.f32.mrf.mxu0
      %648 = vmatprep.mubr.bf16.mxu0 0
      %649 = vmatmul.mubr.bf16.gmra.mxu0 %v547
      %v650 = vpop.f32.mrf.mxu0
      %v651 = vadd.f32 %v525, %v650
      %v652 = vpop.f32.mrf.mxu0
      %v653 = vpop.f32.mrf.mxu0
      %v654 = vadd.f32 %v528, %v653
      %v655 = vpop.f32.mrf.mxu0
      %656 = vdwg.mxu0
      %s657 = scalar_lea.vmem %s252, 8
      %v658 = vld [vmem:[%s657] sm:$0xf]
      %vm669 = vcmask 1046528
      %v670 = vrot.slane %v304, 1
      %v671 = vrot.slane %v305, 1
      %v672 = vsel %vm669, %v670, %v671
      %v673 = vrot.slane %v306, 1
      %v674 = vsel %vm669, %v671, %v673
      %v675 = vrot.slane %v307, 1
      %v676 = vsel %vm669, %v673, %v675
      %v677 = vrot.slane %v308, 1
      %v678 = vsel %vm669, %v675, %v677
      %v679 = vrot.slane %v309, 1
      %v680 = vsel %vm669, %v677, %v679
      %v681 = vrot.slane %v310, 1
      %v682 = vsel %vm669, %v679, %v681
      %v683 = vrot.slane %v311, 1
      %v684 = vsel %vm669, %v681, %v683
      %v685 = vrot.slane %v312, 1
      %v686 = vsel %vm669, %v683, %v685
      %v687 = vrot.slane %v314, 1
      %v688 = vsel %vm669, %v685, %v687
      %v690 = vsel %vm394, %v672, 0
      %v693 = vsel %vm394, %v674, 0
      %v696 = vsel %vm394, %v676, 0
      %v699 = vsel %vm394, %v678, 0
      %v702 = vsel %vm394, %v680, 0
      %v705 = vsel %vm394, %v682, 0
      %v708 = vsel %vm394, %v684, 0
      %v711 = vsel %vm394, %v686, 0
      %v714 = vsel %vm394, %v688, 0
      %v717 = vsel %vm422, %v658, 0
      %719 = vmatprep.subr.bf16.mxu0 0
      %720 = vmatpush1.bf16.msra.mxu0 0
      %721 = vmatprep.subr.bf16.mxu0 0
      %722 = vmatpush1.bf16.msra.mxu0 0
      %723 = vmatprep.subr.bf16.mxu0 0
      %724 = vmatpush1.bf16.msra.mxu0 0
      %725 = vmatprep.subr.bf16.mxu0 0
      %726 = vmatpush1.bf16.msra.mxu0 0
      %727 = vmatprep.subr.bf16.mxu0 0
      %728 = vmatpush1.bf16.msra.mxu0 0
      %729 = vmatprep.subr.bf16.mxu0 0
      %730 = vmatpush1.bf16.msra.mxu0 0
      %731 = vmatprep.subr.bf16.mxu0 0
      %732 = vmatpush1.bf16.msra.mxu0 0
      %733 = vmatprep.subr.bf16.mxu0 0
      %734 = vmatpush1.bf16.msra.mxu0 %v717
      %735 = vmatprep.subr.bf16.mxu0 0
      %736 = vmatpush2.bf16.msra.mxu0 0
      %737 = vmatprep.subr.bf16.mxu0 0
      %738 = vmatpush2.bf16.msra.mxu0 0
      %739 = vmatprep.subr.bf16.mxu0 0
      %740 = vmatpush2.bf16.msra.mxu0 0
      %741 = vmatprep.subr.bf16.mxu0 0
      %742 = vmatpush2.bf16.msra.mxu0 0
      %743 = vmatprep.subr.bf16.mxu0 0
      %744 = vmatpush2.bf16.msra.mxu0 0
      %745 = vmatprep.subr.bf16.mxu0 0
      %746 = vmatpush2.bf16.msra.mxu0 0
      %747 = vmatprep.subr.bf16.mxu0 0
      %748 = vmatpush2.bf16.msra.mxu0 0
      %749 = vmatprep.subr.bf16.mxu0 0
      %750 = vmatpush2.bf16.msra.mxu0 0
      %751 = vmatprep.mubr.bf16.mxu0 0
      %752 = vmatmul.mubr.bf16.gmra.mxu0 %v690
      %v753 = vpop.f32.mrf.mxu0
      %v754 = vadd.f32 0.0, %v753
      %v755 = vpop.f32.mrf.mxu0
      %v756 = vpop.f32.mrf.mxu0
      %v757 = vadd.f32 0.0, %v756
      %v758 = vpop.f32.mrf.mxu0
      %759 = vmatprep.mubr.bf16.mxu0 0
      %760 = vmatmul.mubr.bf16.gmra.mxu0 %v693
      %v761 = vpop.f32.mrf.mxu0
      %v762 = vadd.f32 0.0, %v761
      %v763 = vpop.f32.mrf.mxu0
      %v764 = vpop.f32.mrf.mxu0
      %v765 = vadd.f32 0.0, %v764
      %v766 = vpop.f32.mrf.mxu0
      %767 = vmatprep.mubr.bf16.mxu0 0
      %768 = vmatmul.mubr.bf16.gmra.mxu0 %v696
      %v769 = vpop.f32.mrf.mxu0
      %v770 = vadd.f32 0.0, %v769
      %v771 = vpop.f32.mrf.mxu0
      %v772 = vpop.f32.mrf.mxu0
      %v773 = vadd.f32 0.0, %v772
      %v774 = vpop.f32.mrf.mxu0
      %775 = vmatprep.mubr.bf16.mxu0 0
      %776 = vmatmul.mubr.bf16.gmra.mxu0 %v699
      %v777 = vpop.f32.mrf.mxu0
      %v778 = vadd.f32 0.0, %v777
      %v779 = vpop.f32.mrf.mxu0
      %v780 = vpop.f32.mrf.mxu0
      %v781 = vadd.f32 0.0, %v780
      %v782 = vpop.f32.mrf.mxu0
      %783 = vmatprep.mubr.bf16.mxu0 0
      %784 = vmatmul.mubr.bf16.gmra.mxu0 %v702
      %v785 = vpop.f32.mrf.mxu0
      %v786 = vadd.f32 0.0, %v785
      %v787 = vpop.f32.mrf.mxu0
      %v788 = vpop.f32.mrf.mxu0
      %v789 = vadd.f32 0.0, %v788
      %v790 = vpop.f32.mrf.mxu0
      %791 = vmatprep.mubr.bf16.mxu0 0
      %792 = vmatmul.mubr.bf16.gmra.mxu0 %v705
      %v793 = vpop.f32.mrf.mxu0
      %v794 = vadd.f32 0.0, %v793
      %v795 = vpop.f32.mrf.mxu0
      %v796 = vpop.f32.mrf.mxu0
      %v797 = vadd.f32 0.0, %v796
      %v798 = vpop.f32.mrf.mxu0
      %799 = vmatprep.mubr.bf16.mxu0 0
      %800 = vmatmul.mubr.bf16.gmra.mxu0 %v708
      %v801 = vpop.f32.mrf.mxu0
      %v802 = vadd.f32 0.0, %v801
      %v803 = vpop.f32.mrf.mxu0
      %v804 = vpop.f32.mrf.mxu0
      %v805 = vadd.f32 0.0, %v804
      %v806 = vpop.f32.mrf.mxu0
      %807 = vmatprep.mubr.bf16.mxu0 0
      %808 = vmatmul.mubr.bf16.gmra.mxu0 %v711
      %v809 = vpop.f32.mrf.mxu0
      %v810 = vadd.f32 0.0, %v809
      %v811 = vpop.f32.mrf.mxu0
      %v812 = vpop.f32.mrf.mxu0
      %v813 = vadd.f32 0.0, %v812
      %v814 = vpop.f32.mrf.mxu0
      %815 = vmatprep.mubr.bf16.mxu0 0
      %816 = vmatmul.mubr.bf16.gmra.mxu0 %v714
      %v817 = vpop.f32.mrf.mxu0
      %v818 = vadd.f32 0.0, %v817
      %v819 = vpop.f32.mrf.mxu0
      %v820 = vpop.f32.mrf.mxu0
      %v821 = vadd.f32 0.0, %v820
      %v822 = vpop.f32.mrf.mxu0
      %823 = vdwg.mxu0
      %v824 = vadd.f32 %v587, %v754
      %v825 = vadd.f32 %v590, %v757
      %v826 = vadd.f32 %v595, %v762
      %v827 = vadd.f32 %v598, %v765
      %v828 = vadd.f32 %v603, %v770
      %v829 = vadd.f32 %v606, %v773
      %v830 = vadd.f32 %v611, %v778
      %v831 = vadd.f32 %v614, %v781
      %v832 = vadd.f32 %v619, %v786
      %v833 = vadd.f32 %v622, %v789
      %v834 = vadd.f32 %v627, %v794
      %v835 = vadd.f32 %v630, %v797
      %v836 = vadd.f32 %v635, %v802
      %v837 = vadd.f32 %v638, %v805
      %v838 = vadd.f32 %v643, %v810
      %v839 = vadd.f32 %v646, %v813
      %v840 = vadd.f32 %v651, %v818
      %v841 = vadd.f32 %v654, %v821
      %v842 = vpack.c.bf16 %v300, %v299
      %v843 = vpack.c.bf16 %v301, %v301
      %s844 = scalar_lea.vmem %s252, 12
      %v845 = vld [vmem:[%s844] sm:$0xf]
      %v848 = vrot.slane %v842, 1
      %v849 = vsel %vm669, %v685, %v848
      %v850 = vrot.slane %v843, 1
      %v851 = vsel %vm669, %v848, %v850
      %v853 = vsel %vm394, %v849, 0
      %v856 = vsel %vm394, %v851, 0
      %v859 = vsel %vm422, %v845, 0
      %861 = vmatprep.subr.bf16.mxu0 0
      %862 = vmatpush1.bf16.msra.mxu0 0
      %863 = vmatprep.subr.bf16.mxu0 0
      %864 = vmatpush1.bf16.msra.mxu0 0
      %865 = vmatprep.subr.bf16.mxu0 0
      %866 = vmatpush1.bf16.msra.mxu0 0
      %867 = vmatprep.subr.bf16.mxu0 0
      %868 = vmatpush1.bf16.msra.mxu0 0
      %869 = vmatprep.subr.bf16.mxu0 0
      %870 = vmatpush1.bf16.msra.mxu0 0
      %871 = vmatprep.subr.bf16.mxu0 0
      %872 = vmatpush1.bf16.msra.mxu0 0
      %873 = vmatprep.subr.bf16.mxu0 0
      %874 = vmatpush1.bf16.msra.mxu0 0
      %875 = vmatprep.subr.bf16.mxu0 0
      %876 = vmatpush1.bf16.msra.mxu0 %v859
      %877 = vmatprep.subr.bf16.mxu0 0
      %878 = vmatpush2.bf16.msra.mxu0 0
      %879 = vmatprep.subr.bf16.mxu0 0
      %880 = vmatpush2.bf16.msra.mxu0 0
      %881 = vmatprep.subr.bf16.mxu0 0
      %882 = vmatpush2.bf16.msra.mxu0 0
      %883 = vmatprep.subr.bf16.mxu0 0
      %884 = vmatpush2.bf16.msra.mxu0 0
      %885 = vmatprep.subr.bf16.mxu0 0
      %886 = vmatpush2.bf16.msra.mxu0 0
      %887 = vmatprep.subr.bf16.mxu0 0
      %888 = vmatpush2.bf16.msra.mxu0 0
      %889 = vmatprep.subr.bf16.mxu0 0
      %890 = vmatpush2.bf16.msra.mxu0 0
      %891 = vmatprep.subr.bf16.mxu0 0
      %892 = vmatpush2.bf16.msra.mxu0 0
      %893 = vmatprep.mubr.bf16.mxu0 0
      %894 = vmatmul.mubr.bf16.gmra.mxu0 %v693
      %v895 = vpop.f32.mrf.mxu0
      %v896 = vadd.f32 0.0, %v895
      %v897 = vpop.f32.mrf.mxu0
      %v898 = vpop.f32.mrf.mxu0
      %v899 = vadd.f32 0.0, %v898
      %v900 = vpop.f32.mrf.mxu0
      %901 = vmatprep.mubr.bf16.mxu0 0
      %902 = vmatmul.mubr.bf16.gmra.mxu0 %v696
      %v903 = vpop.f32.mrf.mxu0
      %v904 = vadd.f32 0.0, %v903
      %v905 = vpop.f32.mrf.mxu0
      %v906 = vpop.f32.mrf.mxu0
      %v907 = vadd.f32 0.0, %v906
      %v908 = vpop.f32.mrf.mxu0
      %909 = vmatprep.mubr.bf16.mxu0 0
      %910 = vmatmul.mubr.bf16.gmra.mxu0 %v699
      %v911 = vpop.f32.mrf.mxu0
      %v912 = vadd.f32 0.0, %v911
      %v913 = vpop.f32.mrf.mxu0
      %v914 = vpop.f32.mrf.mxu0
      %v915 = vadd.f32 0.0, %v914
      %v916 = vpop.f32.mrf.mxu0
      %917 = vmatprep.mubr.bf16.mxu0 0
      %918 = vmatmul.mubr.bf16.gmra.mxu0 %v702
      %v919 = vpop.f32.mrf.mxu0
      %v920 = vadd.f32 0.0, %v919
      %v921 = vpop.f32.mrf.mxu0
      %v922 = vpop.f32.mrf.mxu0
      %v923 = vadd.f32 0.0, %v922
      %v924 = vpop.f32.mrf.mxu0
      %925 = vmatprep.mubr.bf16.mxu0 0
      %926 = vmatmul.mubr.bf16.gmra.mxu0 %v705
      %v927 = vpop.f32.mrf.mxu0
      %v928 = vadd.f32 0.0, %v927
      %v929 = vpop.f32.mrf.mxu0
      %v930 = vpop.f32.mrf.mxu0
      %v931 = vadd.f32 0.0, %v930
      %v932 = vpop.f32.mrf.mxu0
      %933 = vmatprep.mubr.bf16.mxu0 0
      %934 = vmatmul.mubr.bf16.gmra.mxu0 %v708
      %v935 = vpop.f32.mrf.mxu0
      %v936 = vadd.f32 0.0, %v935
      %v937 = vpop.f32.mrf.mxu0
      %v938 = vpop.f32.mrf.mxu0
      %v939 = vadd.f32 0.0, %v938
      %v940 = vpop.f32.mrf.mxu0
      %941 = vmatprep.mubr.bf16.mxu0 0
      %942 = vmatmul.mubr.bf16.gmra.mxu0 %v711
      %v943 = vpop.f32.mrf.mxu0
      %v944 = vadd.f32 0.0, %v943
      %v945 = vpop.f32.mrf.mxu0
      %v946 = vpop.f32.mrf.mxu0
      %v947 = vadd.f32 0.0, %v946
      %v948 = vpop.f32.mrf.mxu0
      %949 = vmatprep.mubr.bf16.mxu0 0
      %950 = vmatmul.mubr.bf16.gmra.mxu0 %v853
      %v951 = vpop.f32.mrf.mxu0
      %v952 = vadd.f32 0.0, %v951
      %v953 = vpop.f32.mrf.mxu0
      %v954 = vpop.f32.mrf.mxu0
      %v955 = vadd.f32 0.0, %v954
      %v956 = vpop.f32.mrf.mxu0
      %957 = vmatprep.mubr.bf16.mxu0 0
      %958 = vmatmul.mubr.bf16.gmra.mxu0 %v856
      %v959 = vpop.f32.mrf.mxu0
      %v960 = vadd.f32 0.0, %v959
      %v961 = vpop.f32.mrf.mxu0
      %v962 = vpop.f32.mrf.mxu0
      %v963 = vadd.f32 0.0, %v962
      %v964 = vpop.f32.mrf.mxu0
      %965 = vdwg.mxu0
      %v966 = vadd.f32 %v824, %v896
      %v967 = vadd.f32 %v825, %v899
      %v968 = vadd.f32 %v826, %v904
      %v969 = vadd.f32 %v827, %v907
      %v970 = vadd.f32 %v828, %v912
      %v971 = vadd.f32 %v829, %v915
      %v972 = vadd.f32 %v830, %v920
      %v973 = vadd.f32 %v831, %v923
      %v974 = vadd.f32 %v832, %v928
      %v975 = vadd.f32 %v833, %v931
      %v976 = vadd.f32 %v834, %v936
      %v977 = vadd.f32 %v835, %v939
      %v978 = vadd.f32 %v836, %v944
      %v979 = vadd.f32 %v837, %v947
      %v980 = vadd.f32 %v838, %v952
      %v981 = vadd.f32 %v839, %v955
      %v982 = vadd.f32 %v840, %v960
      %v983 = vadd.f32 %v841, %v963
      %s984 = scalar_lea.vmem %s252, 16
      %v985 = vld [vmem:[%s984] sm:$0xf]
      %vm986 = vsmask.f32 6400
      %v987 = vrot.slane %v330, 1
      %v988 = vrot.slane %v326, 2
      %v989 = vor.u32 %v987, %v988
      %v990 = vrot.slane %v338, 1
      %v991 = vrot.slane %v334, 2
      %v992 = vor.u32 %v990, %v991
      %v993 = vsel %vm986, %v989, %v992
      %v994 = vrot.slane %v346, 1
      %v995 = vrot.slane %v342, 2
      %v996 = vor.u32 %v994, %v995
      %v997 = vsel %vm986, %v992, %v996
      %v998 = vrot.slane %v354, 1
      %v999 = vrot.slane %v350, 2
      %v1000 = vor.u32 %v998, %v999
      %v1001 = vsel %vm986, %v996, %v1000
      %v1002 = vrot.slane %v362, 1
      %v1003 = vrot.slane %v358, 2
      %v1004 = vor.u32 %v1002, %v1003
      %v1005 = vsel %vm986, %v1000, %v1004
      %v1006 = vrot.slane %v370, 1
      %v1007 = vrot.slane %v366, 2
      %v1008 = vor.u32 %v1006, %v1007
      %v1009 = vsel %vm986, %v1004, %v1008
      %v1010 = vrot.slane %v378, 1
      %v1011 = vrot.slane %v374, 2
      %v1012 = vor.u32 %v1010, %v1011
      %v1013 = vsel %vm986, %v1008, %v1012
      %v1014 = vrot.slane %v386, 1
      %v1015 = vrot.slane %v382, 2
      %v1016 = vor.u32 %v1014, %v1015
      %v1017 = vsel %vm986, %v1012, %v1016
      %v1019 = vshrl.u32 %v842, 16
      %v1021 = vrot.slane %v1019, 1
      %v1022 = vshll.u32 %v842, 16
      %v1024 = vrot.slane %v1022, 2
      %v1025 = vor.u32 %v1021, %v1024
      %v1026 = vsel %vm986, %v1016, %v1025
      %v1028 = vshrl.u32 %v843, 16
      %v1030 = vrot.slane %v1028, 1
      %v1031 = vshll.u32 %v843, 16
      %v1033 = vrot.slane %v1031, 2
      %v1034 = vor.u32 %v1030, %v1033
      %v1035 = vsel %vm986, %v1025, %v1034
      %v1037 = vsel %vm394, %v993, 0
      %v1040 = vsel %vm394, %v997, 0
      %v1043 = vsel %vm394, %v1001, 0
      %v1046 = vsel %vm394, %v1005, 0
      %v1049 = vsel %vm394, %v1009, 0
      %v1052 = vsel %vm394, %v1013, 0
      %v1055 = vsel %vm394, %v1017, 0
      %v1058 = vsel %vm394, %v1026, 0
      %v1061 = vsel %vm394, %v1035, 0
      %v1064 = vsel %vm422, %v985, 0
      %1066 = vmatprep.subr.bf16.mxu0 0
      %1067 = vmatpush1.bf16.msra.mxu0 0
      %1068 = vmatprep.subr.bf16.mxu0 0
      %1069 = vmatpush1.bf16.msra.mxu0 0
      %1070 = vmatprep.subr.bf16.mxu0 0
      %1071 = vmatpush1.bf16.msra.mxu0 0
      %1072 = vmatprep.subr.bf16.mxu0 0
      %1073 = vmatpush1.bf16.msra.mxu0 0
      %1074 = vmatprep.subr.bf16.mxu0 0
      %1075 = vmatpush1.bf16.msra.mxu0 0
      %1076 = vmatprep.subr.bf16.mxu0 0
      %1077 = vmatpush1.bf16.msra.mxu0 0
      %1078 = vmatprep.subr.bf16.mxu0 0
      %1079 = vmatpush1.bf16.msra.mxu0 0
      %1080 = vmatprep.subr.bf16.mxu0 0
      %1081 = vmatpush1.bf16.msra.mxu0 %v1064
      %1082 = vmatprep.subr.bf16.mxu0 0
      %1083 = vmatpush2.bf16.msra.mxu0 0
      %1084 = vmatprep.subr.bf16.mxu0 0
      %1085 = vmatpush2.bf16.msra.mxu0 0
      %1086 = vmatprep.subr.bf16.mxu0 0
      %1087 = vmatpush2.bf16.msra.mxu0 0
      %1088 = vmatprep.subr.bf16.mxu0 0
      %1089 = vmatpush2.bf16.msra.mxu0 0
      %1090 = vmatprep.subr.bf16.mxu0 0
      %1091 = vmatpush2.bf16.msra.mxu0 0
      %1092 = vmatprep.subr.bf16.mxu0 0
      %1093 = vmatpush2.bf16.msra.mxu0 0
      %1094 = vmatprep.subr.bf16.mxu0 0
      %1095 = vmatpush2.bf16.msra.mxu0 0
      %1096 = vmatprep.subr.bf16.mxu0 0
      %1097 = vmatpush2.bf16.msra.mxu0 0
      %1098 = vmatprep.mubr.bf16.mxu0 0
      %1099 = vmatmul.mubr.bf16.gmra.mxu0 %v1037
      %v1100 = vpop.f32.mrf.mxu0
      %v1101 = vadd.f32 0.0, %v1100
      %v1102 = vpop.f32.mrf.mxu0
      %v1103 = vpop.f32.mrf.mxu0
      %v1104 = vadd.f32 0.0, %v1103
      %v1105 = vpop.f32.mrf.mxu0
      %1106 = vmatprep.mubr.bf16.mxu0 0
      %1107 = vmatmul.mubr.bf16.gmra.mxu0 %v1040
      %v1108 = vpop.f32.mrf.mxu0
      %v1109 = vadd.f32 0.0, %v1108
      %v1110 = vpop.f32.mrf.mxu0
      %v1111 = vpop.f32.mrf.mxu0
      %v1112 = vadd.f32 0.0, %v1111
      %v1113 = vpop.f32.mrf.mxu0
      %1114 = vmatprep.mubr.bf16.mxu0 0
      %1115 = vmatmul.mubr.bf16.gmra.mxu0 %v1043
      %v1116 = vpop.f32.mrf.mxu0
      %v1117 = vadd.f32 0.0, %v1116
      %v1118 = vpop.f32.mrf.mxu0
      %v1119 = vpop.f32.mrf.mxu0
      %v1120 = vadd.f32 0.0, %v1119
      %v1121 = vpop.f32.mrf.mxu0
      %1122 = vmatprep.mubr.bf16.mxu0 0
      %1123 = vmatmul.mubr.bf16.gmra.mxu0 %v1046
      %v1124 = vpop.f32.mrf.mxu0
      %v1125 = vadd.f32 0.0, %v1124
      %v1126 = vpop.f32.mrf.mxu0
      %v1127 = vpop.f32.mrf.mxu0
      %v1128 = vadd.f32 0.0, %v1127
      %v1129 = vpop.f32.mrf.mxu0
      %1130 = vmatprep.mubr.bf16.mxu0 0
      %1131 = vmatmul.mubr.bf16.gmra.mxu0 %v1049
      %v1132 = vpop.f32.mrf.mxu0
      %v1133 = vadd.f32 0.0, %v1132
      %v1134 = vpop.f32.mrf.mxu0
      %v1135 = vpop.f32.mrf.mxu0
      %v1136 = vadd.f32 0.0, %v1135
      %v1137 = vpop.f32.mrf.mxu0
      %1138 = vmatprep.mubr.bf16.mxu0 0
      %1139 = vmatmul.mubr.bf16.gmra.mxu0 %v1052
      %v1140 = vpop.f32.mrf.mxu0
      %v1141 = vadd.f32 0.0, %v1140
      %v1142 = vpop.f32.mrf.mxu0
      %v1143 = vpop.f32.mrf.mxu0
      %v1144 = vadd.f32 0.0, %v1143
      %v1145 = vpop.f32.mrf.mxu0
      %1146 = vmatprep.mubr.bf16.mxu0 0
      %1147 = vmatmul.mubr.bf16.gmra.mxu0 %v1055
      %v1148 = vpop.f32.mrf.mxu0
      %v1149 = vadd.f32 0.0, %v1148
      %v1150 = vpop.f32.mrf.mxu0
      %v1151 = vpop.f32.mrf.mxu0
      %v1152 = vadd.f32 0.0, %v1151
      %v1153 = vpop.f32.mrf.mxu0
      %1154 = vmatprep.mubr.bf16.mxu0 0
      %1155 = vmatmul.mubr.bf16.gmra.mxu0 %v1058
      %v1156 = vpop.f32.mrf.mxu0
      %v1157 = vadd.f32 0.0, %v1156
      %v1158 = vpop.f32.mrf.mxu0
      %v1159 = vpop.f32.mrf.mxu0
      %v1160 = vadd.f32 0.0, %v1159
      %v1161 = vpop.f32.mrf.mxu0
      %1162 = vmatprep.mubr.bf16.mxu0 0
      %1163 = vmatmul.mubr.bf16.gmra.mxu0 %v1061
      %v1164 = vpop.f32.mrf.mxu0
      %v1165 = vadd.f32 0.0, %v1164
      %v1166 = vpop.f32.mrf.mxu0
      %v1167 = vpop.f32.mrf.mxu0
      %v1168 = vadd.f32 0.0, %v1167
      %v1169 = vpop.f32.mrf.mxu0
      %1170 = vdwg.mxu0
      %v1171 = vadd.f32 %v966, %v1101
      %v1172 = vadd.f32 %v967, %v1104
      %v1173 = vadd.f32 %v968, %v1109
      %v1174 = vadd.f32 %v969, %v1112
      %v1175 = vadd.f32 %v970, %v1117
      %v1176 = vadd.f32 %v971, %v1120
      %v1177 = vadd.f32 %v972, %v1125
      %v1178 = vadd.f32 %v973, %v1128
      %v1179 = vadd.f32 %v974, %v1133
      %v1180 = vadd.f32 %v975, %v1136
      %v1181 = vadd.f32 %v976, %v1141
      %v1182 = vadd.f32 %v977, %v1144
      %v1183 = vadd.f32 %v978, %v1149
      %v1184 = vadd.f32 %v979, %v1152
      %v1185 = vadd.f32 %v980, %v1157
      %v1186 = vadd.f32 %v981, %v1160
      %v1187 = vadd.f32 %v982, %v1165
      %v1188 = vadd.f32 %v983, %v1168
      %s1189 = scalar_lea.vmem %s252, 20
      %v1190 = vld [vmem:[%s1189] sm:$0xf]
      %vm1191 = vcmask 1045504
      %v1192 = vrot.slane %v305, 2
      %v1193 = vrot.slane %v306, 2
      %v1194 = vsel %vm1191, %v1192, %v1193
      %v1195 = vrot.slane %v307, 2
      %v1196 = vsel %vm1191, %v1193, %v1195
      %v1197 = vrot.slane %v308, 2
      %v1198 = vsel %vm1191, %v1195, %v1197
      %v1199 = vrot.slane %v309, 2
      %v1200 = vsel %vm1191, %v1197, %v1199
      %v1201 = vrot.slane %v310, 2
      %v1202 = vsel %vm1191, %v1199, %v1201
      %v1203 = vrot.slane %v311, 2
      %v1204 = vsel %vm1191, %v1201, %v1203
      %v1205 = vrot.slane %v312, 2
      %v1206 = vsel %vm1191, %v1203, %v1205
      %v1207 = vrot.slane %v842, 2
      %v1208 = vsel %vm1191, %v1205, %v1207
      %v1209 = vrot.slane %v843, 2
      %v1210 = vsel %vm1191, %v1207, %v1209
      %v1212 = vsel %vm394, %v1194, 0
      %v1215 = vsel %vm394, %v1196, 0
      %v1218 = vsel %vm394, %v1198, 0
      %v1221 = vsel %vm394, %v1200, 0
      %v1224 = vsel %vm394, %v1202, 0
      %v1227 = vsel %vm394, %v1204, 0
      %v1230 = vsel %vm394, %v1206, 0
      %v1233 = vsel %vm394, %v1208, 0
      %v1236 = vsel %vm394, %v1210, 0
      %v1239 = vsel %vm422, %v1190, 0
      %1241 = vmatprep.subr.bf16.mxu0 0
      %1242 = vmatpush1.bf16.msra.mxu0 0
      %1243 = vmatprep.subr.bf16.mxu0 0
      %1244 = vmatpush1.bf16.msra.mxu0 0
      %1245 = vmatprep.subr.bf16.mxu0 0
      %1246 = vmatpush1.bf16.msra.mxu0 0
      %1247 = vmatprep.subr.bf16.mxu0 0
      %1248 = vmatpush1.bf16.msra.mxu0 0
      %1249 = vmatprep.subr.bf16.mxu0 0
      %1250 = vmatpush1.bf16.msra.mxu0 0
      %1251 = vmatprep.subr.bf16.mxu0 0
      %1252 = vmatpush1.bf16.msra.mxu0 0
      %1253 = vmatprep.subr.bf16.mxu0 0
      %1254 = vmatpush1.bf16.msra.mxu0 0
      %1255 = vmatprep.subr.bf16.mxu0 0
      %1256 = vmatpush1.bf16.msra.mxu0 %v1239
      %1257 = vmatprep.subr.bf16.mxu0 0
      %1258 = vmatpush2.bf16.msra.mxu0 0
      %1259 = vmatprep.subr.bf16.mxu0 0
      %1260 = vmatpush2.bf16.msra.mxu0 0
      %1261 = vmatprep.subr.bf16.mxu0 0
      %1262 = vmatpush2.bf16.msra.mxu0 0
      %1263 = vmatprep.subr.bf16.mxu0 0
      %1264 = vmatpush2.bf16.msra.mxu0 0
      %1265 = vmatprep.subr.bf16.mxu0 0
      %1266 = vmatpush2.bf16.msra.mxu0 0
      %1267 = vmatprep.subr.bf16.mxu0 0
      %1268 = vmatpush2.bf16.msra.mxu0 0
      %1269 = vmatprep.subr.bf16.mxu0 0
      %1270 = vmatpush2.bf16.msra.mxu0 0
      %1271 = vmatprep.subr.bf16.mxu0 0
      %1272 = vmatpush2.bf16.msra.mxu0 0
      %1273 = vmatprep.mubr.bf16.mxu0 0
      %1274 = vmatmul.mubr.bf16.gmra.mxu0 %v1212
      %v1275 = vpop.f32.mrf.mxu0
      %v1276 = vadd.f32 0.0, %v1275
      %v1277 = vpop.f32.mrf.mxu0
      %v1278 = vpop.f32.mrf.mxu0
      %v1279 = vadd.f32 0.0, %v1278
      %v1280 = vpop.f32.mrf.mxu0
      %1281 = vmatprep.mubr.bf16.mxu0 0
      %1282 = vmatmul.mubr.bf16.gmra.mxu0 %v1215
      %v1283 = vpop.f32.mrf.mxu0
      %v1284 = vadd.f32 0.0, %v1283
      %v1285 = vpop.f32.mrf.mxu0
      %v1286 = vpop.f32.mrf.mxu0
      %v1287 = vadd.f32 0.0, %v1286
      %v1288 = vpop.f32.mrf.mxu0
      %1289 = vmatprep.mubr.bf16.mxu0 0
      %1290 = vmatmul.mubr.bf16.gmra.mxu0 %v1218
      %v1291 = vpop.f32.mrf.mxu0
      %v1292 = vadd.f32 0.0, %v1291
      %v1293 = vpop.f32.mrf.mxu0
      %v1294 = vpop.f32.mrf.mxu0
      %v1295 = vadd.f32 0.0, %v1294
      %v1296 = vpop.f32.mrf.mxu0
      %1297 = vmatprep.mubr.bf16.mxu0 0
      %1298 = vmatmul.mubr.bf16.gmra.mxu0 %v1221
      %v1299 = vpop.f32.mrf.mxu0
      %v1300 = vadd.f32 0.0, %v1299
      %v1301 = vpop.f32.mrf.mxu0
      %v1302 = vpop.f32.mrf.mxu0
      %v1303 = vadd.f32 0.0, %v1302
      %v1304 = vpop.f32.mrf.mxu0
      %1305 = vmatprep.mubr.bf16.mxu0 0
      %1306 = vmatmul.mubr.bf16.gmra.mxu0 %v1224
      %v1307 = vpop.f32.mrf.mxu0
      %v1308 = vadd.f32 0.0, %v1307
      %v1309 = vpop.f32.mrf.mxu0
      %v1310 = vpop.f32.mrf.mxu0
      %v1311 = vadd.f32 0.0, %v1310
      %v1312 = vpop.f32.mrf.mxu0
      %1313 = vmatprep.mubr.bf16.mxu0 0
      %1314 = vmatmul.mubr.bf16.gmra.mxu0 %v1227
      %v1315 = vpop.f32.mrf.mxu0
      %v1316 = vadd.f32 0.0, %v1315
      %v1317 = vpop.f32.mrf.mxu0
      %v1318 = vpop.f32.mrf.mxu0
      %v1319 = vadd.f32 0.0, %v1318
      %v1320 = vpop.f32.mrf.mxu0
      %1321 = vmatprep.mubr.bf16.mxu0 0
      %1322 = vmatmul.mubr.bf16.gmra.mxu0 %v1230
      %v1323 = vpop.f32.mrf.mxu0
      %v1324 = vadd.f32 0.0, %v1323
      %v1325 = vpop.f32.mrf.mxu0
      %v1326 = vpop.f32.mrf.mxu0
      %v1327 = vadd.f32 0.0, %v1326
      %v1328 = vpop.f32.mrf.mxu0
      %1329 = vmatprep.mubr.bf16.mxu0 0
      %1330 = vmatmul.mubr.bf16.gmra.mxu0 %v1233
      %v1331 = vpop.f32.mrf.mxu0
      %v1332 = vadd.f32 0.0, %v1331
      %v1333 = vpop.f32.mrf.mxu0
      %v1334 = vpop.f32.mrf.mxu0
      %v1335 = vadd.f32 0.0, %v1334
      %v1336 = vpop.f32.mrf.mxu0
      %1337 = vmatprep.mubr.bf16.mxu0 0
      %1338 = vmatmul.mubr.bf16.gmra.mxu0 %v1236
      %v1339 = vpop.f32.mrf.mxu0
      %v1340 = vadd.f32 0.0, %v1339
      %v1341 = vpop.f32.mrf.mxu0
      %v1342 = vpop.f32.mrf.mxu0
      %v1343 = vadd.f32 0.0, %v1342
      %v1344 = vpop.f32.mrf.mxu0
      %1345 = vdwg.mxu0
      %v1346 = vadd.f32 %v1171, %v1276
      %v1347 = vadd.f32 %v1172, %v1279
      %v1348 = vadd.f32 %v1173, %v1284
      %v1349 = vadd.f32 %v1174, %v1287
      %v1350 = vadd.f32 %v1175, %v1292
      %v1351 = vadd.f32 %v1176, %v1295
      %v1352 = vadd.f32 %v1177, %v1300
      %v1353 = vadd.f32 %v1178, %v1303
      %v1354 = vadd.f32 %v1179, %v1308
      %v1355 = vadd.f32 %v1180, %v1311
      %v1356 = vadd.f32 %v1181, %v1316
      %v1357 = vadd.f32 %v1182, %v1319
      %v1358 = vadd.f32 %v1183, %v1324
      %v1359 = vadd.f32 %v1184, %v1327
      %v1360 = vadd.f32 %v1185, %v1332
      %v1361 = vadd.f32 %v1186, %v1335
      %v1362 = vadd.f32 %v1187, %v1340
      %v1363 = vadd.f32 %v1188, %v1343
      %v1364 = vpack.c.bf16 %v302, %v301
      %v1365 = vpack.c.bf16 %v303, %v303
      %s1366 = scalar_lea.vmem %s252, 24
      %v1367 = vld [vmem:[%s1366] sm:$0xf]
      %v1370 = vrot.slane %v1364, 2
      %v1371 = vsel %vm1191, %v1207, %v1370
      %v1372 = vrot.slane %v1365, 2
      %v1373 = vsel %vm1191, %v1370, %v1372
      %v1375 = vsel %vm394, %v1371, 0
      %v1378 = vsel %vm394, %v1373, 0
      %v1381 = vsel %vm422, %v1367, 0
      %1383 = vmatprep.subr.bf16.mxu0 0
      %1384 = vmatpush1.bf16.msra.mxu0 0
      %1385 = vmatprep.subr.bf16.mxu0 0
      %1386 = vmatpush1.bf16.msra.mxu0 0
      %1387 = vmatprep.subr.bf16.mxu0 0
      %1388 = vmatpush1.bf16.msra.mxu0 0
      %1389 = vmatprep.subr.bf16.mxu0 0
      %1390 = vmatpush1.bf16.msra.mxu0 0
      %1391 = vmatprep.subr.bf16.mxu0 0
      %1392 = vmatpush1.bf16.msra.mxu0 0
      %1393 = vmatprep.subr.bf16.mxu0 0
      %1394 = vmatpush1.bf16.msra.mxu0 0
      %1395 = vmatprep.subr.bf16.mxu0 0
      %1396 = vmatpush1.bf16.msra.mxu0 0
      %1397 = vmatprep.subr.bf16.mxu0 0
      %1398 = vmatpush1.bf16.msra.mxu0 %v1381
      %1399 = vmatprep.subr.bf16.mxu0 0
      %1400 = vmatpush2.bf16.msra.mxu0 0
      %1401 = vmatprep.subr.bf16.mxu0 0
      %1402 = vmatpush2.bf16.msra.mxu0 0
      %1403 = vmatprep.subr.bf16.mxu0 0
      %1404 = vmatpush2.bf16.msra.mxu0 0
      %1405 = vmatprep.subr.bf16.mxu0 0
      %1406 = vmatpush2.bf16.msra.mxu0 0
      %1407 = vmatprep.subr.bf16.mxu0 0
      %1408 = vmatpush2.bf16.msra.mxu0 0
      %1409 = vmatprep.subr.bf16.mxu0 0
      %1410 = vmatpush2.bf16.msra.mxu0 0
      %1411 = vmatprep.subr.bf16.mxu0 0
      %1412 = vmatpush2.bf16.msra.mxu0 0
      %1413 = vmatprep.subr.bf16.mxu0 0
      %1414 = vmatpush2.bf16.msra.mxu0 0
      %1415 = vmatprep.mubr.bf16.mxu0 0
      %1416 = vmatmul.mubr.bf16.gmra.mxu0 %v1215
      %v1417 = vpop.f32.mrf.mxu0
      %v1418 = vadd.f32 0.0, %v1417
      %v1419 = vpop.f32.mrf.mxu0
      %v1420 = vpop.f32.mrf.mxu0
      %v1421 = vadd.f32 0.0, %v1420
      %v1422 = vpop.f32.mrf.mxu0
      %1423 = vmatprep.mubr.bf16.mxu0 0
      %1424 = vmatmul.mubr.bf16.gmra.mxu0 %v1218
      %v1425 = vpop.f32.mrf.mxu0
      %v1426 = vadd.f32 0.0, %v1425
      %v1427 = vpop.f32.mrf.mxu0
      %v1428 = vpop.f32.mrf.mxu0
      %v1429 = vadd.f32 0.0, %v1428
      %v1430 = vpop.f32.mrf.mxu0
      %1431 = vmatprep.mubr.bf16.mxu0 0
      %1432 = vmatmul.mubr.bf16.gmra.mxu0 %v1221
      %v1433 = vpop.f32.mrf.mxu0
      %v1434 = vadd.f32 0.0, %v1433
      %v1435 = vpop.f32.mrf.mxu0
      %v1436 = vpop.f32.mrf.mxu0
      %v1437 = vadd.f32 0.0, %v1436
      %v1438 = vpop.f32.mrf.mxu0
      %1439 = vmatprep.mubr.bf16.mxu0 0
      %1440 = vmatmul.mubr.bf16.gmra.mxu0 %v1224
      %v1441 = vpop.f32.mrf.mxu0
      %v1442 = vadd.f32 0.0, %v1441
      %v1443 = vpop.f32.mrf.mxu0
      %v1444 = vpop.f32.mrf.mxu0
      %v1445 = vadd.f32 0.0, %v1444
      %v1446 = vpop.f32.mrf.mxu0
      %1447 = vmatprep.mubr.bf16.mxu0 0
      %1448 = vmatmul.mubr.bf16.gmra.mxu0 %v1227
      %v1449 = vpop.f32.mrf.mxu0
      %v1450 = vadd.f32 0.0, %v1449
      %v1451 = vpop.f32.mrf.mxu0
      %v1452 = vpop.f32.mrf.mxu0
      %v1453 = vadd.f32 0.0, %v1452
      %v1454 = vpop.f32.mrf.mxu0
      %1455 = vmatprep.mubr.bf16.mxu0 0
      %1456 = vmatmul.mubr.bf16.gmra.mxu0 %v1230
      %v1457 = vpop.f32.mrf.mxu0
      %v1458 = vadd.f32 0.0, %v1457
      %v1459 = vpop.f32.mrf.mxu0
      %v1460 = vpop.f32.mrf.mxu0
      %v1461 = vadd.f32 0.0, %v1460
      %v1462 = vpop.f32.mrf.mxu0
      %1463 = vmatprep.mubr.bf16.mxu0 0
      %1464 = vmatmul.mubr.bf16.gmra.mxu0 %v1233
      %v1465 = vpop.f32.mrf.mxu0
      %v1466 = vadd.f32 0.0, %v1465
      %v1467 = vpop.f32.mrf.mxu0
      %v1468 = vpop.f32.mrf.mxu0
      %v1469 = vadd.f32 0.0, %v1468
      %v1470 = vpop.f32.mrf.mxu0
      %1471 = vmatprep.mubr.bf16.mxu0 0
      %1472 = vmatmul.mubr.bf16.gmra.mxu0 %v1375
      %v1473 = vpop.f32.mrf.mxu0
      %v1474 = vadd.f32 0.0, %v1473
      %v1475 = vpop.f32.mrf.mxu0
      %v1476 = vpop.f32.mrf.mxu0
      %v1477 = vadd.f32 0.0, %v1476
      %v1478 = vpop.f32.mrf.mxu0
      %1479 = vmatprep.mubr.bf16.mxu0 0
      %1480 = vmatmul.mubr.bf16.gmra.mxu0 %v1378
      %v1481 = vpop.f32.mrf.mxu0
      %v1482 = vadd.f32 0.0, %v1481
      %v1483 = vpop.f32.mrf.mxu0
      %v1484 = vpop.f32.mrf.mxu0
      %v1485 = vadd.f32 0.0, %v1484
      %v1486 = vpop.f32.mrf.mxu0
      %1487 = vdwg.mxu0
      %v1488 = vadd.f32 %v1346, %v1418
      %v1489 = vadd.f32 %v1347, %v1421
      %v1490 = vadd.f32 %v1348, %v1426
      %v1491 = vadd.f32 %v1349, %v1429
      %v1492 = vadd.f32 %v1350, %v1434
      %v1493 = vadd.f32 %v1351, %v1437
      %v1494 = vadd.f32 %v1352, %v1442
      %v1495 = vadd.f32 %v1353, %v1445
      %v1496 = vadd.f32 %v1354, %v1450
      %v1497 = vadd.f32 %v1355, %v1453
      %v1498 = vadd.f32 %v1356, %v1458
      %v1499 = vadd.f32 %v1357, %v1461
      %v1500 = vadd.f32 %v1358, %v1466
      %v1501 = vadd.f32 %v1359, %v1469
      %v1502 = vadd.f32 %v1360, %v1474
      %v1503 = vadd.f32 %v1361, %v1477
      %v1504 = vadd.f32 %v1362, %v1482
      %v1505 = vadd.f32 %v1363, %v1485
      %s1506 = scalar_lea.vmem %s252, 28
      %v1507 = vld [vmem:[%s1506] sm:$0xf]
      %vm1508 = vsmask.f32 5376
      %v1509 = vrot.slane %v338, 2
      %v1510 = vrot.slane %v334, 3
      %v1511 = vor.u32 %v1509, %v1510
      %v1512 = vrot.slane %v346, 2
      %v1513 = vrot.slane %v342, 3
      %v1514 = vor.u32 %v1512, %v1513
      %v1515 = vsel %vm1508, %v1511, %v1514
      %v1516 = vrot.slane %v354, 2
      %v1517 = vrot.slane %v350, 3
      %v1518 = vor.u32 %v1516, %v1517
      %v1519 = vsel %vm1508, %v1514, %v1518
      %v1520 = vrot.slane %v362, 2
      %v1521 = vrot.slane %v358, 3
      %v1522 = vor.u32 %v1520, %v1521
      %v1523 = vsel %vm1508, %v1518, %v1522
      %v1524 = vrot.slane %v370, 2
      %v1525 = vrot.slane %v366, 3
      %v1526 = vor.u32 %v1524, %v1525
      %v1527 = vsel %vm1508, %v1522, %v1526
      %v1528 = vrot.slane %v378, 2
      %v1529 = vrot.slane %v374, 3
      %v1530 = vor.u32 %v1528, %v1529
      %v1531 = vsel %vm1508, %v1526, %v1530
      %v1532 = vrot.slane %v386, 2
      %v1533 = vrot.slane %v382, 3
      %v1534 = vor.u32 %v1532, %v1533
      %v1535 = vsel %vm1508, %v1530, %v1534
      %v1536 = vrot.slane %v1019, 2
      %v1537 = vrot.slane %v1022, 3
      %v1538 = vor.u32 %v1536, %v1537
      %v1539 = vsel %vm1508, %v1534, %v1538
      %v1541 = vshrl.u32 %v1364, 16
      %v1543 = vrot.slane %v1541, 2
      %v1544 = vshll.u32 %v1364, 16
      %v1546 = vrot.slane %v1544, 3
      %v1547 = vor.u32 %v1543, %v1546
      %v1548 = vsel %vm1508, %v1538, %v1547
      %v1550 = vshrl.u32 %v1365, 16
      %v1552 = vrot.slane %v1550, 2
      %v1553 = vshll.u32 %v1365, 16
      %v1555 = vrot.slane %v1553, 3
      %v1556 = vor.u32 %v1552, %v1555
      %v1557 = vsel %vm1508, %v1547, %v1556
      %v1559 = vsel %vm394, %v1515, 0
      %v1562 = vsel %vm394, %v1519, 0
      %v1565 = vsel %vm394, %v1523, 0
      %v1568 = vsel %vm394, %v1527, 0
      %v1571 = vsel %vm394, %v1531, 0
      %v1574 = vsel %vm394, %v1535, 0
      %v1577 = vsel %vm394, %v1539, 0
      %v1580 = vsel %vm394, %v1548, 0
      %v1583 = vsel %vm394, %v1557, 0
      %v1586 = vsel %vm422, %v1507, 0
      %1588 = vmatprep.subr.bf16.mxu0 0
      %1589 = vmatpush1.bf16.msra.mxu0 0
      %1590 = vmatprep.subr.bf16.mxu0 0
      %1591 = vmatpush1.bf16.msra.mxu0 0
      %1592 = vmatprep.subr.bf16.mxu0 0
      %1593 = vmatpush1.bf16.msra.mxu0 0
      %1594 = vmatprep.subr.bf16.mxu0 0
      %1595 = vmatpush1.bf16.msra.mxu0 0
      %1596 = vmatprep.subr.bf16.mxu0 0
      %1597 = vmatpush1.bf16.msra.mxu0 0
      %1598 = vmatprep.subr.bf16.mxu0 0
      %1599 = vmatpush1.bf16.msra.mxu0 0
      %1600 = vmatprep.subr.bf16.mxu0 0
      %1601 = vmatpush1.bf16.msra.mxu0 0
      %1602 = vmatprep.subr.bf16.mxu0 0
      %1603 = vmatpush1.bf16.msra.mxu0 %v1586
      %1604 = vmatprep.subr.bf16.mxu0 0
      %1605 = vmatpush2.bf16.msra.mxu0 0
      %1606 = vmatprep.subr.bf16.mxu0 0
      %1607 = vmatpush2.bf16.msra.mxu0 0
      %1608 = vmatprep.subr.bf16.mxu0 0
      %1609 = vmatpush2.bf16.msra.mxu0 0
      %1610 = vmatprep.subr.bf16.mxu0 0
      %1611 = vmatpush2.bf16.msra.mxu0 0
      %1612 = vmatprep.subr.bf16.mxu0 0
      %1613 = vmatpush2.bf16.msra.mxu0 0
      %1614 = vmatprep.subr.bf16.mxu0 0
      %1615 = vmatpush2.bf16.msra.mxu0 0
      %1616 = vmatprep.subr.bf16.mxu0 0
      %1617 = vmatpush2.bf16.msra.mxu0 0
      %1618 = vmatprep.subr.bf16.mxu0 0
      %1619 = vmatpush2.bf16.msra.mxu0 0
      %1620 = vmatprep.mubr.bf16.mxu0 0
      %1621 = vmatmul.mubr.bf16.gmra.mxu0 %v1559
      %v1622 = vpop.f32.mrf.mxu0
      %v1623 = vadd.f32 0.0, %v1622
      %v1624 = vpop.f32.mrf.mxu0
      %v1625 = vpop.f32.mrf.mxu0
      %v1626 = vadd.f32 0.0, %v1625
      %v1627 = vpop.f32.mrf.mxu0
      %1628 = vmatprep.mubr.bf16.mxu0 0
      %1629 = vmatmul.mubr.bf16.gmra.mxu0 %v1562
      %v1630 = vpop.f32.mrf.mxu0
      %v1631 = vadd.f32 0.0, %v1630
      %v1632 = vpop.f32.mrf.mxu0
      %v1633 = vpop.f32.mrf.mxu0
      %v1634 = vadd.f32 0.0, %v1633
      %v1635 = vpop.f32.mrf.mxu0
      %1636 = vmatprep.mubr.bf16.mxu0 0
      %1637 = vmatmul.mubr.bf16.gmra.mxu0 %v1565
      %v1638 = vpop.f32.mrf.mxu0
      %v1639 = vadd.f32 0.0, %v1638
      %v1640 = vpop.f32.mrf.mxu0
      %v1641 = vpop.f32.mrf.mxu0
      %v1642 = vadd.f32 0.0, %v1641
      %v1643 = vpop.f32.mrf.mxu0
      %1644 = vmatprep.mubr.bf16.mxu0 0
      %1645 = vmatmul.mubr.bf16.gmra.mxu0 %v1568
      %v1646 = vpop.f32.mrf.mxu0
      %v1647 = vadd.f32 0.0, %v1646
      %v1648 = vpop.f32.mrf.mxu0
      %v1649 = vpop.f32.mrf.mxu0
      %v1650 = vadd.f32 0.0, %v1649
      %v1651 = vpop.f32.mrf.mxu0
      %1652 = vmatprep.mubr.bf16.mxu0 0
      %1653 = vmatmul.mubr.bf16.gmra.mxu0 %v1571
      %v1654 = vpop.f32.mrf.mxu0
      %v1655 = vadd.f32 0.0, %v1654
      %v1656 = vpop.f32.mrf.mxu0
      %v1657 = vpop.f32.mrf.mxu0
      %v1658 = vadd.f32 0.0, %v1657
      %v1659 = vpop.f32.mrf.mxu0
      %1660 = vmatprep.mubr.bf16.mxu0 0
      %1661 = vmatmul.mubr.bf16.gmra.mxu0 %v1574
      %v1662 = vpop.f32.mrf.mxu0
      %v1663 = vadd.f32 0.0, %v1662
      %v1664 = vpop.f32.mrf.mxu0
      %v1665 = vpop.f32.mrf.mxu0
      %v1666 = vadd.f32 0.0, %v1665
      %v1667 = vpop.f32.mrf.mxu0
      %1668 = vmatprep.mubr.bf16.mxu0 0
      %1669 = vmatmul.mubr.bf16.gmra.mxu0 %v1577
      %v1670 = vpop.f32.mrf.mxu0
      %v1671 = vadd.f32 0.0, %v1670
      %v1672 = vpop.f32.mrf.mxu0
      %v1673 = vpop.f32.mrf.mxu0
      %v1674 = vadd.f32 0.0, %v1673
      %v1675 = vpop.f32.mrf.mxu0
      %1676 = vmatprep.mubr.bf16.mxu0 0
      %1677 = vmatmul.mubr.bf16.gmra.mxu0 %v1580
      %v1678 = vpop.f32.mrf.mxu0
      %v1679 = vadd.f32 0.0, %v1678
      %v1680 = vpop.f32.mrf.mxu0
      %v1681 = vpop.f32.mrf.mxu0
      %v1682 = vadd.f32 0.0, %v1681
      %v1683 = vpop.f32.mrf.mxu0
      %1684 = vmatprep.mubr.bf16.mxu0 0
      %1685 = vmatmul.mubr.bf16.gmra.mxu0 %v1583
      %v1686 = vpop.f32.mrf.mxu0
      %v1687 = vadd.f32 0.0, %v1686
      %v1688 = vpop.f32.mrf.mxu0
      %v1689 = vpop.f32.mrf.mxu0
      %v1690 = vadd.f32 0.0, %v1689
      %v1691 = vpop.f32.mrf.mxu0
      %1692 = vdwg.mxu0
      %v1693 = vadd.f32 %v1488, %v1623
      %v1694 = vadd.f32 %v1489, %v1626
      %v1695 = vadd.f32 %v1490, %v1631
      %v1696 = vadd.f32 %v1491, %v1634
      %v1697 = vadd.f32 %v1492, %v1639
      %v1698 = vadd.f32 %v1493, %v1642
      %v1699 = vadd.f32 %v1494, %v1647
      %v1700 = vadd.f32 %v1495, %v1650
      %v1701 = vadd.f32 %v1496, %v1655
      %v1702 = vadd.f32 %v1497, %v1658
      %v1703 = vadd.f32 %v1498, %v1663
      %v1704 = vadd.f32 %v1499, %v1666
      %v1705 = vadd.f32 %v1500, %v1671
      %v1706 = vadd.f32 %v1501, %v1674
      %v1707 = vadd.f32 %v1502, %v1679
      %v1708 = vadd.f32 %v1503, %v1682
      %v1709 = vadd.f32 %v1504, %v1687
      %v1710 = vadd.f32 %v1505, %v1690
      %s1711 = scalar_lea.vmem %s252, 32
      %v1712 = vld [vmem:[%s1711] sm:$0xf]
      %vm1713 = vcmask 1044480
      %v1714 = vrot.slane %v306, 3
      %v1715 = vrot.slane %v307, 3
      %v1716 = vsel %vm1713, %v1714, %v1715
      %v1717 = vrot.slane %v308, 3
      %v1718 = vsel %vm1713, %v1715, %v1717
      %v1719 = vrot.slane %v309, 3
      %v1720 = vsel %vm1713, %v1717, %v1719
      %v1721 = vrot.slane %v310, 3
      %v1722 = vsel %vm1713, %v1719, %v1721
      %v1723 = vrot.slane %v311, 3
      %v1724 = vsel %vm1713, %v1721, %v1723
      %v1725 = vrot.slane %v312, 3
      %v1726 = vsel %vm1713, %v1723, %v1725
      %v1727 = vrot.slane %v842, 3
      %v1728 = vsel %vm1713, %v1725, %v1727
      %v1729 = vrot.slane %v1364, 3
      %v1730 = vsel %vm1713, %v1727, %v1729
      %v1731 = vrot.slane %v1365, 3
      %v1732 = vsel %vm1713, %v1729, %v1731
      %v1734 = vsel %vm394, %v1716, 0
      %v1737 = vsel %vm394, %v1718, 0
      %v1740 = vsel %vm394, %v1720, 0
      %v1743 = vsel %vm394, %v1722, 0
      %v1746 = vsel %vm394, %v1724, 0
      %v1749 = vsel %vm394, %v1726, 0
      %v1752 = vsel %vm394, %v1728, 0
      %v1755 = vsel %vm394, %v1730, 0
      %v1758 = vsel %vm394, %v1732, 0
      %v1761 = vsel %vm422, %v1712, 0
      %1763 = vmatprep.subr.bf16.mxu0 0
      %1764 = vmatpush1.bf16.msra.mxu0 0
      %1765 = vmatprep.subr.bf16.mxu0 0
      %1766 = vmatpush1.bf16.msra.mxu0 0
      %1767 = vmatprep.subr.bf16.mxu0 0
      %1768 = vmatpush1.bf16.msra.mxu0 0
      %1769 = vmatprep.subr.bf16.mxu0 0
      %1770 = vmatpush1.bf16.msra.mxu0 0
      %1771 = vmatprep.subr.bf16.mxu0 0
      %1772 = vmatpush1.bf16.msra.mxu0 0
      %1773 = vmatprep.subr.bf16.mxu0 0
      %1774 = vmatpush1.bf16.msra.mxu0 0
      %1775 = vmatprep.subr.bf16.mxu0 0
      %1776 = vmatpush1.bf16.msra.mxu0 0
      %1777 = vmatprep.subr.bf16.mxu0 0
      %1778 = vmatpush1.bf16.msra.mxu0 %v1761
      %1779 = vmatprep.subr.bf16.mxu0 0
      %1780 = vmatpush2.bf16.msra.mxu0 0
      %1781 = vmatprep.subr.bf16.mxu0 0
      %1782 = vmatpush2.bf16.msra.mxu0 0
      %1783 = vmatprep.subr.bf16.mxu0 0
      %1784 = vmatpush2.bf16.msra.mxu0 0
      %1785 = vmatprep.subr.bf16.mxu0 0
      %1786 = vmatpush2.bf16.msra.mxu0 0
      %1787 = vmatprep.subr.bf16.mxu0 0
      %1788 = vmatpush2.bf16.msra.mxu0 0
      %1789 = vmatprep.subr.bf16.mxu0 0
      %1790 = vmatpush2.bf16.msra.mxu0 0
      %1791 = vmatprep.subr.bf16.mxu0 0
      %1792 = vmatpush2.bf16.msra.mxu0 0
      %1793 = vmatprep.subr.bf16.mxu0 0
      %1794 = vmatpush2.bf16.msra.mxu0 0
      %1795 = vmatprep.mubr.bf16.mxu0 0
      %1796 = vmatmul.mubr.bf16.gmra.mxu0 %v1734
      %v1797 = vpop.f32.mrf.mxu0
      %v1798 = vadd.f32 0.0, %v1797
      %v1799 = vpop.f32.mrf.mxu0
      %v1800 = vpop.f32.mrf.mxu0
      %v1801 = vadd.f32 0.0, %v1800
      %v1802 = vpop.f32.mrf.mxu0
      %1803 = vmatprep.mubr.bf16.mxu0 0
      %1804 = vmatmul.mubr.bf16.gmra.mxu0 %v1737
      %v1805 = vpop.f32.mrf.mxu0
      %v1806 = vadd.f32 0.0, %v1805
      %v1807 = vpop.f32.mrf.mxu0
      %v1808 = vpop.f32.mrf.mxu0
      %v1809 = vadd.f32 0.0, %v1808
      %v1810 = vpop.f32.mrf.mxu0
      %1811 = vmatprep.mubr.bf16.mxu0 0
      %1812 = vmatmul.mubr.bf16.gmra.mxu0 %v1740
      %v1813 = vpop.f32.mrf.mxu0
      %v1814 = vadd.f32 0.0, %v1813
      %v1815 = vpop.f32.mrf.mxu0
      %v1816 = vpop.f32.mrf.mxu0
      %v1817 = vadd.f32 0.0, %v1816
      %v1818 = vpop.f32.mrf.mxu0
      %1819 = vmatprep.mubr.bf16.mxu0 0
      %1820 = vmatmul.mubr.bf16.gmra.mxu0 %v1743
      %v1821 = vpop.f32.mrf.mxu0
      %v1822 = vadd.f32 0.0, %v1821
      %v1823 = vpop.f32.mrf.mxu0
      %v1824 = vpop.f32.mrf.mxu0
      %v1825 = vadd.f32 0.0, %v1824
      %v1826 = vpop.f32.mrf.mxu0
      %1827 = vmatprep.mubr.bf16.mxu0 0
      %1828 = vmatmul.mubr.bf16.gmra.mxu0 %v1746
      %v1829 = vpop.f32.mrf.mxu0
      %v1830 = vadd.f32 0.0, %v1829
      %v1831 = vpop.f32.mrf.mxu0
      %v1832 = vpop.f32.mrf.mxu0
      %v1833 = vadd.f32 0.0, %v1832
      %v1834 = vpop.f32.mrf.mxu0
      %1835 = vmatprep.mubr.bf16.mxu0 0
      %1836 = vmatmul.mubr.bf16.gmra.mxu0 %v1749
      %v1837 = vpop.f32.mrf.mxu0
      %v1838 = vadd.f32 0.0, %v1837
      %v1839 = vpop.f32.mrf.mxu0
      %v1840 = vpop.f32.mrf.mxu0
      %v1841 = vadd.f32 0.0, %v1840
      %v1842 = vpop.f32.mrf.mxu0
      %1843 = vmatprep.mubr.bf16.mxu0 0
      %1844 = vmatmul.mubr.bf16.gmra.mxu0 %v1752
      %v1845 = vpop.f32.mrf.mxu0
      %v1846 = vadd.f32 0.0, %v1845
      %v1847 = vpop.f32.mrf.mxu0
      %v1848 = vpop.f32.mrf.mxu0
      %v1849 = vadd.f32 0.0, %v1848
      %v1850 = vpop.f32.mrf.mxu0
      %1851 = vmatprep.mubr.bf16.mxu0 0
      %1852 = vmatmul.mubr.bf16.gmra.mxu0 %v1755
      %v1853 = vpop.f32.mrf.mxu0
      %v1854 = vadd.f32 0.0, %v1853
      %v1855 = vpop.f32.mrf.mxu0
      %v1856 = vpop.f32.mrf.mxu0
      %v1857 = vadd.f32 0.0, %v1856
      %v1858 = vpop.f32.mrf.mxu0
      %1859 = vmatprep.mubr.bf16.mxu0 0
      %1860 = vmatmul.mubr.bf16.gmra.mxu0 %v1758
      %v1861 = vpop.f32.mrf.mxu0
      %v1862 = vadd.f32 0.0, %v1861
      %v1863 = vpop.f32.mrf.mxu0
      %v1864 = vpop.f32.mrf.mxu0
      %v1865 = vadd.f32 0.0, %v1864
      %v1866 = vpop.f32.mrf.mxu0
      %1867 = vdwg.mxu0
      %v1868 = vadd.f32 %v1693, %v1798
      %v1869 = vadd.f32 %v1694, %v1801
      %v1870 = vadd.f32 %v1695, %v1806
      %v1871 = vadd.f32 %v1696, %v1809
      %v1872 = vadd.f32 %v1697, %v1814
      %v1873 = vadd.f32 %v1698, %v1817
      %v1874 = vadd.f32 %v1699, %v1822
      %v1875 = vadd.f32 %v1700, %v1825
      %v1876 = vadd.f32 %v1701, %v1830
      %v1877 = vadd.f32 %v1702, %v1833
      %v1878 = vadd.f32 %v1703, %v1838
      %v1879 = vadd.f32 %v1704, %v1841
      %v1880 = vadd.f32 %v1705, %v1846
      %v1881 = vadd.f32 %v1706, %v1849
      %v1882 = vadd.f32 %v1707, %v1854
      %v1883 = vadd.f32 %v1708, %v1857
      %v1884 = vadd.f32 %v1709, %v1862
      %v1885 = vadd.f32 %v1710, %v1865
      %s1886 = sld [smem:[#allocation2]]
      %v1887 = vstv %s1886
      %v1888 = vmul.f32 %v1868, %v1887
      %v1889 = vmul.f32 %v1869, %v1887
      %v1890 = vmul.f32 %v1870, %v1887
      %v1891 = vmul.f32 %v1871, %v1887
      %v1892 = vmul.f32 %v1872, %v1887
      %v1893 = vmul.f32 %v1873, %v1887
      %v1894 = vmul.f32 %v1874, %v1887
      %v1895 = vmul.f32 %v1875, %v1887
      %v1896 = vmul.f32 %v1876, %v1887
      %v1897 = vmul.f32 %v1877, %v1887
      %v1898 = vmul.f32 %v1878, %v1887
      %v1899 = vmul.f32 %v1879, %v1887
      %v1900 = vmul.f32 %v1880, %v1887
      %v1901 = vmul.f32 %v1881, %v1887
      %v1902 = vmul.f32 %v1882, %v1887
      %v1903 = vmul.f32 %v1883, %v1887
      %v1904 = vmul.f32 %v1884, %v1887
      %v1905 = vmul.f32 %v1885, %v1887
      %v1906 = vld [vmem:[%s266] sm:$0xff]
      %v1907 = vld [vmem:[%s266 + $0x8] sm:$0xff]
      %v1908 = vld [vmem:[%s266 + $0x10] sm:$0xff]
      %v1909 = vld [vmem:[%s266 + $0x18] sm:$0xff]
      %v1910 = vld [vmem:[%s266 + $0x20] sm:$0xff]
      %v1911 = vld [vmem:[%s266 + $0x28] sm:$0xff]
      %v1912 = vld [vmem:[%s266 + $0x30] sm:$0xff]
      %v1913 = vld [vmem:[%s266 + $0x38] sm:$0xff]
      %v1914 = vld [vmem:[%s266 + $0x40] sm:$0xff]
      %v1915 = vld [vmem:[%s266 + $0x48] sm:$0xff]
      %v1916 = vld [vmem:[%s266 + $0x50] sm:$0xff]
      %v1917 = vld [vmem:[%s266 + $0x58] sm:$0xff]
      %v1918 = vld [vmem:[%s266 + $0x60] sm:$0xff]
      %v1919 = vld [vmem:[%s266 + $0x68] sm:$0xff]
      %v1920 = vld [vmem:[%s266 + $0x70] sm:$0xff]
      %v1921 = vld [vmem:[%s266 + $0x78] sm:$0xff]
      %v1922 = vld [vmem:[%s266 + $0x80] sm:$0xff]
      %v1923 = vld [vmem:[%s266 + $0x88] sm:$0xff]
      %v1924 = vadd.f32 %v1888, %v1906
      %v1925 = vadd.f32 %v1889, %v1907
      %v1926 = vadd.f32 %v1890, %v1908
      %v1927 = vadd.f32 %v1891, %v1909
      %v1928 = vadd.f32 %v1892, %v1910
      %v1929 = vadd.f32 %v1893, %v1911
      %v1930 = vadd.f32 %v1894, %v1912
      %v1931 = vadd.f32 %v1895, %v1913
      %v1932 = vadd.f32 %v1896, %v1914
      %v1933 = vadd.f32 %v1897, %v1915
      %v1934 = vadd.f32 %v1898, %v1916
      %v1935 = vadd.f32 %v1899, %v1917
      %v1936 = vadd.f32 %v1900, %v1918
      %v1937 = vadd.f32 %v1901, %v1919
      %v1938 = vadd.f32 %v1902, %v1920
      %v1939 = vadd.f32 %v1903, %v1921
      %v1940 = vadd.f32 %v1904, %v1922
      %v1941 = vadd.f32 %v1905, %v1923
      %1942 = vst.msk [vmem:[%s276] sm:$0xff] %vm394, %v1924
      %1943 = vst.msk [vmem:[%s276 + $0x8] sm:$0xff] %vm394, %v1925
      %1944 = vst.msk [vmem:[%s276 + $0x10] sm:$0xff] %vm394, %v1926
      %1945 = vst.msk [vmem:[%s276 + $0x18] sm:$0xff] %vm394, %v1927
      %1946 = vst.msk [vmem:[%s276 + $0x20] sm:$0xff] %vm394, %v1928
      %1947 = vst.msk [vmem:[%s276 + $0x28] sm:$0xff] %vm394, %v1929
      %1948 = vst.msk [vmem:[%s276 + $0x30] sm:$0xff] %vm394, %v1930
      %1949 = vst.msk [vmem:[%s276 + $0x38] sm:$0xff] %vm394, %v1931
      %1950 = vst.msk [vmem:[%s276 + $0x40] sm:$0xff] %vm394, %v1932
      %1951 = vst.msk [vmem:[%s276 + $0x48] sm:$0xff] %vm394, %v1933
      %1952 = vst.msk [vmem:[%s276 + $0x50] sm:$0xff] %vm394, %v1934
      %1953 = vst.msk [vmem:[%s276 + $0x58] sm:$0xff] %vm394, %v1935
      %1954 = vst.msk [vmem:[%s276 + $0x60] sm:$0xff] %vm394, %v1936
      %1955 = vst.msk [vmem:[%s276 + $0x68] sm:$0xff] %vm394, %v1937
      %1956 = vst.msk [vmem:[%s276 + $0x70] sm:$0xff] %vm394, %v1938
      %1957 = vst.msk [vmem:[%s276 + $0x78] sm:$0xff] %vm394, %v1939
      %1958 = vst.msk [vmem:[%s276 + $0x80] sm:$0xff] %vm394, %v1940
      %1959 = vst.msk [vmem:[%s276 + $0x88] sm:$0xff] %vm394, %v1941
      %s1960 = smul.u32 18, %s21
      %p1961 = scmp.lt.s32.totalorder %s20, 1
      %s1962 = scalar_select %p1961, %s20, 1
      %p1963 = scmp.lt.s32.totalorder %s1960, 35
      %s1964 = scalar_select %p1963, %s1960, 35
      %s1965 = smul.addr %s1962, 36
      %s1966 = sadd.s32 %s1964, %s1965
      %s1967 = smul.addr %s1966, 8
      %s1968 = scalar_lea.vmem %s4, %s1967
      // Predicated region
      $region37: #{crab_layer_forward.3} parent=35 // pred_check
        %p1969 = pneg %p149
      $region38: #{crab_layer_forward.3} parent=35 // pred_check_branch
        %1971 = sbr.rel (%p1969) target = $region40
      $region39: #{crab_layer_forward.3} parent=35 // pred_region
        %s1972 = smul.u32 18, %s21
      $region40: #{crab_layer_forward.3} parent=35 // pred_fallthru
        _
    $region36: #{crab_layer_forward.3} parent=5 // pred_fallthru
      _
    %p1973 = scmp.le.s32.totalorder 2, %s11
    // Predicated region
    $region41: #{crab_layer_forward.3} parent=5 // pred_check
      %p1974 = pneg %p1973
    $region42: #{crab_layer_forward.3} parent=5 // pred_check_branch
      %1976 = sbr.rel (%p1974) target = $region44
    $region43: #{crab_layer_forward.3} parent=5 // pred_region
      %s1977 = ssub.s32 %s11, 2
      // Predicated region
      $region45: #{crab_layer_forward.3} parent=43 // pred_check
        %p1978 = pneg %p155
      $region46: #{crab_layer_forward.3} parent=43 // pred_check_branch
        %1980 = sbr.rel (%p1978) target = $region48
      $region47: #{crab_layer_forward.3} parent=43 // pred_region
        %s1981 = smul.u32 18, %s23
        %p1982 = scmp.lt.s32.totalorder %s22, 1
        %s1983 = scalar_select %p1982, %s22, 1
        %p1984 = scmp.lt.s32.totalorder %s1981, 35
        %s1985 = scalar_select %p1984, %s1981, 35
        %s1986 = smul.addr %s1983, 36
        %s1987 = sadd.s32 %s1985, %s1986
        %s1988 = smul.addr %s1987, 8
        %s1989 = scalar_lea.vmem %s4, %s1988
      $region48: #{crab_layer_forward.3} parent=43 // pred_fallthru
        _
    $region44: #{crab_layer_forward.3} parent=5 // pred_fallthru
      _
  $region6: #{crab_layer_forward.3} parent=0 // loop_footer
    %s15 = sadd.s32 1, %s11
  $region7: #{crab_layer_forward.3} parent=0 // loop_footer_branch
    %10 = sbr.rel target = $region3
  $region8: #{crab_layer_forward.3} parent=0 // loop_exit
    _

// kernel: crab_layer_forward.2
$region0: #{crab_layer_forward.2}
  #allocation0 [shape = 'u32[]', space=smem, size = 0x4, offset = 0x4, fixed_abs, tag = 'smem constant byte address 0x4 - core index']
  #allocation1 [shape = 'u32[144,128]{1,0:T(1,128)}', space=vmem, size = 0x12000, scoped, tag = 'internal scratch']
  %s0 = inlined_call_operand.vmem [shape: bf16[2,9,8,8], index: 0, kind: input, shape index: {}]
  %s1 = inlined_call_operand.vmem [shape: f32[2,342,8], index: 1, kind: input, shape index: {}]
  %s2 = inlined_call_operand.vmem [shape: f32[2,288,8], index: 2, kind: output, shape index: {}]
  %s3 = sld [smem:[#allocation0]]
  $region41: #{crab_layer_forward.2} parent=0
    _
  %s5 = ssub.s32 1, %s3
  %s6 = scalar_select 0, %s5, %s3
  loop: start=0, step=1, limit=6
  $region2: #{crab_layer_forward.2} parent=0 // loop_pre_header
    _
  $region3: #{crab_layer_forward.2} parent=0 // loop_header
    %s8 = sphi 0, %s12
    %p9 = scmp.ge.s32.totalorder %s8, 6
    %s15 = sphi 0, %s27
    %s16 = sphi 0, %s23
    %s17 = sphi 0, %s15
    %s18 = sphi 0, %s16
    %s19 = sphi 0, %s17
    %s20 = sphi 0, %s18
    %s30 = sphi 0, %s32
    %s33 = sphi 0, %s30
    %s34 = sphi 0, %s33
    %s50 = sphi 0, %s34
    %s56 = sphi 0, %s58
    %s59 = sphi 0, %s56
    %s60 = sphi 0, %s59
    %s76 = sphi 0, %s60
    %s84 = sphi 0, %s86
    %s87 = sphi 0, %s84
    %s88 = sphi 0, %s87
    %s104 = sphi 0, %s88
  $region4: #{crab_layer_forward.2} parent=0 // loop_header_branch
    %11 = sbr.rel (%p9) target = $region8
  $region5: #{crab_layer_forward.2} parent=0 // loop_body
    %s13 = ssub.s32 %s8, 1
    %s14 = ssub.s32 %s8, 2
    %s21 = sadd.s32 1, %s16
    %p22 = scmp.ge.s32.totalorder %s21, 2
    %s23 = scalar_select %p22, 0, %s21
    %s24 = sadd.s32 1, %s15
    %s25 = scalar_select %p22, %s24, %s15
    %p26 = scmp.ge.s32.totalorder %s25, 2
    %s27 = scalar_select %p26, 0, %s25
    %s28 = ssub.s32 %s15, %s27
    %p29 = scmp.eq.s32.totalorder %s28, 0
    %s31 = sadd.s32 %s30, 1
    %s32 = scalar_select %p29, %s30, %s31
    %p35 = pneg %p29
    %p36 = scmp.eq.s32.totalorder %s8, 3
    %p37 = por %p35, %p36
    %p38 = scmp.ne.s32.totalorder %s30, %s33
    %p39 = scmp.eq.s32.totalorder %s8, 0
    %p40 = por %p38, %p39
    %p41 = scmp.ne.s32.totalorder %s30, %s33
    %p42 = scmp.eq.s32.totalorder %s13, 3
    %p43 = por %p41, %p42
    %p44 = scmp.ne.s32.totalorder %s33, %s34
    %p45 = scmp.eq.s32.totalorder %s13, 0
    %p46 = por %p44, %p45
    %p47 = scmp.ne.s32.totalorder %s33, %s34
    %p48 = scmp.eq.s32.totalorder %s14, 3
    %p49 = por %p47, %p48
    %p51 = scmp.ne.s32.totalorder %s34, %s50
    %p52 = scmp.eq.s32.totalorder %s14, 0
    %p53 = por %p51, %p52
    %s54 = ssub.s32 %s15, %s27
    %p55 = scmp.eq.s32.totalorder %s54, 0
    %s57 = sadd.s32 %s56, 1
    %s58 = scalar_select %p55, %s56, %s57
    %p61 = pneg %p55
    %p62 = scmp.eq.s32.totalorder %s8, 3
    %p63 = por %p61, %p62
    %p64 = scmp.ne.s32.totalorder %s56, %s59
    %p65 = scmp.eq.s32.totalorder %s8, 0
    %p66 = por %p64, %p65
    %p67 = scmp.ne.s32.totalorder %s56, %s59
    %p68 = scmp.eq.s32.totalorder %s13, 3
    %p69 = por %p67, %p68
    %p70 = scmp.ne.s32.totalorder %s59, %s60
    %p71 = scmp.eq.s32.totalorder %s13, 0
    %p72 = por %p70, %p71
    %p73 = scmp.ne.s32.totalorder %s59, %s60
    %p74 = scmp.eq.s32.totalorder %s14, 3
    %p75 = por %p73, %p74
    %p77 = scmp.ne.s32.totalorder %s60, %s76
    %p78 = scmp.eq.s32.totalorder %s14, 0
    %p79 = por %p77, %p78
    %s80 = ssub.s32 %s15, %s27
    %s81 = ssub.s32 %s16, %s23
    %s82 = sor.u32 %s80, %s81
    %p83 = scmp.eq.s32.totalorder %s82, 0
    %s85 = sadd.s32 %s84, 1
    %s86 = scalar_select %p83, %s84, %s85
    %p89 = pneg %p83
    %p90 = scmp.eq.s32.totalorder %s8, 3
    %p91 = por %p89, %p90
    %p92 = scmp.ne.s32.totalorder %s84, %s87
    %p93 = scmp.eq.s32.totalorder %s8, 0
    %p94 = por %p92, %p93
    %p95 = scmp.ne.s32.totalorder %s84, %s87
    %p96 = scmp.eq.s32.totalorder %s13, 3
    %p97 = por %p95, %p96
    %p98 = scmp.ne.s32.totalorder %s87, %s88
    %p99 = scmp.eq.s32.totalorder %s13, 0
    %p100 = por %p98, %p99
    %p101 = scmp.ne.s32.totalorder %s87, %s88
    %p102 = scmp.eq.s32.totalorder %s14, 3
    %p103 = por %p101, %p102
    %p105 = scmp.ne.s32.totalorder %s88, %s104
    %p106 = scmp.eq.s32.totalorder %s14, 0
    %p107 = por %p105, %p106
    %p108 = scmp.le.s32.totalorder 1, %s8
    %p109 = scmp.lt.s32.totalorder %s8, 5
    %p110 = pnand %p108, %p109
    %p111 = pneg %p110
    // Predicated region
    $region9: #{crab_layer_forward.2} parent=5 // pred_check
      _
    $region10: #{crab_layer_forward.2} parent=5 // pred_check_branch
      %113 = sbr.rel (%p110) target = $region12
    $region11: #{crab_layer_forward.2} parent=5 // pred_region
      %s114 = ssub.s32 %s8, 1
    $region12: #{crab_layer_forward.2} parent=5 // pred_fallthru
      _
    %p115 = scmp.lt.s32.totalorder %s8, 4
    // Predicated region
    $region13: #{crab_layer_forward.2} parent=5 // pred_check
      %p116 = pneg %p115
    $region14: #{crab_layer_forward.2} parent=5 // pred_check_branch
      %118 = sbr.rel (%p116) target = $region16
    $region15: #{crab_layer_forward.2} parent=5 // pred_region
      // Predicated region
      $region17: #{crab_layer_forward.2} parent=15 // pred_check
        %p119 = pneg %p40
      $region18: #{crab_layer_forward.2} parent=15 // pred_check_branch
        %121 = sbr.rel (%p119) target = $region20
      $region19: #{crab_layer_forward.2} parent=15 // pred_region
        %p122 = scmp.lt.s32.totalorder %s15, 1
        %s123 = scalar_select %p122, %s15, 1
        %s124 = smul.addr %s123, 9
        %s125 = smul.addr %s124, 4
        %s126 = scalar_lea.vmem %s0, %s125
      $region20: #{crab_layer_forward.2} parent=15 // pred_fallthru
        _
      // Predicated region
      $region21: #{crab_layer_forward.2} parent=15 // pred_check
        %p127 = pneg %p66
      $region22: #{crab_layer_forward.2} parent=15 // pred_check_branch
        %129 = sbr.rel (%p127) target = $region24
      $region23: #{crab_layer_forward.2} parent=15 // pred_region
        %p130 = scmp.lt.s32.totalorder %s15, 1
        %s131 = scalar_select %p130, %s15, 1
        %s132 = smul.addr %s131, 43
        %s133 = smul.addr %s132, 8
        %s134 = scalar_lea.vmem %s1, %s133
      $region24: #{crab_layer_forward.2} parent=15 // pred_fallthru
        _
    $region16: #{crab_layer_forward.2} parent=5 // pred_fallthru
      _
    %p135 = scmp.le.s32.totalorder 1, %s8
    %p136 = scmp.lt.s32.totalorder %s8, 5
    %p137 = pnand %p135, %p136
    %p138 = pneg %p137
    // Predicated region
    $region25: #{crab_layer_forward.2} parent=5 // pred_check
      _
    $region26: #{crab_layer_forward.2} parent=5 // pred_check_branch
      %140 = sbr.rel (%p137) target = $region28
    $region27: #{crab_layer_forward.2} parent=5 // pred_region
      %s141 = ssub.s32 %s8, 1
      %p142 = scmp.lt.s32.totalorder %s17, 1
      %s143 = scalar_select %p142, %s17, 1
      %s144 = smul.addr %s143, 9
      %s145 = smul.addr %s144, 4
      %s146 = scalar_lea.vmem %s0, %s145
      %p147 = pneg %p46
      %p148 = pneg %p43
      %p149 = scmp.lt.s32.totalorder %s17, 1
      %s150 = scalar_select %p149, %s17, 1
      %s151 = smul.addr %s150, 43
      %s152 = smul.addr %s151, 8
      %s153 = scalar_lea.vmem %s1, %s152
      %p154 = pneg %p72
      %p155 = pneg %p69
      %p156 = pneg %p100
      %p157 = pneg %p97
      %s158 = smul.u32 18, %s18
      %p159 = scmp.lt.s32.totalorder %s17, 1
      %s160 = scalar_select %p159, %s17, 1
      %p161 = scmp.lt.s32.totalorder %s158, 35
      %s162 = scalar_select %p161, %s158, 35
      %s163 = smul.addr %s160, 36
      %s164 = sadd.s32 %s162, %s163
      %s165 = smul.addr %s164, 8
      %s166 = scalar_lea.vmem %s2, %s165
      %p167 = scmp.lt.s32.totalorder %s17, 1
      %s168 = scalar_select %p167, %s17, 1
      %s169 = smul.addr %s168, 9
      %s170 = smul.addr %s169, 4
      %s171 = scalar_lea.vmem %s0, %s170
      %p172 = scmp.lt.s32.totalorder %s17, 1
      %s173 = scalar_select %p172, %s17, 1
      %s174 = smul.addr %s173, 43
      %s175 = smul.addr %s174, 8
      %s176 = scalar_lea.vmem %s1, %s175
      %s177 = smul.u32 18, %s18
      %p178 = scmp.lt.s32.totalorder %s17, 1
      %s179 = scalar_select %p178, %s17, 1
      %p180 = scmp.lt.s32.totalorder %s177, 35
      %s181 = scalar_select %p180, %s177, 35
      %s182 = smul.addr %s179, 36
      %s183 = sadd.s32 %s181, %s182
      %s184 = smul.addr %s183, 8
      %s185 = scalar_lea.vmem %s2, %s184
      %s186 = smul.u32 18, %s18
      %s188 = smul.u32 %s18, 144
      %s189 = scalar_lea.vmem %s176, %s188
      %v190 = vld [vmem:[%s189] sm:$0xff]
      %v191 = vld [vmem:[%s189 + $0x8] sm:$0xff]
      %v192 = vld [vmem:[%s189 + $0x10] sm:$0xff]
      %v193 = vld [vmem:[%s189 + $0x18] sm:$0xff]
      %v194 = vld [vmem:[%s189 + $0x20] sm:$0xff]
      %v195 = vld [vmem:[%s189 + $0x28] sm:$0xff]
      %v196 = vld [vmem:[%s189 + $0x30] sm:$0xff]
      %v197 = vld [vmem:[%s189 + $0x38] sm:$0xff]
      %v198 = vld [vmem:[%s189 + $0x40] sm:$0xff]
      %v199 = vld [vmem:[%s189 + $0x48] sm:$0xff]
      %v200 = vld [vmem:[%s189 + $0x50] sm:$0xff]
      %v201 = vld [vmem:[%s189 + $0x58] sm:$0xff]
      %v202 = vld [vmem:[%s189 + $0x60] sm:$0xff]
      %v203 = vld [vmem:[%s189 + $0x68] sm:$0xff]
      %v204 = vld [vmem:[%s189 + $0x70] sm:$0xff]
      %v205 = vld [vmem:[%s189 + $0x78] sm:$0xff]
      %v206 = vld [vmem:[%s189 + $0x80] sm:$0xff]
      %v207 = vld [vmem:[%s189 + $0x88] sm:$0xff]
      %v208 = vld [vmem:[%s189 + $0x90] sm:$0xff]
      %v209 = vld [vmem:[%s189 + $0x98] sm:$0xff]
      %v210 = vld [vmem:[%s189 + $0xa0] sm:$0xff]
      %v211 = vld [vmem:[%s189 + $0xa8] sm:$0xff]
      %v212 = vld [vmem:[%s189 + $0xb0] sm:$0x3f]
      %v213 = vpack.c.bf16 %v191, %v190
      %v214 = vpack.c.bf16 %v193, %v192
      %v215 = vpack.c.bf16 %v195, %v194
      %v216 = vpack.c.bf16 %v197, %v196
      %v217 = vpack.c.bf16 %v199, %v198
      %v218 = vpack.c.bf16 %v201, %v200
      %v219 = vpack.c.bf16 %v203, %v202
      %v220 = vpack.c.bf16 %v205, %v204
      %v221 = vpack.c.bf16 %v207, %v206
      %v222 = vld [vmem:[%s171] sm:$0xf]
      %v223 = vpack.c.bf16 %v208, %v208
      %s224 = scalar_lea.vmem %s171, 4
      %v225 = vld [vmem:[%s224] sm:$0xf]
      %vm226 = vsmask.f32 7424
      %v228 = vshrl.u32 %v213, 16
      %v230 = vshll.u32 %v213, 16
      %v232 = vrot.slane %v230, 1
      %v233 = vor.u32 %v228, %v232
      %v235 = vshll.u32 %v214, 16
      %v237 = vrot.slane %v235, 1
      %v238 = vsel %vm226, %v233, %v237
      %v239 = vshrl.u32 %v214, 16
      %v241 = vor.u32 %v239, %v237
      %v243 = vshll.u32 %v215, 16
      %v245 = vrot.slane %v243, 1
      %v246 = vsel %vm226, %v241, %v245
      %v247 = vshrl.u32 %v215, 16
      %v249 = vor.u32 %v247, %v245
      %v251 = vshll.u32 %v216, 16
      %v253 = vrot.slane %v251, 1
      %v254 = vsel %vm226, %v249, %v253
      %v255 = vshrl.u32 %v216, 16
      %v257 = vor.u32 %v255, %v253
      %v259 = vshll.u32 %v217, 16
      %v261 = vrot.slane %v259, 1
      %v262 = vsel %vm226, %v257, %v261
      %v263 = vshrl.u32 %v217, 16
      %v265 = vor.u32 %v263, %v261
      %v267 = vshll.u32 %v218, 16
      %v269 = vrot.slane %v267, 1
      %v270 = vsel %vm226, %v265, %v269
      %v271 = vshrl.u32 %v218, 16
      %v273 = vor.u32 %v271, %v269
      %v275 = vshll.u32 %v219, 16
      %v277 = vrot.slane %v275, 1
      %v278 = vsel %vm226, %v273, %v277
      %v279 = vshrl.u32 %v219, 16
      %v281 = vor.u32 %v279, %v277
      %v283 = vshll.u32 %v220, 16
      %v285 = vrot.slane %v283, 1
      %v286 = vsel %vm226, %v281, %v285
      %v287 = vshrl.u32 %v220, 16
      %v289 = vor.u32 %v287, %v285
      %v291 = vshll.u32 %v221, 16
      %v293 = vrot.slane %v291, 1
      %v294 = vsel %vm226, %v289, %v293
      %v295 = vshrl.u32 %v221, 16
      %v297 = vor.u32 %v295, %v293
      %v299 = vshll.u32 %v223, 16
      %v301 = vrot.slane %v299, 1
      %v302 = vsel %vm226, %v297, %v301
      %vm303 = vcmask 64512
      %v305 = vsel %vm303, %v238, 0
      %v308 = vsel %vm303, %v246, 0
      %v311 = vsel %vm303, %v254, 0
      %v314 = vsel %vm303, %v262, 0
      %v317 = vsel %vm303, %v270, 0
      %v320 = vsel %vm303, %v278, 0
      %v323 = vsel %vm303, %v286, 0
      %v326 = vsel %vm303, %v294, 0
      %v329 = vsel %vm303, %v302, 0
      %vm331 = vcmask 1043456
      %v333 = vsel %vm331, %v225, 0
      %335 = vmatprep.subr.bf16.mxu0 0
      %336 = vmatpush1.bf16.msra.mxu0 0
      %337 = vmatprep.subr.bf16.mxu0 0
      %338 = vmatpush1.bf16.msra.mxu0 0
      %339 = vmatprep.subr.bf16.mxu0 0
      %340 = vmatpush1.bf16.msra.mxu0 0
      %341 = vmatprep.subr.bf16.mxu0 0
      %342 = vmatpush1.bf16.msra.mxu0 0
      %343 = vmatprep.subr.bf16.mxu0 0
      %344 = vmatpush1.bf16.msra.mxu0 0
      %345 = vmatprep.subr.bf16.mxu0 0
      %346 = vmatpush1.bf16.msra.mxu0 0
      %347 = vmatprep.subr.bf16.mxu0 0
      %348 = vmatpush1.bf16.msra.mxu0 0
      %349 = vmatprep.subr.bf16.mxu0 0
      %350 = vmatpush1.bf16.msra.mxu0 %v333
      %351 = vmatprep.subr.bf16.mxu0 0
      %352 = vmatpush2.bf16.msra.mxu0 0
      %353 = vmatprep.subr.bf16.mxu0 0
      %354 = vmatpush2.bf16.msra.mxu0 0
      %355 = vmatprep.subr.bf16.mxu0 0
      %356 = vmatpush2.bf16.msra.mxu0 0
      %357 = vmatprep.subr.bf16.mxu0 0
      %358 = vmatpush2.bf16.msra.mxu0 0
      %359 = vmatprep.subr.bf16.mxu0 0
      %360 = vmatpush2.bf16.msra.mxu0 0
      %361 = vmatprep.subr.bf16.mxu0 0
      %362 = vmatpush2.bf16.msra.mxu0 0
      %363 = vmatprep.subr.bf16.mxu0 0
      %364 = vmatpush2.bf16.msra.mxu0 0
      %365 = vmatprep.subr.bf16.mxu0 0
      %366 = vmatpush2.bf16.msra.mxu0 0
      %367 = vmatprep.mubr.bf16.mxu0 0
      %368 = vmatmul.mubr.bf16.gmra.mxu0 %v305
      %v369 = vpop.f32.mrf.mxu0
      %v370 = vadd.f32 0.0, %v369
      %v371 = vpop.f32.mrf.mxu0
      %v372 = vpop.f32.mrf.mxu0
      %v373 = vadd.f32 0.0, %v372
      %v374 = vpop.f32.mrf.mxu0
      %375 = vmatprep.mubr.bf16.mxu0 0
      %376 = vmatmul.mubr.bf16.gmra.mxu0 %v308
      %v377 = vpop.f32.mrf.mxu0
      %v378 = vadd.f32 0.0, %v377
      %v379 = vpop.f32.mrf.mxu0
      %v380 = vpop.f32.mrf.mxu0
      %v381 = vadd.f32 0.0, %v380
      %v382 = vpop.f32.mrf.mxu0
      %383 = vmatprep.mubr.bf16.mxu0 0
      %384 = vmatmul.mubr.bf16.gmra.mxu0 %v311
      %v385 = vpop.f32.mrf.mxu0
      %v386 = vadd.f32 0.0, %v385
      %v387 = vpop.f32.mrf.mxu0
      %v388 = vpop.f32.mrf.mxu0
      %v389 = vadd.f32 0.0, %v388
      %v390 = vpop.f32.mrf.mxu0
      %391 = vmatprep.mubr.bf16.mxu0 0
      %392 = vmatmul.mubr.bf16.gmra.mxu0 %v314
      %v393 = vpop.f32.mrf.mxu0
      %v394 = vadd.f32 0.0, %v393
      %v395 = vpop.f32.mrf.mxu0
      %v396 = vpop.f32.mrf.mxu0
      %v397 = vadd.f32 0.0, %v396
      %v398 = vpop.f32.mrf.mxu0
      %399 = vmatprep.mubr.bf16.mxu0 0
      %400 = vmatmul.mubr.bf16.gmra.mxu0 %v317
      %v401 = vpop.f32.mrf.mxu0
      %v402 = vadd.f32 0.0, %v401
      %v403 = vpop.f32.mrf.mxu0
      %v404 = vpop.f32.mrf.mxu0
      %v405 = vadd.f32 0.0, %v404
      %v406 = vpop.f32.mrf.mxu0
      %407 = vmatprep.mubr.bf16.mxu0 0
      %408 = vmatmul.mubr.bf16.gmra.mxu0 %v320
      %v409 = vpop.f32.mrf.mxu0
      %v410 = vadd.f32 0.0, %v409
      %v411 = vpop.f32.mrf.mxu0
      %v412 = vpop.f32.mrf.mxu0
      %v413 = vadd.f32 0.0, %v412
      %v414 = vpop.f32.mrf.mxu0
      %415 = vmatprep.mubr.bf16.mxu0 0
      %416 = vmatmul.mubr.bf16.gmra.mxu0 %v323
      %v417 = vpop.f32.mrf.mxu0
      %v418 = vadd.f32 0.0, %v417
      %v419 = vpop.f32.mrf.mxu0
      %v420 = vpop.f32.mrf.mxu0
      %v421 = vadd.f32 0.0, %v420
      %v422 = vpop.f32.mrf.mxu0
      %423 = vmatprep.mubr.bf16.mxu0 0
      %424 = vmatmul.mubr.bf16.gmra.mxu0 %v326
      %v425 = vpop.f32.mrf.mxu0
      %v426 = vadd.f32 0.0, %v425
      %v427 = vpop.f32.mrf.mxu0
      %v428 = vpop.f32.mrf.mxu0
      %v429 = vadd.f32 0.0, %v428
      %v430 = vpop.f32.mrf.mxu0
      %431 = vmatprep.mubr.bf16.mxu0 0
      %432 = vmatmul.mubr.bf16.gmra.mxu0 %v329
      %v433 = vpop.f32.mrf.mxu0
      %v434 = vadd.f32 0.0, %v433
      %v435 = vpop.f32.mrf.mxu0
      %v436 = vpop.f32.mrf.mxu0
      %v437 = vadd.f32 0.0, %v436
      %v438 = vpop.f32.mrf.mxu0
      %439 = vdwg.mxu0
      %v440 = vsel %vm303, %v213, 0
      %v442 = vsel %vm303, %v214, 0
      %v444 = vsel %vm303, %v215, 0
      %v446 = vsel %vm303, %v216, 0
      %v448 = vsel %vm303, %v217, 0
      %v450 = vsel %vm303, %v218, 0
      %v452 = vsel %vm303, %v219, 0
      %v454 = vsel %vm303, %v220, 0
      %v456 = vsel %vm303, %v221, 0
      %v459 = vsel %vm331, %v222, 0
      %461 = vmatprep.subr.bf16.mxu0 0
      %462 = vmatpush1.bf16.msra.mxu0 0
      %463 = vmatprep.subr.bf16.mxu0 0
      %464 = vmatpush1.bf16.msra.mxu0 0
      %465 = vmatprep.subr.bf16.mxu0 0
      %466 = vmatpush1.bf16.msra.mxu0 0
      %467 = vmatprep.subr.bf16.mxu0 0
      %468 = vmatpush1.bf16.msra.mxu0 0
      %469 = vmatprep.subr.bf16.mxu0 0
      %470 = vmatpush1.bf16.msra.mxu0 0
      %471 = vmatprep.subr.bf16.mxu0 0
      %472 = vmatpush1.bf16.msra.mxu0 0
      %473 = vmatprep.subr.bf16.mxu0 0
      %474 = vmatpush1.bf16.msra.mxu0 0
      %475 = vmatprep.subr.bf16.mxu0 0
      %476 = vmatpush1.bf16.msra.mxu0 %v459
      %477 = vmatprep.subr.bf16.mxu0 0
      %478 = vmatpush2.bf16.msra.mxu0 0
      %479 = vmatprep.subr.bf16.mxu0 0
      %480 = vmatpush2.bf16.msra.mxu0 0
      %481 = vmatprep.subr.bf16.mxu0 0
      %482 = vmatpush2.bf16.msra.mxu0 0
      %483 = vmatprep.subr.bf16.mxu0 0
      %484 = vmatpush2.bf16.msra.mxu0 0
      %485 = vmatprep.subr.bf16.mxu0 0
      %486 = vmatpush2.bf16.msra.mxu0 0
      %487 = vmatprep.subr.bf16.mxu0 0
      %488 = vmatpush2.bf16.msra.mxu0 0
      %489 = vmatprep.subr.bf16.mxu0 0
      %490 = vmatpush2.bf16.msra.mxu0 0
      %491 = vmatprep.subr.bf16.mxu0 0
      %492 = vmatpush2.bf16.msra.mxu0 0
      %493 = vmatprep.mubr.bf16.mxu0 0
      %494 = vmatmul.mubr.bf16.gmra.mxu0 %v440
      %v495 = vpop.f32.mrf.mxu0
      %v496 = vadd.f32 %v370, %v495
      %v497 = vpop.f32.mrf.mxu0
      %v498 = vpop.f32.mrf.mxu0
      %v499 = vadd.f32 %v373, %v498
      %v500 = vpop.f32.mrf.mxu0
      %501 = vmatprep.mubr.bf16.mxu0 0
      %502 = vmatmul.mubr.bf16.gmra.mxu0 %v442
      %v503 = vpop.f32.mrf.mxu0
      %v504 = vadd.f32 %v378, %v503
      %v505 = vpop.f32.mrf.mxu0
      %v506 = vpop.f32.mrf.mxu0
      %v507 = vadd.f32 %v381, %v506
      %v508 = vpop.f32.mrf.mxu0
      %509 = vmatprep.mubr.bf16.mxu0 0
      %510 = vmatmul.mubr.bf16.gmra.mxu0 %v444
      %v511 = vpop.f32.mrf.mxu0
      %v512 = vadd.f32 %v386, %v511
      %v513 = vpop.f32.mrf.mxu0
      %v514 = vpop.f32.mrf.mxu0
      %v515 = vadd.f32 %v389, %v514
      %v516 = vpop.f32.mrf.mxu0
      %517 = vmatprep.mubr.bf16.mxu0 0
      %518 = vmatmul.mubr.bf16.gmra.mxu0 %v446
      %v519 = vpop.f32.mrf.mxu0
      %v520 = vadd.f32 %v394, %v519
      %v521 = vpop.f32.mrf.mxu0
      %v522 = vpop.f32.mrf.mxu0
      %v523 = vadd.f32 %v397, %v522
      %v524 = vpop.f32.mrf.mxu0
      %525 = vmatprep.mubr.bf16.mxu0 0
      %526 = vmatmul.mubr.bf16.gmra.mxu0 %v448
      %v527 = vpop.f32.mrf.mxu0
      %v528 = vadd.f32 %v402, %v527
      %v529 = vpop.f32.mrf.mxu0
      %v530 = vpop.f32.mrf.mxu0
      %v531 = vadd.f32 %v405, %v530
      %v532 = vpop.f32.mrf.mxu0
      %533 = vmatprep.mubr.bf16.mxu0 0
      %534 = vmatmul.mubr.bf16.gmra.mxu0 %v450
      %v535 = vpop.f32.mrf.mxu0
      %v536 = vadd.f32 %v410, %v535
      %v537 = vpop.f32.mrf.mxu0
      %v538 = vpop.f32.mrf.mxu0
      %v539 = vadd.f32 %v413, %v538
      %v540 = vpop.f32.mrf.mxu0
      %541 = vmatprep.mubr.bf16.mxu0 0
      %542 = vmatmul.mubr.bf16.gmra.mxu0 %v452
      %v543 = vpop.f32.mrf.mxu0
      %v544 = vadd.f32 %v418, %v543
      %v545 = vpop.f32.mrf.mxu0
      %v546 = vpop.f32.mrf.mxu0
      %v547 = vadd.f32 %v421, %v546
      %v548 = vpop.f32.mrf.mxu0
      %549 = vmatprep.mubr.bf16.mxu0 0
      %550 = vmatmul.mubr.bf16.gmra.mxu0 %v454
      %v551 = vpop.f32.mrf.mxu0
      %v552 = vadd.f32 %v426, %v551
      %v553 = vpop.f32.mrf.mxu0
      %v554 = vpop.f32.mrf.mxu0
      %v555 = vadd.f32 %v429, %v554
      %v556 = vpop.f32.mrf.mxu0
      %557 = vmatprep.mubr.bf16.mxu0 0
      %558 = vmatmul.mubr.bf16.gmra.mxu0 %v456
      %v559 = vpop.f32.mrf.mxu0
      %v560 = vadd.f32 %v434, %v559
      %v561 = vpop.f32.mrf.mxu0
      %v562 = vpop.f32.mrf.mxu0
      %v563 = vadd.f32 %v437, %v562
      %v564 = vpop.f32.mrf.mxu0
      %565 = vdwg.mxu0
      %s566 = scalar_lea.vmem %s171, 8
      %v567 = vld [vmem:[%s566] sm:$0xf]
      %vm578 = vcmask 1046528
      %v579 = vrot.slane %v213, 1
      %v580 = vrot.slane %v214, 1
      %v581 = vsel %vm578, %v579, %v580
      %v582 = vrot.slane %v215, 1
      %v583 = vsel %vm578, %v580, %v582
      %v584 = vrot.slane %v216, 1
      %v585 = vsel %vm578, %v582, %v584
      %v586 = vrot.slane %v217, 1
      %v587 = vsel %vm578, %v584, %v586
      %v588 = vrot.slane %v218, 1
      %v589 = vsel %vm578, %v586, %v588
      %v590 = vrot.slane %v219, 1
      %v591 = vsel %vm578, %v588, %v590
      %v592 = vrot.slane %v220, 1
      %v593 = vsel %vm578, %v590, %v592
      %v594 = vrot.slane %v221, 1
      %v595 = vsel %vm578, %v592, %v594
      %v596 = vrot.slane %v223, 1
      %v597 = vsel %vm578, %v594, %v596
      %v599 = vsel %vm303, %v581, 0
      %v602 = vsel %vm303, %v583, 0
      %v605 = vsel %vm303, %v585, 0
      %v608 = vsel %vm303, %v587, 0
      %v611 = vsel %vm303, %v589, 0
      %v614 = vsel %vm303, %v591, 0
      %v617 = vsel %vm303, %v593, 0
      %v620 = vsel %vm303, %v595, 0
      %v623 = vsel %vm303, %v597, 0
      %v626 = vsel %vm331, %v567, 0
      %628 = vmatprep.subr.bf16.mxu0 0
      %629 = vmatpush1.bf16.msra.mxu0 0
      %630 = vmatprep.subr.bf16.mxu0 0
      %631 = vmatpush1.bf16.msra.mxu0 0
      %632 = vmatprep.subr.bf16.mxu0 0
      %633 = vmatpush1.bf16.msra.mxu0 0
      %634 = vmatprep.subr.bf16.mxu0 0
      %635 = vmatpush1.bf16.msra.mxu0 0
      %636 = vmatprep.subr.bf16.mxu0 0
      %637 = vmatpush1.bf16.msra.mxu0 0
      %638 = vmatprep.subr.bf16.mxu0 0
      %639 = vmatpush1.bf16.msra.mxu0 0
      %640 = vmatprep.subr.bf16.mxu0 0
      %641 = vmatpush1.bf16.msra.mxu0 0
      %642 = vmatprep.subr.bf16.mxu0 0
      %643 = vmatpush1.bf16.msra.mxu0 %v626
      %644 = vmatprep.subr.bf16.mxu0 0
      %645 = vmatpush2.bf16.msra.mxu0 0
      %646 = vmatprep.subr.bf16.mxu0 0
      %647 = vmatpush2.bf16.msra.mxu0 0
      %648 = vmatprep.subr.bf16.mxu0 0
      %649 = vmatpush2.bf16.msra.mxu0 0
      %650 = vmatprep.subr.bf16.mxu0 0
      %651 = vmatpush2.bf16.msra.mxu0 0
      %652 = vmatprep.subr.bf16.mxu0 0
      %653 = vmatpush2.bf16.msra.mxu0 0
      %654 = vmatprep.subr.bf16.mxu0 0
      %655 = vmatpush2.bf16.msra.mxu0 0
      %656 = vmatprep.subr.bf16.mxu0 0
      %657 = vmatpush2.bf16.msra.mxu0 0
      %658 = vmatprep.subr.bf16.mxu0 0
      %659 = vmatpush2.bf16.msra.mxu0 0
      %660 = vmatprep.mubr.bf16.mxu0 0
      %661 = vmatmul.mubr.bf16.gmra.mxu0 %v599
      %v662 = vpop.f32.mrf.mxu0
      %v663 = vadd.f32 0.0, %v662
      %v664 = vpop.f32.mrf.mxu0
      %v665 = vpop.f32.mrf.mxu0
      %v666 = vadd.f32 0.0, %v665
      %v667 = vpop.f32.mrf.mxu0
      %668 = vmatprep.mubr.bf16.mxu0 0
      %669 = vmatmul.mubr.bf16.gmra.mxu0 %v602
      %v670 = vpop.f32.mrf.mxu0
      %v671 = vadd.f32 0.0, %v670
      %v672 = vpop.f32.mrf.mxu0
      %v673 = vpop.f32.mrf.mxu0
      %v674 = vadd.f32 0.0, %v673
      %v675 = vpop.f32.mrf.mxu0
      %676 = vmatprep.mubr.bf16.mxu0 0
      %677 = vmatmul.mubr.bf16.gmra.mxu0 %v605
      %v678 = vpop.f32.mrf.mxu0
      %v679 = vadd.f32 0.0, %v678
      %v680 = vpop.f32.mrf.mxu0
      %v681 = vpop.f32.mrf.mxu0
      %v682 = vadd.f32 0.0, %v681
      %v683 = vpop.f32.mrf.mxu0
      %684 = vmatprep.mubr.bf16.mxu0 0
      %685 = vmatmul.mubr.bf16.gmra.mxu0 %v608
      %v686 = vpop.f32.mrf.mxu0
      %v687 = vadd.f32 0.0, %v686
      %v688 = vpop.f32.mrf.mxu0
      %v689 = vpop.f32.mrf.mxu0
      %v690 = vadd.f32 0.0, %v689
      %v691 = vpop.f32.mrf.mxu0
      %692 = vmatprep.mubr.bf16.mxu0 0
      %693 = vmatmul.mubr.bf16.gmra.mxu0 %v611
      %v694 = vpop.f32.mrf.mxu0
      %v695 = vadd.f32 0.0, %v694
      %v696 = vpop.f32.mrf.mxu0
      %v697 = vpop.f32.mrf.mxu0
      %v698 = vadd.f32 0.0, %v697
      %v699 = vpop.f32.mrf.mxu0
      %700 = vmatprep.mubr.bf16.mxu0 0
      %701 = vmatmul.mubr.bf16.gmra.mxu0 %v614
      %v702 = vpop.f32.mrf.mxu0
      %v703 = vadd.f32 0.0, %v702
      %v704 = vpop.f32.mrf.mxu0
      %v705 = vpop.f32.mrf.mxu0
      %v706 = vadd.f32 0.0, %v705
      %v707 = vpop.f32.mrf.mxu0
      %708 = vmatprep.mubr.bf16.mxu0 0
      %709 = vmatmul.mubr.bf16.gmra.mxu0 %v617
      %v710 = vpop.f32.mrf.mxu0
      %v711 = vadd.f32 0.0, %v710
      %v712 = vpop.f32.mrf.mxu0
      %v713 = vpop.f32.mrf.mxu0
      %v714 = vadd.f32 0.0, %v713
      %v715 = vpop.f32.mrf.mxu0
      %716 = vmatprep.mubr.bf16.mxu0 0
      %717 = vmatmul.mubr.bf16.gmra.mxu0 %v620
      %v718 = vpop.f32.mrf.mxu0
      %v719 = vadd.f32 0.0, %v718
      %v720 = vpop.f32.mrf.mxu0
      %v721 = vpop.f32.mrf.mxu0
      %v722 = vadd.f32 0.0, %v721
      %v723 = vpop.f32.mrf.mxu0
      %724 = vmatprep.mubr.bf16.mxu0 0
      %725 = vmatmul.mubr.bf16.gmra.mxu0 %v623
      %v726 = vpop.f32.mrf.mxu0
      %v727 = vadd.f32 0.0, %v726
      %v728 = vpop.f32.mrf.mxu0
      %v729 = vpop.f32.mrf.mxu0
      %v730 = vadd.f32 0.0, %v729
      %v731 = vpop.f32.mrf.mxu0
      %732 = vdwg.mxu0
      %v733 = vadd.f32 %v496, %v663
      %v734 = vadd.f32 %v499, %v666
      %v735 = vadd.f32 %v504, %v671
      %v736 = vadd.f32 %v507, %v674
      %v737 = vadd.f32 %v512, %v679
      %v738 = vadd.f32 %v515, %v682
      %v739 = vadd.f32 %v520, %v687
      %v740 = vadd.f32 %v523, %v690
      %v741 = vadd.f32 %v528, %v695
      %v742 = vadd.f32 %v531, %v698
      %v743 = vadd.f32 %v536, %v703
      %v744 = vadd.f32 %v539, %v706
      %v745 = vadd.f32 %v544, %v711
      %v746 = vadd.f32 %v547, %v714
      %v747 = vadd.f32 %v552, %v719
      %v748 = vadd.f32 %v555, %v722
      %v749 = vadd.f32 %v560, %v727
      %v750 = vadd.f32 %v563, %v730
      %v751 = vpack.c.bf16 %v209, %v208
      %v752 = vpack.c.bf16 %v210, %v210
      %s753 = scalar_lea.vmem %s171, 12
      %v754 = vld [vmem:[%s753] sm:$0xf]
      %v757 = vrot.slane %v751, 1
      %v758 = vsel %vm578, %v594, %v757
      %v759 = vrot.slane %v752, 1
      %v760 = vsel %vm578, %v757, %v759
      %v762 = vsel %vm303, %v758, 0
      %v765 = vsel %vm303, %v760, 0
      %v768 = vsel %vm331, %v754, 0
      %770 = vmatprep.subr.bf16.mxu0 0
      %771 = vmatpush1.bf16.msra.mxu0 0
      %772 = vmatprep.subr.bf16.mxu0 0
      %773 = vmatpush1.bf16.msra.mxu0 0
      %774 = vmatprep.subr.bf16.mxu0 0
      %775 = vmatpush1.bf16.msra.mxu0 0
      %776 = vmatprep.subr.bf16.mxu0 0
      %777 = vmatpush1.bf16.msra.mxu0 0
      %778 = vmatprep.subr.bf16.mxu0 0
      %779 = vmatpush1.bf16.msra.mxu0 0
      %780 = vmatprep.subr.bf16.mxu0 0
      %781 = vmatpush1.bf16.msra.mxu0 0
      %782 = vmatprep.subr.bf16.mxu0 0
      %783 = vmatpush1.bf16.msra.mxu0 0
      %784 = vmatprep.subr.bf16.mxu0 0
      %785 = vmatpush1.bf16.msra.mxu0 %v768
      %786 = vmatprep.subr.bf16.mxu0 0
      %787 = vmatpush2.bf16.msra.mxu0 0
      %788 = vmatprep.subr.bf16.mxu0 0
      %789 = vmatpush2.bf16.msra.mxu0 0
      %790 = vmatprep.subr.bf16.mxu0 0
      %791 = vmatpush2.bf16.msra.mxu0 0
      %792 = vmatprep.subr.bf16.mxu0 0
      %793 = vmatpush2.bf16.msra.mxu0 0
      %794 = vmatprep.subr.bf16.mxu0 0
      %795 = vmatpush2.bf16.msra.mxu0 0
      %796 = vmatprep.subr.bf16.mxu0 0
      %797 = vmatpush2.bf16.msra.mxu0 0
      %798 = vmatprep.subr.bf16.mxu0 0
      %799 = vmatpush2.bf16.msra.mxu0 0
      %800 = vmatprep.subr.bf16.mxu0 0
      %801 = vmatpush2.bf16.msra.mxu0 0
      %802 = vmatprep.mubr.bf16.mxu0 0
      %803 = vmatmul.mubr.bf16.gmra.mxu0 %v602
      %v804 = vpop.f32.mrf.mxu0
      %v805 = vadd.f32 0.0, %v804
      %v806 = vpop.f32.mrf.mxu0
      %v807 = vpop.f32.mrf.mxu0
      %v808 = vadd.f32 0.0, %v807
      %v809 = vpop.f32.mrf.mxu0
      %810 = vmatprep.mubr.bf16.mxu0 0
      %811 = vmatmul.mubr.bf16.gmra.mxu0 %v605
      %v812 = vpop.f32.mrf.mxu0
      %v813 = vadd.f32 0.0, %v812
      %v814 = vpop.f32.mrf.mxu0
      %v815 = vpop.f32.mrf.mxu0
      %v816 = vadd.f32 0.0, %v815
      %v817 = vpop.f32.mrf.mxu0
      %818 = vmatprep.mubr.bf16.mxu0 0
      %819 = vmatmul.mubr.bf16.gmra.mxu0 %v608
      %v820 = vpop.f32.mrf.mxu0
      %v821 = vadd.f32 0.0, %v820
      %v822 = vpop.f32.mrf.mxu0
      %v823 = vpop.f32.mrf.mxu0
      %v824 = vadd.f32 0.0, %v823
      %v825 = vpop.f32.mrf.mxu0
      %826 = vmatprep.mubr.bf16.mxu0 0
      %827 = vmatmul.mubr.bf16.gmra.mxu0 %v611
      %v828 = vpop.f32.mrf.mxu0
      %v829 = vadd.f32 0.0, %v828
      %v830 = vpop.f32.mrf.mxu0
      %v831 = vpop.f32.mrf.mxu0
      %v832 = vadd.f32 0.0, %v831
      %v833 = vpop.f32.mrf.mxu0
      %834 = vmatprep.mubr.bf16.mxu0 0
      %835 = vmatmul.mubr.bf16.gmra.mxu0 %v614
      %v836 = vpop.f32.mrf.mxu0
      %v837 = vadd.f32 0.0, %v836
      %v838 = vpop.f32.mrf.mxu0
      %v839 = vpop.f32.mrf.mxu0
      %v840 = vadd.f32 0.0, %v839
      %v841 = vpop.f32.mrf.mxu0
      %842 = vmatprep.mubr.bf16.mxu0 0
      %843 = vmatmul.mubr.bf16.gmra.mxu0 %v617
      %v844 = vpop.f32.mrf.mxu0
      %v845 = vadd.f32 0.0, %v844
      %v846 = vpop.f32.mrf.mxu0
      %v847 = vpop.f32.mrf.mxu0
      %v848 = vadd.f32 0.0, %v847
      %v849 = vpop.f32.mrf.mxu0
      %850 = vmatprep.mubr.bf16.mxu0 0
      %851 = vmatmul.mubr.bf16.gmra.mxu0 %v620
      %v852 = vpop.f32.mrf.mxu0
      %v853 = vadd.f32 0.0, %v852
      %v854 = vpop.f32.mrf.mxu0
      %v855 = vpop.f32.mrf.mxu0
      %v856 = vadd.f32 0.0, %v855
      %v857 = vpop.f32.mrf.mxu0
      %858 = vmatprep.mubr.bf16.mxu0 0
      %859 = vmatmul.mubr.bf16.gmra.mxu0 %v762
      %v860 = vpop.f32.mrf.mxu0
      %v861 = vadd.f32 0.0, %v860
      %v862 = vpop.f32.mrf.mxu0
      %v863 = vpop.f32.mrf.mxu0
      %v864 = vadd.f32 0.0, %v863
      %v865 = vpop.f32.mrf.mxu0
      %866 = vmatprep.mubr.bf16.mxu0 0
      %867 = vmatmul.mubr.bf16.gmra.mxu0 %v765
      %v868 = vpop.f32.mrf.mxu0
      %v869 = vadd.f32 0.0, %v868
      %v870 = vpop.f32.mrf.mxu0
      %v871 = vpop.f32.mrf.mxu0
      %v872 = vadd.f32 0.0, %v871
      %v873 = vpop.f32.mrf.mxu0
      %874 = vdwg.mxu0
      %v875 = vadd.f32 %v733, %v805
      %v876 = vadd.f32 %v734, %v808
      %v877 = vadd.f32 %v735, %v813
      %v878 = vadd.f32 %v736, %v816
      %v879 = vadd.f32 %v737, %v821
      %v880 = vadd.f32 %v738, %v824
      %v881 = vadd.f32 %v739, %v829
      %v882 = vadd.f32 %v740, %v832
      %v883 = vadd.f32 %v741, %v837
      %v884 = vadd.f32 %v742, %v840
      %v885 = vadd.f32 %v743, %v845
      %v886 = vadd.f32 %v744, %v848
      %v887 = vadd.f32 %v745, %v853
      %v888 = vadd.f32 %v746, %v856
      %v889 = vadd.f32 %v747, %v861
      %v890 = vadd.f32 %v748, %v864
      %v891 = vadd.f32 %v749, %v869
      %v892 = vadd.f32 %v750, %v872
      %s893 = scalar_lea.vmem %s171, 16
      %v894 = vld [vmem:[%s893] sm:$0xf]
      %vm895 = vsmask.f32 6400
      %v896 = vrot.slane %v239, 1
      %v897 = vrot.slane %v235, 2
      %v898 = vor.u32 %v896, %v897
      %v899 = vrot.slane %v247, 1
      %v900 = vrot.slane %v243, 2
      %v901 = vor.u32 %v899, %v900
      %v902 = vsel %vm895, %v898, %v901
      %v903 = vrot.slane %v255, 1
      %v904 = vrot.slane %v251, 2
      %v905 = vor.u32 %v903, %v904
      %v906 = vsel %vm895, %v901, %v905
      %v907 = vrot.slane %v263, 1
      %v908 = vrot.slane %v259, 2
      %v909 = vor.u32 %v907, %v908
      %v910 = vsel %vm895, %v905, %v909
      %v911 = vrot.slane %v271, 1
      %v912 = vrot.slane %v267, 2
      %v913 = vor.u32 %v911, %v912
      %v914 = vsel %vm895, %v909, %v913
      %v915 = vrot.slane %v279, 1
      %v916 = vrot.slane %v275, 2
      %v917 = vor.u32 %v915, %v916
      %v918 = vsel %vm895, %v913, %v917
      %v919 = vrot.slane %v287, 1
      %v920 = vrot.slane %v283, 2
      %v921 = vor.u32 %v919, %v920
      %v922 = vsel %vm895, %v917, %v921
      %v923 = vrot.slane %v295, 1
      %v924 = vrot.slane %v291, 2
      %v925 = vor.u32 %v923, %v924
      %v926 = vsel %vm895, %v921, %v925
      %v928 = vshrl.u32 %v751, 16
      %v930 = vrot.slane %v928, 1
      %v931 = vshll.u32 %v751, 16
      %v933 = vrot.slane %v931, 2
      %v934 = vor.u32 %v930, %v933
      %v935 = vsel %vm895, %v925, %v934
      %v937 = vshrl.u32 %v752, 16
      %v939 = vrot.slane %v937, 1
      %v940 = vshll.u32 %v752, 16
      %v942 = vrot.slane %v940, 2
      %v943 = vor.u32 %v939, %v942
      %v944 = vsel %vm895, %v934, %v943
      %v946 = vsel %vm303, %v902, 0
      %v949 = vsel %vm303, %v906, 0
      %v952 = vsel %vm303, %v910, 0
      %v955 = vsel %vm303, %v914, 0
      %v958 = vsel %vm303, %v918, 0
      %v961 = vsel %vm303, %v922, 0
      %v964 = vsel %vm303, %v926, 0
      %v967 = vsel %vm303, %v935, 0
      %v970 = vsel %vm303, %v944, 0
      %v973 = vsel %vm331, %v894, 0
      %975 = vmatprep.subr.bf16.mxu0 0
      %976 = vmatpush1.bf16.msra.mxu0 0
      %977 = vmatprep.subr.bf16.mxu0 0
      %978 = vmatpush1.bf16.msra.mxu0 0
      %979 = vmatprep.subr.bf16.mxu0 0
      %980 = vmatpush1.bf16.msra.mxu0 0
      %981 = vmatprep.subr.bf16.mxu0 0
      %982 = vmatpush1.bf16.msra.mxu0 0
      %983 = vmatprep.subr.bf16.mxu0 0
      %984 = vmatpush1.bf16.msra.mxu0 0
      %985 = vmatprep.subr.bf16.mxu0 0
      %986 = vmatpush1.bf16.msra.mxu0 0
      %987 = vmatprep.subr.bf16.mxu0 0
      %988 = vmatpush1.bf16.msra.mxu0 0
      %989 = vmatprep.subr.bf16.mxu0 0
      %990 = vmatpush1.bf16.msra.mxu0 %v973
      %991 = vmatprep.subr.bf16.mxu0 0
      %992 = vmatpush2.bf16.msra.mxu0 0
      %993 = vmatprep.subr.bf16.mxu0 0
      %994 = vmatpush2.bf16.msra.mxu0 0
      %995 = vmatprep.subr.bf16.mxu0 0
      %996 = vmatpush2.bf16.msra.mxu0 0
      %997 = vmatprep.subr.bf16.mxu0 0
      %998 = vmatpush2.bf16.msra.mxu0 0
      %999 = vmatprep.subr.bf16.mxu0 0
      %1000 = vmatpush2.bf16.msra.mxu0 0
      %1001 = vmatprep.subr.bf16.mxu0 0
      %1002 = vmatpush2.bf16.msra.mxu0 0
      %1003 = vmatprep.subr.bf16.mxu0 0
      %1004 = vmatpush2.bf16.msra.mxu0 0
      %1005 = vmatprep.subr.bf16.mxu0 0
      %1006 = vmatpush2.bf16.msra.mxu0 0
      %1007 = vmatprep.mubr.bf16.mxu0 0
      %1008 = vmatmul.mubr.bf16.gmra.mxu0 %v946
      %v1009 = vpop.f32.mrf.mxu0
      %v1010 = vadd.f32 0.0, %v1009
      %v1011 = vpop.f32.mrf.mxu0
      %v1012 = vpop.f32.mrf.mxu0
      %v1013 = vadd.f32 0.0, %v1012
      %v1014 = vpop.f32.mrf.mxu0
      %1015 = vmatprep.mubr.bf16.mxu0 0
      %1016 = vmatmul.mubr.bf16.gmra.mxu0 %v949
      %v1017 = vpop.f32.mrf.mxu0
      %v1018 = vadd.f32 0.0, %v1017
      %v1019 = vpop.f32.mrf.mxu0
      %v1020 = vpop.f32.mrf.mxu0
      %v1021 = vadd.f32 0.0, %v1020
      %v1022 = vpop.f32.mrf.mxu0
      %1023 = vmatprep.mubr.bf16.mxu0 0
      %1024 = vmatmul.mubr.bf16.gmra.mxu0 %v952
      %v1025 = vpop.f32.mrf.mxu0
      %v1026 = vadd.f32 0.0, %v1025
      %v1027 = vpop.f32.mrf.mxu0
      %v1028 = vpop.f32.mrf.mxu0
      %v1029 = vadd.f32 0.0, %v1028
      %v1030 = vpop.f32.mrf.mxu0
      %1031 = vmatprep.mubr.bf16.mxu0 0
      %1032 = vmatmul.mubr.bf16.gmra.mxu0 %v955
      %v1033 = vpop.f32.mrf.mxu0
      %v1034 = vadd.f32 0.0, %v1033
      %v1035 = vpop.f32.mrf.mxu0
      %v1036 = vpop.f32.mrf.mxu0
      %v1037 = vadd.f32 0.0, %v1036
      %v1038 = vpop.f32.mrf.mxu0
      %1039 = vmatprep.mubr.bf16.mxu0 0
      %1040 = vmatmul.mubr.bf16.gmra.mxu0 %v958
      %v1041 = vpop.f32.mrf.mxu0
      %v1042 = vadd.f32 0.0, %v1041
      %v1043 = vpop.f32.mrf.mxu0
      %v1044 = vpop.f32.mrf.mxu0
      %v1045 = vadd.f32 0.0, %v1044
      %v1046 = vpop.f32.mrf.mxu0
      %1047 = vmatprep.mubr.bf16.mxu0 0
      %1048 = vmatmul.mubr.bf16.gmra.mxu0 %v961
      %v1049 = vpop.f32.mrf.mxu0
      %v1050 = vadd.f32 0.0, %v1049
      %v1051 = vpop.f32.mrf.mxu0
      %v1052 = vpop.f32.mrf.mxu0
      %v1053 = vadd.f32 0.0, %v1052
      %v1054 = vpop.f32.mrf.mxu0
      %1055 = vmatprep.mubr.bf16.mxu0 0
      %1056 = vmatmul.mubr.bf16.gmra.mxu0 %v964
      %v1057 = vpop.f32.mrf.mxu0
      %v1058 = vadd.f32 0.0, %v1057
      %v1059 = vpop.f32.mrf.mxu0
      %v1060 = vpop.f32.mrf.mxu0
      %v1061 = vadd.f32 0.0, %v1060
      %v1062 = vpop.f32.mrf.mxu0
      %1063 = vmatprep.mubr.bf16.mxu0 0
      %1064 = vmatmul.mubr.bf16.gmra.mxu0 %v967
      %v1065 = vpop.f32.mrf.mxu0
      %v1066 = vadd.f32 0.0, %v1065
      %v1067 = vpop.f32.mrf.mxu0
      %v1068 = vpop.f32.mrf.mxu0
      %v1069 = vadd.f32 0.0, %v1068
      %v1070 = vpop.f32.mrf.mxu0
      %1071 = vmatprep.mubr.bf16.mxu0 0
      %1072 = vmatmul.mubr.bf16.gmra.mxu0 %v970
      %v1073 = vpop.f32.mrf.mxu0
      %v1074 = vadd.f32 0.0, %v1073
      %v1075 = vpop.f32.mrf.mxu0
      %v1076 = vpop.f32.mrf.mxu0
      %v1077 = vadd.f32 0.0, %v1076
      %v1078 = vpop.f32.mrf.mxu0
      %1079 = vdwg.mxu0
      %v1080 = vadd.f32 %v875, %v1010
      %v1081 = vadd.f32 %v876, %v1013
      %v1082 = vadd.f32 %v877, %v1018
      %v1083 = vadd.f32 %v878, %v1021
      %v1084 = vadd.f32 %v879, %v1026
      %v1085 = vadd.f32 %v880, %v1029
      %v1086 = vadd.f32 %v881, %v1034
      %v1087 = vadd.f32 %v882, %v1037
      %v1088 = vadd.f32 %v883, %v1042
      %v1089 = vadd.f32 %v884, %v1045
      %v1090 = vadd.f32 %v885, %v1050
      %v1091 = vadd.f32 %v886, %v1053
      %v1092 = vadd.f32 %v887, %v1058
      %v1093 = vadd.f32 %v888, %v1061
      %v1094 = vadd.f32 %v889, %v1066
      %v1095 = vadd.f32 %v890, %v1069
      %v1096 = vadd.f32 %v891, %v1074
      %v1097 = vadd.f32 %v892, %v1077
      %s1098 = scalar_lea.vmem %s171, 20
      %v1099 = vld [vmem:[%s1098] sm:$0xf]
      %vm1100 = vcmask 1045504
      %v1101 = vrot.slane %v214, 2
      %v1102 = vrot.slane %v215, 2
      %v1103 = vsel %vm1100, %v1101, %v1102
      %v1104 = vrot.slane %v216, 2
      %v1105 = vsel %vm1100, %v1102, %v1104
      %v1106 = vrot.slane %v217, 2
      %v1107 = vsel %vm1100, %v1104, %v1106
      %v1108 = vrot.slane %v218, 2
      %v1109 = vsel %vm1100, %v1106, %v1108
      %v1110 = vrot.slane %v219, 2
      %v1111 = vsel %vm1100, %v1108, %v1110
      %v1112 = vrot.slane %v220, 2
      %v1113 = vsel %vm1100, %v1110, %v1112
      %v1114 = vrot.slane %v221, 2
      %v1115 = vsel %vm1100, %v1112, %v1114
      %v1116 = vrot.slane %v751, 2
      %v1117 = vsel %vm1100, %v1114, %v1116
      %v1118 = vrot.slane %v752, 2
      %v1119 = vsel %vm1100, %v1116, %v1118
      %v1121 = vsel %vm303, %v1103, 0
      %v1124 = vsel %vm303, %v1105, 0
      %v1127 = vsel %vm303, %v1107, 0
      %v1130 = vsel %vm303, %v1109, 0
      %v1133 = vsel %vm303, %v1111, 0
      %v1136 = vsel %vm303, %v1113, 0
      %v1139 = vsel %vm303, %v1115, 0
      %v1142 = vsel %vm303, %v1117, 0
      %v1145 = vsel %vm303, %v1119, 0
      %v1148 = vsel %vm331, %v1099, 0
      %1150 = vmatprep.subr.bf16.mxu0 0
      %1151 = vmatpush1.bf16.msra.mxu0 0
      %1152 = vmatprep.subr.bf16.mxu0 0
      %1153 = vmatpush1.bf16.msra.mxu0 0
      %1154 = vmatprep.subr.bf16.mxu0 0
      %1155 = vmatpush1.bf16.msra.mxu0 0
      %1156 = vmatprep.subr.bf16.mxu0 0
      %1157 = vmatpush1.bf16.msra.mxu0 0
      %1158 = vmatprep.subr.bf16.mxu0 0
      %1159 = vmatpush1.bf16.msra.mxu0 0
      %1160 = vmatprep.subr.bf16.mxu0 0
      %1161 = vmatpush1.bf16.msra.mxu0 0
      %1162 = vmatprep.subr.bf16.mxu0 0
      %1163 = vmatpush1.bf16.msra.mxu0 0
      %1164 = vmatprep.subr.bf16.mxu0 0
      %1165 = vmatpush1.bf16.msra.mxu0 %v1148
      %1166 = vmatprep.subr.bf16.mxu0 0
      %1167 = vmatpush2.bf16.msra.mxu0 0
      %1168 = vmatprep.subr.bf16.mxu0 0
      %1169 = vmatpush2.bf16.msra.mxu0 0
      %1170 = vmatprep.subr.bf16.mxu0 0
      %1171 = vmatpush2.bf16.msra.mxu0 0
      %1172 = vmatprep.subr.bf16.mxu0 0
      %1173 = vmatpush2.bf16.msra.mxu0 0
      %1174 = vmatprep.subr.bf16.mxu0 0
      %1175 = vmatpush2.bf16.msra.mxu0 0
      %1176 = vmatprep.subr.bf16.mxu0 0
      %1177 = vmatpush2.bf16.msra.mxu0 0
      %1178 = vmatprep.subr.bf16.mxu0 0
      %1179 = vmatpush2.bf16.msra.mxu0 0
      %1180 = vmatprep.subr.bf16.mxu0 0
      %1181 = vmatpush2.bf16.msra.mxu0 0
      %1182 = vmatprep.mubr.bf16.mxu0 0
      %1183 = vmatmul.mubr.bf16.gmra.mxu0 %v1121
      %v1184 = vpop.f32.mrf.mxu0
      %v1185 = vadd.f32 0.0, %v1184
      %v1186 = vpop.f32.mrf.mxu0
      %v1187 = vpop.f32.mrf.mxu0
      %v1188 = vadd.f32 0.0, %v1187
      %v1189 = vpop.f32.mrf.mxu0
      %1190 = vmatprep.mubr.bf16.mxu0 0
      %1191 = vmatmul.mubr.bf16.gmra.mxu0 %v1124
      %v1192 = vpop.f32.mrf.mxu0
      %v1193 = vadd.f32 0.0, %v1192
      %v1194 = vpop.f32.mrf.mxu0
      %v1195 = vpop.f32.mrf.mxu0
      %v1196 = vadd.f32 0.0, %v1195
      %v1197 = vpop.f32.mrf.mxu0
      %1198 = vmatprep.mubr.bf16.mxu0 0
      %1199 = vmatmul.mubr.bf16.gmra.mxu0 %v1127
      %v1200 = vpop.f32.mrf.mxu0
      %v1201 = vadd.f32 0.0, %v1200
      %v1202 = vpop.f32.mrf.mxu0
      %v1203 = vpop.f32.mrf.mxu0
      %v1204 = vadd.f32 0.0, %v1203
      %v1205 = vpop.f32.mrf.mxu0
      %1206 = vmatprep.mubr.bf16.mxu0 0
      %1207 = vmatmul.mubr.bf16.gmra.mxu0 %v1130
      %v1208 = vpop.f32.mrf.mxu0
      %v1209 = vadd.f32 0.0, %v1208
      %v1210 = vpop.f32.mrf.mxu0
      %v1211 = vpop.f32.mrf.mxu0
      %v1212 = vadd.f32 0.0, %v1211
      %v1213 = vpop.f32.mrf.mxu0
      %1214 = vmatprep.mubr.bf16.mxu0 0
      %1215 = vmatmul.mubr.bf16.gmra.mxu0 %v1133
      %v1216 = vpop.f32.mrf.mxu0
      %v1217 = vadd.f32 0.0, %v1216
      %v1218 = vpop.f32.mrf.mxu0
      %v1219 = vpop.f32.mrf.mxu0
      %v1220 = vadd.f32 0.0, %v1219
      %v1221 = vpop.f32.mrf.mxu0
      %1222 = vmatprep.mubr.bf16.mxu0 0
      %1223 = vmatmul.mubr.bf16.gmra.mxu0 %v1136
      %v1224 = vpop.f32.mrf.mxu0
      %v1225 = vadd.f32 0.0, %v1224
      %v1226 = vpop.f32.mrf.mxu0
      %v1227 = vpop.f32.mrf.mxu0
      %v1228 = vadd.f32 0.0, %v1227
      %v1229 = vpop.f32.mrf.mxu0
      %1230 = vmatprep.mubr.bf16.mxu0 0
      %1231 = vmatmul.mubr.bf16.gmra.mxu0 %v1139
      %v1232 = vpop.f32.mrf.mxu0
      %v1233 = vadd.f32 0.0, %v1232
      %v1234 = vpop.f32.mrf.mxu0
      %v1235 = vpop.f32.mrf.mxu0
      %v1236 = vadd.f32 0.0, %v1235
      %v1237 = vpop.f32.mrf.mxu0
      %1238 = vmatprep.mubr.bf16.mxu0 0
      %1239 = vmatmul.mubr.bf16.gmra.mxu0 %v1142
      %v1240 = vpop.f32.mrf.mxu0
      %v1241 = vadd.f32 0.0, %v1240
      %v1242 = vpop.f32.mrf.mxu0
      %v1243 = vpop.f32.mrf.mxu0
      %v1244 = vadd.f32 0.0, %v1243
      %v1245 = vpop.f32.mrf.mxu0
      %1246 = vmatprep.mubr.bf16.mxu0 0
      %1247 = vmatmul.mubr.bf16.gmra.mxu0 %v1145
      %v1248 = vpop.f32.mrf.mxu0
      %v1249 = vadd.f32 0.0, %v1248
      %v1250 = vpop.f32.mrf.mxu0
      %v1251 = vpop.f32.mrf.mxu0
      %v1252 = vadd.f32 0.0, %v1251
      %v1253 = vpop.f32.mrf.mxu0
      %1254 = vdwg.mxu0
      %v1255 = vadd.f32 %v1080, %v1185
      %v1256 = vadd.f32 %v1081, %v1188
      %v1257 = vadd.f32 %v1082, %v1193
      %v1258 = vadd.f32 %v1083, %v1196
      %v1259 = vadd.f32 %v1084, %v1201
      %v1260 = vadd.f32 %v1085, %v1204
      %v1261 = vadd.f32 %v1086, %v1209
      %v1262 = vadd.f32 %v1087, %v1212
      %v1263 = vadd.f32 %v1088, %v1217
      %v1264 = vadd.f32 %v1089, %v1220
      %v1265 = vadd.f32 %v1090, %v1225
      %v1266 = vadd.f32 %v1091, %v1228
      %v1267 = vadd.f32 %v1092, %v1233
      %v1268 = vadd.f32 %v1093, %v1236
      %v1269 = vadd.f32 %v1094, %v1241
      %v1270 = vadd.f32 %v1095, %v1244
      %v1271 = vadd.f32 %v1096, %v1249
      %v1272 = vadd.f32 %v1097, %v1252
      %v1273 = vpack.c.bf16 %v211, %v210
      %v1274 = vpack.c.bf16 %v212, %v212
      %s1275 = scalar_lea.vmem %s171, 24
      %v1276 = vld [vmem:[%s1275] sm:$0xf]
      %v1279 = vrot.slane %v1273, 2
      %v1280 = vsel %vm1100, %v1116, %v1279
      %v1281 = vrot.slane %v1274, 2
      %v1282 = vsel %vm1100, %v1279, %v1281
      %v1284 = vsel %vm303, %v1280, 0
      %v1287 = vsel %vm303, %v1282, 0
      %v1290 = vsel %vm331, %v1276, 0
      %1292 = vmatprep.subr.bf16.mxu0 0
      %1293 = vmatpush1.bf16.msra.mxu0 0
      %1294 = vmatprep.subr.bf16.mxu0 0
      %1295 = vmatpush1.bf16.msra.mxu0 0
      %1296 = vmatprep.subr.bf16.mxu0 0
      %1297 = vmatpush1.bf16.msra.mxu0 0
      %1298 = vmatprep.subr.bf16.mxu0 0
      %1299 = vmatpush1.bf16.msra.mxu0 0
      %1300 = vmatprep.subr.bf16.mxu0 0
      %1301 = vmatpush1.bf16.msra.mxu0 0
      %1302 = vmatprep.subr.bf16.mxu0 0
      %1303 = vmatpush1.bf16.msra.mxu0 0
      %1304 = vmatprep.subr.bf16.mxu0 0
      %1305 = vmatpush1.bf16.msra.mxu0 0
      %1306 = vmatprep.subr.bf16.mxu0 0
      %1307 = vmatpush1.bf16.msra.mxu0 %v1290
      %1308 = vmatprep.subr.bf16.mxu0 0
      %1309 = vmatpush2.bf16.msra.mxu0 0
      %1310 = vmatprep.subr.bf16.mxu0 0
      %1311 = vmatpush2.bf16.msra.mxu0 0
      %1312 = vmatprep.subr.bf16.mxu0 0
      %1313 = vmatpush2.bf16.msra.mxu0 0
      %1314 = vmatprep.subr.bf16.mxu0 0
      %1315 = vmatpush2.bf16.msra.mxu0 0
      %1316 = vmatprep.subr.bf16.mxu0 0
      %1317 = vmatpush2.bf16.msra.mxu0 0
      %1318 = vmatprep.subr.bf16.mxu0 0
      %1319 = vmatpush2.bf16.msra.mxu0 0
      %1320 = vmatprep.subr.bf16.mxu0 0
      %1321 = vmatpush2.bf16.msra.mxu0 0
      %1322 = vmatprep.subr.bf16.mxu0 0
      %1323 = vmatpush2.bf16.msra.mxu0 0
      %1324 = vmatprep.mubr.bf16.mxu0 0
      %1325 = vmatmul.mubr.bf16.gmra.mxu0 %v1124
      %v1326 = vpop.f32.mrf.mxu0
      %v1327 = vadd.f32 0.0, %v1326
      %v1328 = vpop.f32.mrf.mxu0
      %v1329 = vpop.f32.mrf.mxu0
      %v1330 = vadd.f32 0.0, %v1329
      %v1331 = vpop.f32.mrf.mxu0
      %1332 = vmatprep.mubr.bf16.mxu0 0
      %1333 = vmatmul.mubr.bf16.gmra.mxu0 %v1127
      %v1334 = vpop.f32.mrf.mxu0
      %v1335 = vadd.f32 0.0, %v1334
      %v1336 = vpop.f32.mrf.mxu0
      %v1337 = vpop.f32.mrf.mxu0
      %v1338 = vadd.f32 0.0, %v1337
      %v1339 = vpop.f32.mrf.mxu0
      %1340 = vmatprep.mubr.bf16.mxu0 0
      %1341 = vmatmul.mubr.bf16.gmra.mxu0 %v1130
      %v1342 = vpop.f32.mrf.mxu0
      %v1343 = vadd.f32 0.0, %v1342
      %v1344 = vpop.f32.mrf.mxu0
      %v1345 = vpop.f32.mrf.mxu0
      %v1346 = vadd.f32 0.0, %v1345
      %v1347 = vpop.f32.mrf.mxu0
      %1348 = vmatprep.mubr.bf16.mxu0 0
      %1349 = vmatmul.mubr.bf16.gmra.mxu0 %v1133
      %v1350 = vpop.f32.mrf.mxu0
      %v1351 = vadd.f32 0.0, %v1350
      %v1352 = vpop.f32.mrf.mxu0
      %v1353 = vpop.f32.mrf.mxu0
      %v1354 = vadd.f32 0.0, %v1353
      %v1355 = vpop.f32.mrf.mxu0
      %1356 = vmatprep.mubr.bf16.mxu0 0
      %1357 = vmatmul.mubr.bf16.gmra.mxu0 %v1136
      %v1358 = vpop.f32.mrf.mxu0
      %v1359 = vadd.f32 0.0, %v1358
      %v1360 = vpop.f32.mrf.mxu0
      %v1361 = vpop.f32.mrf.mxu0
      %v1362 = vadd.f32 0.0, %v1361
      %v1363 = vpop.f32.mrf.mxu0
      %1364 = vmatprep.mubr.bf16.mxu0 0
      %1365 = vmatmul.mubr.bf16.gmra.mxu0 %v1139
      %v1366 = vpop.f32.mrf.mxu0
      %v1367 = vadd.f32 0.0, %v1366
      %v1368 = vpop.f32.mrf.mxu0
      %v1369 = vpop.f32.mrf.mxu0
      %v1370 = vadd.f32 0.0, %v1369
      %v1371 = vpop.f32.mrf.mxu0
      %1372 = vmatprep.mubr.bf16.mxu0 0
      %1373 = vmatmul.mubr.bf16.gmra.mxu0 %v1142
      %v1374 = vpop.f32.mrf.mxu0
      %v1375 = vadd.f32 0.0, %v1374
      %v1376 = vpop.f32.mrf.mxu0
      %v1377 = vpop.f32.mrf.mxu0
      %v1378 = vadd.f32 0.0, %v1377
      %v1379 = vpop.f32.mrf.mxu0
      %1380 = vmatprep.mubr.bf16.mxu0 0
      %1381 = vmatmul.mubr.bf16.gmra.mxu0 %v1284
      %v1382 = vpop.f32.mrf.mxu0
      %v1383 = vadd.f32 0.0, %v1382
      %v1384 = vpop.f32.mrf.mxu0
      %v1385 = vpop.f32.mrf.mxu0
      %v1386 = vadd.f32 0.0, %v1385
      %v1387 = vpop.f32.mrf.mxu0
      %1388 = vmatprep.mubr.bf16.mxu0 0
      %1389 = vmatmul.mubr.bf16.gmra.mxu0 %v1287
      %v1390 = vpop.f32.mrf.mxu0
      %v1391 = vadd.f32 0.0, %v1390
      %v1392 = vpop.f32.mrf.mxu0
      %v1393 = vpop.f32.mrf.mxu0
      %v1394 = vadd.f32 0.0, %v1393
      %v1395 = vpop.f32.mrf.mxu0
      %1396 = vdwg.mxu0
      %v1397 = vadd.f32 %v1255, %v1327
      %v1398 = vadd.f32 %v1256, %v1330
      %v1399 = vadd.f32 %v1257, %v1335
      %v1400 = vadd.f32 %v1258, %v1338
      %v1401 = vadd.f32 %v1259, %v1343
      %v1402 = vadd.f32 %v1260, %v1346
      %v1403 = vadd.f32 %v1261, %v1351
      %v1404 = vadd.f32 %v1262, %v1354
      %v1405 = vadd.f32 %v1263, %v1359
      %v1406 = vadd.f32 %v1264, %v1362
      %v1407 = vadd.f32 %v1265, %v1367
      %v1408 = vadd.f32 %v1266, %v1370
      %v1409 = vadd.f32 %v1267, %v1375
      %v1410 = vadd.f32 %v1268, %v1378
      %v1411 = vadd.f32 %v1269, %v1383
      %v1412 = vadd.f32 %v1270, %v1386
      %v1413 = vadd.f32 %v1271, %v1391
      %v1414 = vadd.f32 %v1272, %v1394
      %s1415 = scalar_lea.vmem %s171, 28
      %v1416 = vld [vmem:[%s1415] sm:$0xf]
      %vm1417 = vsmask.f32 5376
      %v1418 = vrot.slane %v247, 2
      %v1419 = vrot.slane %v243, 3
      %v1420 = vor.u32 %v1418, %v1419
      %v1421 = vrot.slane %v255, 2
      %v1422 = vrot.slane %v251, 3
      %v1423 = vor.u32 %v1421, %v1422
      %v1424 = vsel %vm1417, %v1420, %v1423
      %v1425 = vrot.slane %v263, 2
      %v1426 = vrot.slane %v259, 3
      %v1427 = vor.u32 %v1425, %v1426
      %v1428 = vsel %vm1417, %v1423, %v1427
      %v1429 = vrot.slane %v271, 2
      %v1430 = vrot.slane %v267, 3
      %v1431 = vor.u32 %v1429, %v1430
      %v1432 = vsel %vm1417, %v1427, %v1431
      %v1433 = vrot.slane %v279, 2
      %v1434 = vrot.slane %v275, 3
      %v1435 = vor.u32 %v1433, %v1434
      %v1436 = vsel %vm1417, %v1431, %v1435
      %v1437 = vrot.slane %v287, 2
      %v1438 = vrot.slane %v283, 3
      %v1439 = vor.u32 %v1437, %v1438
      %v1440 = vsel %vm1417, %v1435, %v1439
      %v1441 = vrot.slane %v295, 2
      %v1442 = vrot.slane %v291, 3
      %v1443 = vor.u32 %v1441, %v1442
      %v1444 = vsel %vm1417, %v1439, %v1443
      %v1445 = vrot.slane %v928, 2
      %v1446 = vrot.slane %v931, 3
      %v1447 = vor.u32 %v1445, %v1446
      %v1448 = vsel %vm1417, %v1443, %v1447
      %v1450 = vshrl.u32 %v1273, 16
      %v1452 = vrot.slane %v1450, 2
      %v1453 = vshll.u32 %v1273, 16
      %v1455 = vrot.slane %v1453, 3
      %v1456 = vor.u32 %v1452, %v1455
      %v1457 = vsel %vm1417, %v1447, %v1456
      %v1459 = vshrl.u32 %v1274, 16
      %v1461 = vrot.slane %v1459, 2
      %v1462 = vshll.u32 %v1274, 16
      %v1464 = vrot.slane %v1462, 3
      %v1465 = vor.u32 %v1461, %v1464
      %v1466 = vsel %vm1417, %v1456, %v1465
      %v1468 = vsel %vm303, %v1424, 0
      %v1471 = vsel %vm303, %v1428, 0
      %v1474 = vsel %vm303, %v1432, 0
      %v1477 = vsel %vm303, %v1436, 0
      %v1480 = vsel %vm303, %v1440, 0
      %v1483 = vsel %vm303, %v1444, 0
      %v1486 = vsel %vm303, %v1448, 0
      %v1489 = vsel %vm303, %v1457, 0
      %v1492 = vsel %vm303, %v1466, 0
      %v1495 = vsel %vm331, %v1416, 0
      %1497 = vmatprep.subr.bf16.mxu0 0
      %1498 = vmatpush1.bf16.msra.mxu0 0
      %1499 = vmatprep.subr.bf16.mxu0 0
      %1500 = vmatpush1.bf16.msra.mxu0 0
      %1501 = vmatprep.subr.bf16.mxu0 0
      %1502 = vmatpush1.bf16.msra.mxu0 0
      %1503 = vmatprep.subr.bf16.mxu0 0
      %1504 = vmatpush1.bf16.msra.mxu0 0
      %1505 = vmatprep.subr.bf16.mxu0 0
      %1506 = vmatpush1.bf16.msra.mxu0 0
      %1507 = vmatprep.subr.bf16.mxu0 0
      %1508 = vmatpush1.bf16.msra.mxu0 0
      %1509 = vmatprep.subr.bf16.mxu0 0
      %1510 = vmatpush1.bf16.msra.mxu0 0
      %1511 = vmatprep.subr.bf16.mxu0 0
      %1512 = vmatpush1.bf16.msra.mxu0 %v1495
      %1513 = vmatprep.subr.bf16.mxu0 0
      %1514 = vmatpush2.bf16.msra.mxu0 0
      %1515 = vmatprep.subr.bf16.mxu0 0
      %1516 = vmatpush2.bf16.msra.mxu0 0
      %1517 = vmatprep.subr.bf16.mxu0 0
      %1518 = vmatpush2.bf16.msra.mxu0 0
      %1519 = vmatprep.subr.bf16.mxu0 0
      %1520 = vmatpush2.bf16.msra.mxu0 0
      %1521 = vmatprep.subr.bf16.mxu0 0
      %1522 = vmatpush2.bf16.msra.mxu0 0
      %1523 = vmatprep.subr.bf16.mxu0 0
      %1524 = vmatpush2.bf16.msra.mxu0 0
      %1525 = vmatprep.subr.bf16.mxu0 0
      %1526 = vmatpush2.bf16.msra.mxu0 0
      %1527 = vmatprep.subr.bf16.mxu0 0
      %1528 = vmatpush2.bf16.msra.mxu0 0
      %1529 = vmatprep.mubr.bf16.mxu0 0
      %1530 = vmatmul.mubr.bf16.gmra.mxu0 %v1468
      %v1531 = vpop.f32.mrf.mxu0
      %v1532 = vadd.f32 0.0, %v1531
      %v1533 = vpop.f32.mrf.mxu0
      %v1534 = vpop.f32.mrf.mxu0
      %v1535 = vadd.f32 0.0, %v1534
      %v1536 = vpop.f32.mrf.mxu0
      %1537 = vmatprep.mubr.bf16.mxu0 0
      %1538 = vmatmul.mubr.bf16.gmra.mxu0 %v1471
      %v1539 = vpop.f32.mrf.mxu0
      %v1540 = vadd.f32 0.0, %v1539
      %v1541 = vpop.f32.mrf.mxu0
      %v1542 = vpop.f32.mrf.mxu0
      %v1543 = vadd.f32 0.0, %v1542
      %v1544 = vpop.f32.mrf.mxu0
      %1545 = vmatprep.mubr.bf16.mxu0 0
      %1546 = vmatmul.mubr.bf16.gmra.mxu0 %v1474
      %v1547 = vpop.f32.mrf.mxu0
      %v1548 = vadd.f32 0.0, %v1547
      %v1549 = vpop.f32.mrf.mxu0
      %v1550 = vpop.f32.mrf.mxu0
      %v1551 = vadd.f32 0.0, %v1550
      %v1552 = vpop.f32.mrf.mxu0
      %1553 = vmatprep.mubr.bf16.mxu0 0
      %1554 = vmatmul.mubr.bf16.gmra.mxu0 %v1477
      %v1555 = vpop.f32.mrf.mxu0
      %v1556 = vadd.f32 0.0, %v1555
      %v1557 = vpop.f32.mrf.mxu0
      %v1558 = vpop.f32.mrf.mxu0
      %v1559 = vadd.f32 0.0, %v1558
      %v1560 = vpop.f32.mrf.mxu0
      %1561 = vmatprep.mubr.bf16.mxu0 0
      %1562 = vmatmul.mubr.bf16.gmra.mxu0 %v1480
      %v1563 = vpop.f32.mrf.mxu0
      %v1564 = vadd.f32 0.0, %v1563
      %v1565 = vpop.f32.mrf.mxu0
      %v1566 = vpop.f32.mrf.mxu0
      %v1567 = vadd.f32 0.0, %v1566
      %v1568 = vpop.f32.mrf.mxu0
      %1569 = vmatprep.mubr.bf16.mxu0 0
      %1570 = vmatmul.mubr.bf16.gmra.mxu0 %v1483
      %v1571 = vpop.f32.mrf.mxu0
      %v1572 = vadd.f32 0.0, %v1571
      %v1573 = vpop.f32.mrf.mxu0
      %v1574 = vpop.f32.mrf.mxu0
      %v1575 = vadd.f32 0.0, %v1574
      %v1576 = vpop.f32.mrf.mxu0
      %1577 = vmatprep.mubr.bf16.mxu0 0
      %1578 = vmatmul.mubr.bf16.gmra.mxu0 %v1486
      %v1579 = vpop.f32.mrf.mxu0
      %v1580 = vadd.f32 0.0, %v1579
      %v1581 = vpop.f32.mrf.mxu0
      %v1582 = vpop.f32.mrf.mxu0
      %v1583 = vadd.f32 0.0, %v1582
      %v1584 = vpop.f32.mrf.mxu0
      %1585 = vmatprep.mubr.bf16.mxu0 0
      %1586 = vmatmul.mubr.bf16.gmra.mxu0 %v1489
      %v1587 = vpop.f32.mrf.mxu0
      %v1588 = vadd.f32 0.0, %v1587
      %v1589 = vpop.f32.mrf.mxu0
      %v1590 = vpop.f32.mrf.mxu0
      %v1591 = vadd.f32 0.0, %v1590
      %v1592 = vpop.f32.mrf.mxu0
      %1593 = vmatprep.mubr.bf16.mxu0 0
      %1594 = vmatmul.mubr.bf16.gmra.mxu0 %v1492
      %v1595 = vpop.f32.mrf.mxu0
      %v1596 = vadd.f32 0.0, %v1595
      %v1597 = vpop.f32.mrf.mxu0
      %v1598 = vpop.f32.mrf.mxu0
      %v1599 = vadd.f32 0.0, %v1598
      %v1600 = vpop.f32.mrf.mxu0
      %1601 = vdwg.mxu0
      %v1602 = vadd.f32 %v1397, %v1532
      %v1603 = vadd.f32 %v1398, %v1535
      %v1604 = vadd.f32 %v1399, %v1540
      %v1605 = vadd.f32 %v1400, %v1543
      %v1606 = vadd.f32 %v1401, %v1548
      %v1607 = vadd.f32 %v1402, %v1551
      %v1608 = vadd.f32 %v1403, %v1556
      %v1609 = vadd.f32 %v1404, %v1559
      %v1610 = vadd.f32 %v1405, %v1564
      %v1611 = vadd.f32 %v1406, %v1567
      %v1612 = vadd.f32 %v1407, %v1572
      %v1613 = vadd.f32 %v1408, %v1575
      %v1614 = vadd.f32 %v1409, %v1580
      %v1615 = vadd.f32 %v1410, %v1583
      %v1616 = vadd.f32 %v1411, %v1588
      %v1617 = vadd.f32 %v1412, %v1591
      %v1618 = vadd.f32 %v1413, %v1596
      %v1619 = vadd.f32 %v1414, %v1599
      %s1620 = scalar_lea.vmem %s171, 32
      %v1621 = vld [vmem:[%s1620] sm:$0xf]
      %vm1622 = vcmask 1044480
      %v1623 = vrot.slane %v215, 3
      %v1624 = vrot.slane %v216, 3
      %v1625 = vsel %vm1622, %v1623, %v1624
      %v1626 = vrot.slane %v217, 3
      %v1627 = vsel %vm1622, %v1624, %v1626
      %v1628 = vrot.slane %v218, 3
      %v1629 = vsel %vm1622, %v1626, %v1628
      %v1630 = vrot.slane %v219, 3
      %v1631 = vsel %vm1622, %v1628, %v1630
      %v1632 = vrot.slane %v220, 3
      %v1633 = vsel %vm1622, %v1630, %v1632
      %v1634 = vrot.slane %v221, 3
      %v1635 = vsel %vm1622, %v1632, %v1634
      %v1636 = vrot.slane %v751, 3
      %v1637 = vsel %vm1622, %v1634, %v1636
      %v1638 = vrot.slane %v1273, 3
      %v1639 = vsel %vm1622, %v1636, %v1638
      %v1640 = vrot.slane %v1274, 3
      %v1641 = vsel %vm1622, %v1638, %v1640
      %v1643 = vsel %vm303, %v1625, 0
      %v1646 = vsel %vm303, %v1627, 0
      %v1649 = vsel %vm303, %v1629, 0
      %v1652 = vsel %vm303, %v1631, 0
      %v1655 = vsel %vm303, %v1633, 0
      %v1658 = vsel %vm303, %v1635, 0
      %v1661 = vsel %vm303, %v1637, 0
      %v1664 = vsel %vm303, %v1639, 0
      %v1667 = vsel %vm303, %v1641, 0
      %v1670 = vsel %vm331, %v1621, 0
      %1672 = vmatprep.subr.bf16.mxu0 0
      %1673 = vmatpush1.bf16.msra.mxu0 0
      %1674 = vmatprep.subr.bf16.mxu0 0
      %1675 = vmatpush1.bf16.msra.mxu0 0
      %1676 = vmatprep.subr.bf16.mxu0 0
      %1677 = vmatpush1.bf16.msra.mxu0 0
      %1678 = vmatprep.subr.bf16.mxu0 0
      %1679 = vmatpush1.bf16.msra.mxu0 0
      %1680 = vmatprep.subr.bf16.mxu0 0
      %1681 = vmatpush1.bf16.msra.mxu0 0
      %1682 = vmatprep.subr.bf16.mxu0 0
      %1683 = vmatpush1.bf16.msra.mxu0 0
      %1684 = vmatprep.subr.bf16.mxu0 0
      %1685 = vmatpush1.bf16.msra.mxu0 0
      %1686 = vmatprep.subr.bf16.mxu0 0
      %1687 = vmatpush1.bf16.msra.mxu0 %v1670
      %1688 = vmatprep.subr.bf16.mxu0 0
      %1689 = vmatpush2.bf16.msra.mxu0 0
      %1690 = vmatprep.subr.bf16.mxu0 0
      %1691 = vmatpush2.bf16.msra.mxu0 0
      %1692 = vmatprep.subr.bf16.mxu0 0
      %1693 = vmatpush2.bf16.msra.mxu0 0
      %1694 = vmatprep.subr.bf16.mxu0 0
      %1695 = vmatpush2.bf16.msra.mxu0 0
      %1696 = vmatprep.subr.bf16.mxu0 0
      %1697 = vmatpush2.bf16.msra.mxu0 0
      %1698 = vmatprep.subr.bf16.mxu0 0
      %1699 = vmatpush2.bf16.msra.mxu0 0
      %1700 = vmatprep.subr.bf16.mxu0 0
      %1701 = vmatpush2.bf16.msra.mxu0 0
      %1702 = vmatprep.subr.bf16.mxu0 0
      %1703 = vmatpush2.bf16.msra.mxu0 0
      %1704 = vmatprep.mubr.bf16.mxu0 0
      %1705 = vmatmul.mubr.bf16.gmra.mxu0 %v1643
      %v1706 = vpop.f32.mrf.mxu0
      %v1707 = vadd.f32 0.0, %v1706
      %v1708 = vpop.f32.mrf.mxu0
      %v1709 = vpop.f32.mrf.mxu0
      %v1710 = vadd.f32 0.0, %v1709
      %v1711 = vpop.f32.mrf.mxu0
      %1712 = vmatprep.mubr.bf16.mxu0 0
      %1713 = vmatmul.mubr.bf16.gmra.mxu0 %v1646
      %v1714 = vpop.f32.mrf.mxu0
      %v1715 = vadd.f32 0.0, %v1714
      %v1716 = vpop.f32.mrf.mxu0
      %v1717 = vpop.f32.mrf.mxu0
      %v1718 = vadd.f32 0.0, %v1717
      %v1719 = vpop.f32.mrf.mxu0
      %1720 = vmatprep.mubr.bf16.mxu0 0
      %1721 = vmatmul.mubr.bf16.gmra.mxu0 %v1649
      %v1722 = vpop.f32.mrf.mxu0
      %v1723 = vadd.f32 0.0, %v1722
      %v1724 = vpop.f32.mrf.mxu0
      %v1725 = vpop.f32.mrf.mxu0
      %v1726 = vadd.f32 0.0, %v1725
      %v1727 = vpop.f32.mrf.mxu0
      %1728 = vmatprep.mubr.bf16.mxu0 0
      %1729 = vmatmul.mubr.bf16.gmra.mxu0 %v1652
      %v1730 = vpop.f32.mrf.mxu0
      %v1731 = vadd.f32 0.0, %v1730
      %v1732 = vpop.f32.mrf.mxu0
      %v1733 = vpop.f32.mrf.mxu0
      %v1734 = vadd.f32 0.0, %v1733
      %v1735 = vpop.f32.mrf.mxu0
      %1736 = vmatprep.mubr.bf16.mxu0 0
      %1737 = vmatmul.mubr.bf16.gmra.mxu0 %v1655
      %v1738 = vpop.f32.mrf.mxu0
      %v1739 = vadd.f32 0.0, %v1738
      %v1740 = vpop.f32.mrf.mxu0
      %v1741 = vpop.f32.mrf.mxu0
      %v1742 = vadd.f32 0.0, %v1741
      %v1743 = vpop.f32.mrf.mxu0
      %1744 = vmatprep.mubr.bf16.mxu0 0
      %1745 = vmatmul.mubr.bf16.gmra.mxu0 %v1658
      %v1746 = vpop.f32.mrf.mxu0
      %v1747 = vadd.f32 0.0, %v1746
      %v1748 = vpop.f32.mrf.mxu0
      %v1749 = vpop.f32.mrf.mxu0
      %v1750 = vadd.f32 0.0, %v1749
      %v1751 = vpop.f32.mrf.mxu0
      %1752 = vmatprep.mubr.bf16.mxu0 0
      %1753 = vmatmul.mubr.bf16.gmra.mxu0 %v1661
      %v1754 = vpop.f32.mrf.mxu0
      %v1755 = vadd.f32 0.0, %v1754
      %v1756 = vpop.f32.mrf.mxu0
      %v1757 = vpop.f32.mrf.mxu0
      %v1758 = vadd.f32 0.0, %v1757
      %v1759 = vpop.f32.mrf.mxu0
      %1760 = vmatprep.mubr.bf16.mxu0 0
      %1761 = vmatmul.mubr.bf16.gmra.mxu0 %v1664
      %v1762 = vpop.f32.mrf.mxu0
      %v1763 = vadd.f32 0.0, %v1762
      %v1764 = vpop.f32.mrf.mxu0
      %v1765 = vpop.f32.mrf.mxu0
      %v1766 = vadd.f32 0.0, %v1765
      %v1767 = vpop.f32.mrf.mxu0
      %1768 = vmatprep.mubr.bf16.mxu0 0
      %1769 = vmatmul.mubr.bf16.gmra.mxu0 %v1667
      %v1770 = vpop.f32.mrf.mxu0
      %v1771 = vadd.f32 0.0, %v1770
      %v1772 = vpop.f32.mrf.mxu0
      %v1773 = vpop.f32.mrf.mxu0
      %v1774 = vadd.f32 0.0, %v1773
      %v1775 = vpop.f32.mrf.mxu0
      %1776 = vdwg.mxu0
      %v1777 = vadd.f32 %v1602, %v1707
      %v1778 = vadd.f32 %v1603, %v1710
      %v1779 = vadd.f32 %v1604, %v1715
      %v1780 = vadd.f32 %v1605, %v1718
      %v1781 = vadd.f32 %v1606, %v1723
      %v1782 = vadd.f32 %v1607, %v1726
      %v1783 = vadd.f32 %v1608, %v1731
      %v1784 = vadd.f32 %v1609, %v1734
      %v1785 = vadd.f32 %v1610, %v1739
      %v1786 = vadd.f32 %v1611, %v1742
      %v1787 = vadd.f32 %v1612, %v1747
      %v1788 = vadd.f32 %v1613, %v1750
      %v1789 = vadd.f32 %v1614, %v1755
      %v1790 = vadd.f32 %v1615, %v1758
      %v1791 = vadd.f32 %v1616, %v1763
      %v1792 = vadd.f32 %v1617, %v1766
      %v1793 = vadd.f32 %v1618, %v1771
      %v1794 = vadd.f32 %v1619, %v1774
      %v1795 = vmax.f32 %v1777, 0.0
      %v1796 = vmax.f32 %v1778, 0.0
      %v1797 = vmax.f32 %v1779, 0.0
      %v1798 = vmax.f32 %v1780, 0.0
      %v1799 = vmax.f32 %v1781, 0.0
      %v1800 = vmax.f32 %v1782, 0.0
      %v1801 = vmax.f32 %v1783, 0.0
      %v1802 = vmax.f32 %v1784, 0.0
      %v1803 = vmax.f32 %v1785, 0.0
      %v1804 = vmax.f32 %v1786, 0.0
      %v1805 = vmax.f32 %v1787, 0.0
      %v1806 = vmax.f32 %v1788, 0.0
      %v1807 = vmax.f32 %v1789, 0.0
      %v1808 = vmax.f32 %v1790, 0.0
      %v1809 = vmax.f32 %v1791, 0.0
      %v1810 = vmax.f32 %v1792, 0.0
      %v1811 = vmax.f32 %v1793, 0.0
      %v1812 = vmax.f32 %v1794, 0.0
      %1813 = vst.msk [vmem:[%s185] sm:$0xff] %vm303, %v1795
      %1814 = vst.msk [vmem:[%s185 + $0x8] sm:$0xff] %vm303, %v1796
      %1815 = vst.msk [vmem:[%s185 + $0x10] sm:$0xff] %vm303, %v1797
      %1816 = vst.msk [vmem:[%s185 + $0x18] sm:$0xff] %vm303, %v1798
      %1817 = vst.msk [vmem:[%s185 + $0x20] sm:$0xff] %vm303, %v1799
      %1818 = vst.msk [vmem:[%s185 + $0x28] sm:$0xff] %vm303, %v1800
      %1819 = vst.msk [vmem:[%s185 + $0x30] sm:$0xff] %vm303, %v1801
      %1820 = vst.msk [vmem:[%s185 + $0x38] sm:$0xff] %vm303, %v1802
      %1821 = vst.msk [vmem:[%s185 + $0x40] sm:$0xff] %vm303, %v1803
      %1822 = vst.msk [vmem:[%s185 + $0x48] sm:$0xff] %vm303, %v1804
      %1823 = vst.msk [vmem:[%s185 + $0x50] sm:$0xff] %vm303, %v1805
      %1824 = vst.msk [vmem:[%s185 + $0x58] sm:$0xff] %vm303, %v1806
      %1825 = vst.msk [vmem:[%s185 + $0x60] sm:$0xff] %vm303, %v1807
      %1826 = vst.msk [vmem:[%s185 + $0x68] sm:$0xff] %vm303, %v1808
      %1827 = vst.msk [vmem:[%s185 + $0x70] sm:$0xff] %vm303, %v1809
      %1828 = vst.msk [vmem:[%s185 + $0x78] sm:$0xff] %vm303, %v1810
      %1829 = vst.msk [vmem:[%s185 + $0x80] sm:$0xff] %vm303, %v1811
      %1830 = vst.msk [vmem:[%s185 + $0x88] sm:$0xff] %vm303, %v1812
      %s1831 = smul.u32 18, %s18
      %p1832 = scmp.lt.s32.totalorder %s17, 1
      %s1833 = scalar_select %p1832, %s17, 1
      %p1834 = scmp.lt.s32.totalorder %s1831, 35
      %s1835 = scalar_select %p1834, %s1831, 35
      %s1836 = smul.addr %s1833, 36
      %s1837 = sadd.s32 %s1835, %s1836
      %s1838 = smul.addr %s1837, 8
      %s1839 = scalar_lea.vmem %s2, %s1838
      // Predicated region
      $region29: #{crab_layer_forward.2} parent=27 // pred_check
        %p1840 = pneg %p97
      $region30: #{crab_layer_forward.2} parent=27 // pred_check_branch
        %1842 = sbr.rel (%p1840) target = $region32
      $region31: #{crab_layer_forward.2} parent=27 // pred_region
        %s1843 = smul.u32 18, %s18
      $region32: #{crab_layer_forward.2} parent=27 // pred_fallthru
        _
    $region28: #{crab_layer_forward.2} parent=5 // pred_fallthru
      _
    %p1844 = scmp.le.s32.totalorder 2, %s8
    // Predicated region
    $region33: #{crab_layer_forward.2} parent=5 // pred_check
      %p1845 = pneg %p1844
    $region34: #{crab_layer_forward.2} parent=5 // pred_check_branch
      %1847 = sbr.rel (%p1845) target = $region36
    $region35: #{crab_layer_forward.2} parent=5 // pred_region
      %s1848 = ssub.s32 %s8, 2
      // Predicated region
      $region37: #{crab_layer_forward.2} parent=35 // pred_check
        %p1849 = pneg %p103
      $region38: #{crab_layer_forward.2} parent=35 // pred_check_branch
        %1851 = sbr.rel (%p1849) target = $region40
      $region39: #{crab_layer_forward.2} parent=35 // pred_region
        %s1852 = smul.u32 18, %s20
        %p1853 = scmp.lt.s32.totalorder %s19, 1
        %s1854 = scalar_select %p1853, %s19, 1
        %p1855 = scmp.lt.s32.totalorder %s1852, 35
        %s1856 = scalar_select %p1855, %s1852, 35
        %s1857 = smul.addr %s1854, 36
        %s1858 = sadd.s32 %s1856, %s1857
        %s1859 = smul.addr %s1858, 8
        %s1860 = scalar_lea.vmem %s2, %s1859
      $region40: #{crab_layer_forward.2} parent=35 // pred_fallthru
        _
    $region36: #{crab_layer_forward.2} parent=5 // pred_fallthru
      _
  $region6: #{crab_layer_forward.2} parent=0 // loop_footer
    %s12 = sadd.s32 1, %s8
  $region7: #{crab_layer_forward.2} parent=0 // loop_footer_branch
    %7 = sbr.rel target = $region3
  $region8: #{crab_layer_forward.2} parent=0 // loop_exit
    _

</llo_original>
